<compile_context>
chip_gen: v7x
topology: tpu7x:2x2x1
jax: 0.10.0
libtpu: 0.0.40
codegen_flags: <defaults>
</compile_context>

<pallas_src>
import math

import jax
import jax.numpy as jnp
from jax.experimental import pallas as pl
from jax.experimental.pallas import tpu as pltpu


def _softplus(x):
    # Numerically stable log(1 + exp(x)); BCEWithLogits pieces:
    #   target=1 -> softplus(-x), target=0 -> softplus(x)
    return jnp.maximum(x, 0.0) + jnp.log1p(jnp.exp(-jnp.abs(x)))


def macr_loss_kernel(uid_ref, nuid_ref, pos_ref, neg_ref, scal_ref, w_ref,
                     utab_ref, itab_ref, out_ref, x_scr, sem):
    B = uid_ref.shape[0]
    E = utab_ref.shape[1]

    # ---- In-kernel embedding gather: 4*B row DMAs HBM -> VMEM scratch ------
    # x_scr rows: [ue (0..B) | nue (B..2B) | ph (2B..3B) | nh (3B..4B)]
    idx_refs = (uid_ref, nuid_ref, pos_ref, neg_ref)
    tabs = (utab_ref, utab_ref, itab_ref, itab_ref)
    copies = []
    for seg in range(4):
        for i in range(B):
            row = seg * B + i
            cp = pltpu.make_async_copy(
                tabs[seg].at[pl.ds(idx_refs[seg][i], 1)],   # [1, E] HBM row
                x_scr.at[pl.ds(row, 1)],                    # [1, E] VMEM row
                sem.at[row])
            cp.start()
            copies.append(cp)

    # Scalar reads before the DMA waits.
    bu = scal_ref[0]       # user_lin bias
    bi = scal_ref[1]       # item_lin bias
    alpha = scal_ref[2]
    beta = scal_ref[3]
    l2rg = scal_ref[4]

    for cp in copies:
        cp.wait()

    x = x_scr[...].astype(jnp.float32)          # [4B, E]
    ue = x[0 * B:1 * B]                         # [B, E]
    nue = x[1 * B:2 * B]
    ph = x[2 * B:3 * B]
    nh = x[3 * B:4 * B]

    w = w_ref[...].astype(jnp.float32)          # [2, E]  (row 0 = wu, row 1 = wi)
    wu = w[0:1, :]
    wi = w[1:2, :]

    # ---- Linear(edim->1) logits: VPU multiply + lane reduction -------------
    pos_user_logits = jnp.sum(ue * wu, axis=-1, keepdims=True) + bu    # [B, 1]
    neg_user_logits = jnp.sum(nue * wu, axis=-1, keepdims=True) + bu
    pos_item_logits = jnp.sum(ph * wi, axis=-1, keepdims=True) + bi
    neg_item_logits = jnp.sum(nh * wi, axis=-1, keepdims=True) + bi

    # ---- Pairwise dots + L2 norms (derived from the same slab) -------------
    dot_pos = jnp.sum(ue * ph, axis=-1, keepdims=True)                 # [B, 1]
    dot_neg = jnp.sum(ue * nh, axis=-1, keepdims=True)                 # [B, 1]
    l2_total = jnp.sum(ue * ue + ph * ph + nh * nh)                    # scalar

    pos_user_prob = jax.nn.sigmoid(pos_user_logits)                    # [B, 1]
    pos_item_prob = jax.nn.sigmoid(pos_item_logits)
    neg_item_prob = jax.nn.sigmoid(neg_item_logits)

    # Sublane column -> lane row without MXU or transpose: scatter the [B,1]
    # dot columns onto the diagonal of a [B,B] mask and sublane-reduce.
    eye = (jax.lax.broadcasted_iota(jnp.int32, (B, B), 0)
           == jax.lax.broadcasted_iota(jnp.int32, (B, B), 1))
    dot_pos_row = jnp.sum(jnp.where(eye, dot_pos, 0.0), axis=0, keepdims=True)  # [1, B]
    dot_neg_row = jnp.sum(jnp.where(eye, dot_neg, 0.0), axis=0, keepdims=True)  # [1, B]

    # torch broadcast [B,1] * [B] -> [B,B], done as a VPU column x row product.
    pos_pair_logits = (pos_user_prob * pos_item_prob) * dot_pos_row    # [B, B]
    neg_pair_logits = (pos_user_prob * neg_item_prob) * dot_neg_row    # [B, B]

    # BCE-with-logits (targets all-ones / all-zeros), fused scalar epilogue.
    pair_sum = jnp.sum(_softplus(-pos_pair_logits) + _softplus(neg_pair_logits))
    ui_sum = jnp.sum(
        alpha * (_softplus(-pos_user_logits) + _softplus(neg_user_logits))
        + beta * (_softplus(-pos_item_logits) + _softplus(neg_item_logits)))

    inv_b = 1.0 / B
    loss = pair_sum * (inv_b * inv_b) + ui_sum * inv_b + l2rg * (l2_total * inv_b)
    out_ref[0, 0] = loss


def macr_rank_loss(params, uid, pos, neg, neg_uid, *, alpha, beta, l2rg):
    user_embs, item_embs, wu, bu, wi, bi = params
    B = uid.shape[0]
    E = user_embs.shape[1]

    # Packed linear weights: row 0 = user_lin weight, row 1 = item_lin weight.
    w = jnp.concatenate([wu, wi], axis=0).astype(jnp.float32)          # [2, E]

    # Runtime scalars in SMEM: [bu, bi, alpha, beta, l2rg].
    scal = jnp.concatenate([
        bu.astype(jnp.float32).reshape(-1),
        bi.astype(jnp.float32).reshape(-1),
        jnp.asarray([alpha, beta, l2rg], dtype=jnp.float32),
    ])

    smem = pl.BlockSpec(memory_space=pltpu.MemorySpace.SMEM)
    vmem = pl.BlockSpec(memory_space=pltpu.MemorySpace.VMEM)
    hbm = pl.BlockSpec(memory_space=pl.ANY)   # tables stay in HBM, gathered in-kernel

    out = pl.pallas_call(
        macr_loss_kernel,
        out_shape=jax.ShapeDtypeStruct((1, 1), jnp.float32),
        in_specs=[smem, smem, smem, smem, smem, vmem, hbm, hbm],
        out_specs=pl.BlockSpec(memory_space=pltpu.MemorySpace.SMEM),
        scratch_shapes=[
            pltpu.VMEM((4 * B, E), jnp.float32),     # gathered [ue|nue|ph|nh]
            pltpu.SemaphoreType.DMA((4 * B,)),       # one sem per row DMA
        ],
    )(uid.astype(jnp.int32), neg_uid.astype(jnp.int32),
      pos.astype(jnp.int32), neg.astype(jnp.int32),
      scal, w,
      user_embs.astype(jnp.float32), item_embs.astype(jnp.float32))
    return out[0, 0]


def macr_rank_loss_ref(params, uid, pos, neg, neg_uid, *, alpha, beta, l2rg):
    """Pure-JAX reference reproducing the PyTorch forward verbatim."""
    user_embs, item_embs, wu, bu, wi, bi = params
    user_emb = user_embs[uid]
    neg_user_emb = user_embs[neg_uid]
    pos_hi = item_embs[pos]
    neg_hi = item_embs[neg]

    lin = lambda x, w, b: x @ w.T + b            # [B, 1]
    pos_user_logits = lin(user_emb, wu, bu)
    neg_user_logits = lin(neg_user_emb, wu, bu)
    pos_item_logits = lin(pos_hi, wi, bi)
    neg_item_logits = lin(neg_hi, wi, bi)

    pos_user_prob = jax.nn.sigmoid(pos_user_logits)
    pos_item_prob = jax.nn.sigmoid(pos_item_logits)
    neg_item_prob = jax.nn.sigmoid(neg_item_logits)

    # [B,1] * [B] -> [B,B] broadcast, exactly as in torch
    pos_pair_logits = pos_user_prob * pos_item_prob * (user_emb * pos_hi).sum(-1)
    neg_pair_logits = pos_user_prob * neg_item_prob * (user_emb * neg_hi).sum(-1)

    bce1 = lambda x: jnp.mean(_softplus(-x))  # target = 1
    bce0 = lambda x: jnp.mean(_softplus(x))   # target = 0
    pair_loss = bce1(pos_pair_logits) + bce0(neg_pair_logits)
    user_loss = bce1(pos_user_logits) + bce0(neg_user_logits)
    item_loss = bce1(pos_item_logits) + bce0(neg_item_logits)
    emb_loss = ((user_emb ** 2).sum(-1).mean()
                + (pos_hi ** 2).sum(-1).mean()
                + (neg_hi ** 2).sum(-1).mean())
    return pair_loss + alpha * user_loss + beta * item_loss + l2rg * emb_loss


if __name__ == "__main__":
    # Hyper-params (the "args" of the module)
    user_num, item_num, edim = 50, 60, 32
    alpha, beta, c, l2rg = 0.1, 0.2, 1.0, 1e-4
    B = 8

    key = jax.random.PRNGKey(0)
    k = jax.random.split(key, 10)

    # Parameters (deterministic init mirroring the PyTorch __init__)
    user_embs = jax.random.uniform(k[0], (user_num, edim), jnp.float32,
                                   minval=-0.5 / user_num, maxval=0.5 / user_num)
    item_embs = jax.random.uniform(k[1], (item_num, edim), jnp.float32,
                                   minval=-0.5 / item_num, maxval=0.5 / item_num)
    user_embs = user_embs.at[0].set(0.0)   # padding_idx=0
    item_embs = item_embs.at[0].set(0.0)   # padding_idx=0
    bound = 1.0 / math.sqrt(edim)
    wu = jax.random.uniform(k[2], (1, edim), jnp.float32, -bound, bound)
    bu = jax.random.uniform(k[3], (1,), jnp.float32, -bound, bound)
    wi = jax.random.uniform(k[4], (1, edim), jnp.float32, -bound, bound)
    bi = jax.random.uniform(k[5], (1,), jnp.float32, -bound, bound)
    params = (user_embs, item_embs, wu, bu, wi, bi)

    # Batch = (uid, seq, nbr, pos, neg); seq/nbr are unused by forward()
    uid = jax.random.randint(k[6], (B,), 1, user_num)
    pos = jax.random.randint(k[7], (B,), 1, item_num)
    neg = jax.random.randint(k[8], (B,), 1, item_num)
    # torch.randint_like(uid, low=1, high=user_num) -> deterministic JAX sample
    neg_uid = jax.random.randint(k[9], (B,), 1, user_num)

    loss = macr_rank_loss(params, uid, pos, neg, neg_uid,
                          alpha=alpha, beta=beta, l2rg=l2rg)
    loss = jax.block_until_ready(loss)

    ref = macr_rank_loss_ref(params, uid, pos, neg, neg_uid,
                             alpha=alpha, beta=beta, l2rg=l2rg)
    ref = jax.block_until_ready(ref)

    assert jnp.allclose(loss, ref, rtol=1e-5, atol=1e-5), (loss, ref)
    print("KERNEL_OK")
</pallas_src>

<mosaic_0001>
module attributes {stable_mosaic.version = 11 : i64} {
  func.func @macr_loss_kernel(%arg0: memref<8xi32, #tpu.memory_space<smem>>, %arg1: memref<8xi32, #tpu.memory_space<smem>>, %arg2: memref<8xi32, #tpu.memory_space<smem>>, %arg3: memref<8xi32, #tpu.memory_space<smem>>, %arg4: memref<5xf32, #tpu.memory_space<smem>>, %arg5: memref<2x32xf32, #tpu.memory_space<vmem>>, %arg6: memref<50x32xf32, #tpu.memory_space<any>>, %arg7: memref<60x32xf32, #tpu.memory_space<any>>, %arg8: memref<1x1xf32, #tpu.memory_space<smem>>, %arg9: memref<32x32xf32, #tpu.memory_space<vmem>>, %arg10: memref<32x!tpu.dma_semaphore, #tpu.memory_space<semaphore_mem>>) attributes {dimension_semantics = [], scalar_prefetch = 0 : i64, scratch_operands = 2 : i64, tpu.core_type = #tpu.core_type<tc>} {
    %c0 = arith.constant 0 : index
    %0 = memref.load %arg0[%c0] : memref<8xi32, #tpu.memory_space<smem>>
    %c0_i32 = arith.constant 0 : i32
    %c0_i32_0 = arith.constant 0 : i32
    %1 = tpu.memref_slice %arg6[%0, %c0_i32_0] : memref<50x32xf32, #tpu.memory_space<any>> -> memref<1x32xf32, #tpu.memory_space<any>>
    %c0_i32_1 = arith.constant 0 : i32
    %c0_i32_2 = arith.constant 0 : i32
    %2 = tpu.memref_slice %arg9[%c0_i32_1, %c0_i32_2] : memref<32x32xf32, #tpu.memory_space<vmem>> -> memref<1x32xf32, #tpu.memory_space<vmem>>
    %3 = tpu.memref_slice %arg10[%c0_i32] : memref<32x!tpu.dma_semaphore, #tpu.memory_space<semaphore_mem>> -> memref<1x!tpu.dma_semaphore, #tpu.memory_space<semaphore_mem>>
    %4 = tpu.memref_squeeze %3 : memref<1x!tpu.dma_semaphore, #tpu.memory_space<semaphore_mem>> -> memref<!tpu.dma_semaphore, #tpu.memory_space<semaphore_mem>>
    tpu.enqueue_dma source(%1 : memref<1x32xf32, #tpu.memory_space<any>>) target(%2 : memref<1x32xf32, #tpu.memory_space<vmem>>) target_semaphore(%4 : memref<!tpu.dma_semaphore, #tpu.memory_space<semaphore_mem>>)
    %c1 = arith.constant 1 : index
    %5 = memref.load %arg0[%c1] : memref<8xi32, #tpu.memory_space<smem>>
    %c1_i32 = arith.constant 1 : i32
    %c0_i32_3 = arith.constant 0 : i32
    %6 = tpu.memref_slice %arg6[%5, %c0_i32_3] : memref<50x32xf32, #tpu.memory_space<any>> -> memref<1x32xf32, #tpu.memory_space<any>>
    %c1_i32_4 = arith.constant 1 : i32
    %c0_i32_5 = arith.constant 0 : i32
    %7 = tpu.memref_slice %arg9[%c1_i32_4, %c0_i32_5] : memref<32x32xf32, #tpu.memory_space<vmem>> -> memref<1x32xf32, #tpu.memory_space<vmem>>
    %8 = tpu.memref_slice %arg10[%c1_i32] : memref<32x!tpu.dma_semaphore, #tpu.memory_space<semaphore_mem>> -> memref<1x!tpu.dma_semaphore, #tpu.memory_space<semaphore_mem>>
    %9 = tpu.memref_squeeze %8 : memref<1x!tpu.dma_semaphore, #tpu.memory_space<semaphore_mem>> -> memref<!tpu.dma_semaphore, #tpu.memory_space<semaphore_mem>>
    tpu.enqueue_dma source(%6 : memref<1x32xf32, #tpu.memory_space<any>>) target(%7 : memref<1x32xf32, #tpu.memory_space<vmem>>) target_semaphore(%9 : memref<!tpu.dma_semaphore, #tpu.memory_space<semaphore_mem>>)
    %c2 = arith.constant 2 : index
    %10 = memref.load %arg0[%c2] : memref<8xi32, #tpu.memory_space<smem>>
    %c2_i32 = arith.constant 2 : i32
    %c0_i32_6 = arith.constant 0 : i32
    %11 = tpu.memref_slice %arg6[%10, %c0_i32_6] : memref<50x32xf32, #tpu.memory_space<any>> -> memref<1x32xf32, #tpu.memory_space<any>>
    %c2_i32_7 = arith.constant 2 : i32
    %c0_i32_8 = arith.constant 0 : i32
    %12 = tpu.memref_slice %arg9[%c2_i32_7, %c0_i32_8] : memref<32x32xf32, #tpu.memory_space<vmem>> -> memref<1x32xf32, #tpu.memory_space<vmem>>
    %13 = tpu.memref_slice %arg10[%c2_i32] : memref<32x!tpu.dma_semaphore, #tpu.memory_space<semaphore_mem>> -> memref<1x!tpu.dma_semaphore, #tpu.memory_space<semaphore_mem>>
    %14 = tpu.memref_squeeze %13 : memref<1x!tpu.dma_semaphore, #tpu.memory_space<semaphore_mem>> -> memref<!tpu.dma_semaphore, #tpu.memory_space<semaphore_mem>>
    tpu.enqueue_dma source(%11 : memref<1x32xf32, #tpu.memory_space<any>>) target(%12 : memref<1x32xf32, #tpu.memory_space<vmem>>) target_semaphore(%14 : memref<!tpu.dma_semaphore, #tpu.memory_space<semaphore_mem>>)
    %c3 = arith.constant 3 : index
    %15 = memref.load %arg0[%c3] : memref<8xi32, #tpu.memory_space<smem>>
    %c3_i32 = arith.constant 3 : i32
    %c0_i32_9 = arith.constant 0 : i32
    %16 = tpu.memref_slice %arg6[%15, %c0_i32_9] : memref<50x32xf32, #tpu.memory_space<any>> -> memref<1x32xf32, #tpu.memory_space<any>>
    %c3_i32_10 = arith.constant 3 : i32
    %c0_i32_11 = arith.constant 0 : i32
    %17 = tpu.memref_slice %arg9[%c3_i32_10, %c0_i32_11] : memref<32x32xf32, #tpu.memory_space<vmem>> -> memref<1x32xf32, #tpu.memory_space<vmem>>
    %18 = tpu.memref_slice %arg10[%c3_i32] : memref<32x!tpu.dma_semaphore, #tpu.memory_space<semaphore_mem>> -> memref<1x!tpu.dma_semaphore, #tpu.memory_space<semaphore_mem>>
    %19 = tpu.memref_squeeze %18 : memref<1x!tpu.dma_semaphore, #tpu.memory_space<semaphore_mem>> -> memref<!tpu.dma_semaphore, #tpu.memory_space<semaphore_mem>>
    tpu.enqueue_dma source(%16 : memref<1x32xf32, #tpu.memory_space<any>>) target(%17 : memref<1x32xf32, #tpu.memory_space<vmem>>) target_semaphore(%19 : memref<!tpu.dma_semaphore, #tpu.memory_space<semaphore_mem>>)
    %c4 = arith.constant 4 : index
    %20 = memref.load %arg0[%c4] : memref<8xi32, #tpu.memory_space<smem>>
    %c4_i32 = arith.constant 4 : i32
    %c0_i32_12 = arith.constant 0 : i32
    %21 = tpu.memref_slice %arg6[%20, %c0_i32_12] : memref<50x32xf32, #tpu.memory_space<any>> -> memref<1x32xf32, #tpu.memory_space<any>>
    %c4_i32_13 = arith.constant 4 : i32
    %c0_i32_14 = arith.constant 0 : i32
    %22 = tpu.memref_slice %arg9[%c4_i32_13, %c0_i32_14] : memref<32x32xf32, #tpu.memory_space<vmem>> -> memref<1x32xf32, #tpu.memory_space<vmem>>
    %23 = tpu.memref_slice %arg10[%c4_i32] : memref<32x!tpu.dma_semaphore, #tpu.memory_space<semaphore_mem>> -> memref<1x!tpu.dma_semaphore, #tpu.memory_space<semaphore_mem>>
    %24 = tpu.memref_squeeze %23 : memref<1x!tpu.dma_semaphore, #tpu.memory_space<semaphore_mem>> -> memref<!tpu.dma_semaphore, #tpu.memory_space<semaphore_mem>>
    tpu.enqueue_dma source(%21 : memref<1x32xf32, #tpu.memory_space<any>>) target(%22 : memref<1x32xf32, #tpu.memory_space<vmem>>) target_semaphore(%24 : memref<!tpu.dma_semaphore, #tpu.memory_space<semaphore_mem>>)
    %c5 = arith.constant 5 : index
    %25 = memref.load %arg0[%c5] : memref<8xi32, #tpu.memory_space<smem>>
    %c5_i32 = arith.constant 5 : i32
    %c0_i32_15 = arith.constant 0 : i32
    %26 = tpu.memref_slice %arg6[%25, %c0_i32_15] : memref<50x32xf32, #tpu.memory_space<any>> -> memref<1x32xf32, #tpu.memory_space<any>>
    %c5_i32_16 = arith.constant 5 : i32
    %c0_i32_17 = arith.constant 0 : i32
    %27 = tpu.memref_slice %arg9[%c5_i32_16, %c0_i32_17] : memref<32x32xf32, #tpu.memory_space<vmem>> -> memref<1x32xf32, #tpu.memory_space<vmem>>
    %28 = tpu.memref_slice %arg10[%c5_i32] : memref<32x!tpu.dma_semaphore, #tpu.memory_space<semaphore_mem>> -> memref<1x!tpu.dma_semaphore, #tpu.memory_space<semaphore_mem>>
    %29 = tpu.memref_squeeze %28 : memref<1x!tpu.dma_semaphore, #tpu.memory_space<semaphore_mem>> -> memref<!tpu.dma_semaphore, #tpu.memory_space<semaphore_mem>>
    tpu.enqueue_dma source(%26 : memref<1x32xf32, #tpu.memory_space<any>>) target(%27 : memref<1x32xf32, #tpu.memory_space<vmem>>) target_semaphore(%29 : memref<!tpu.dma_semaphore, #tpu.memory_space<semaphore_mem>>)
    %c6 = arith.constant 6 : index
    %30 = memref.load %arg0[%c6] : memref<8xi32, #tpu.memory_space<smem>>
    %c6_i32 = arith.constant 6 : i32
    %c0_i32_18 = arith.constant 0 : i32
    %31 = tpu.memref_slice %arg6[%30, %c0_i32_18] : memref<50x32xf32, #tpu.memory_space<any>> -> memref<1x32xf32, #tpu.memory_space<any>>
    %c6_i32_19 = arith.constant 6 : i32
    %c0_i32_20 = arith.constant 0 : i32
    %32 = tpu.memref_slice %arg9[%c6_i32_19, %c0_i32_20] : memref<32x32xf32, #tpu.memory_space<vmem>> -> memref<1x32xf32, #tpu.memory_space<vmem>>
    %33 = tpu.memref_slice %arg10[%c6_i32] : memref<32x!tpu.dma_semaphore, #tpu.memory_space<semaphore_mem>> -> memref<1x!tpu.dma_semaphore, #tpu.memory_space<semaphore_mem>>
    %34 = tpu.memref_squeeze %33 : memref<1x!tpu.dma_semaphore, #tpu.memory_space<semaphore_mem>> -> memref<!tpu.dma_semaphore, #tpu.memory_space<semaphore_mem>>
    tpu.enqueue_dma source(%31 : memref<1x32xf32, #tpu.memory_space<any>>) target(%32 : memref<1x32xf32, #tpu.memory_space<vmem>>) target_semaphore(%34 : memref<!tpu.dma_semaphore, #tpu.memory_space<semaphore_mem>>)
    %c7 = arith.constant 7 : index
    %35 = memref.load %arg0[%c7] : memref<8xi32, #tpu.memory_space<smem>>
    %c7_i32 = arith.constant 7 : i32
    %c0_i32_21 = arith.constant 0 : i32
    %36 = tpu.memref_slice %arg6[%35, %c0_i32_21] : memref<50x32xf32, #tpu.memory_space<any>> -> memref<1x32xf32, #tpu.memory_space<any>>
    %c7_i32_22 = arith.constant 7 : i32
    %c0_i32_23 = arith.constant 0 : i32
    %37 = tpu.memref_slice %arg9[%c7_i32_22, %c0_i32_23] : memref<32x32xf32, #tpu.memory_space<vmem>> -> memref<1x32xf32, #tpu.memory_space<vmem>>
    %38 = tpu.memref_slice %arg10[%c7_i32] : memref<32x!tpu.dma_semaphore, #tpu.memory_space<semaphore_mem>> -> memref<1x!tpu.dma_semaphore, #tpu.memory_space<semaphore_mem>>
    %39 = tpu.memref_squeeze %38 : memref<1x!tpu.dma_semaphore, #tpu.memory_space<semaphore_mem>> -> memref<!tpu.dma_semaphore, #tpu.memory_space<semaphore_mem>>
    tpu.enqueue_dma source(%36 : memref<1x32xf32, #tpu.memory_space<any>>) target(%37 : memref<1x32xf32, #tpu.memory_space<vmem>>) target_semaphore(%39 : memref<!tpu.dma_semaphore, #tpu.memory_space<semaphore_mem>>)
    %c0_24 = arith.constant 0 : index
    %40 = memref.load %arg1[%c0_24] : memref<8xi32, #tpu.memory_space<smem>>
    %c8_i32 = arith.constant 8 : i32
    %c0_i32_25 = arith.constant 0 : i32
    %41 = tpu.memref_slice %arg6[%40, %c0_i32_25] : memref<50x32xf32, #tpu.memory_space<any>> -> memref<1x32xf32, #tpu.memory_space<any>>
    %c8_i32_26 = arith.constant 8 : i32
    %c0_i32_27 = arith.constant 0 : i32
    %42 = tpu.memref_slice %arg9[%c8_i32_26, %c0_i32_27] : memref<32x32xf32, #tpu.memory_space<vmem>> -> memref<1x32xf32, #tpu.memory_space<vmem>>
    %43 = tpu.memref_slice %arg10[%c8_i32] : memref<32x!tpu.dma_semaphore, #tpu.memory_space<semaphore_mem>> -> memref<1x!tpu.dma_semaphore, #tpu.memory_space<semaphore_mem>>
    %44 = tpu.memref_squeeze %43 : memref<1x!tpu.dma_semaphore, #tpu.memory_space<semaphore_mem>> -> memref<!tpu.dma_semaphore, #tpu.memory_space<semaphore_mem>>
    tpu.enqueue_dma source(%41 : memref<1x32xf32, #tpu.memory_space<any>>) target(%42 : memref<1x32xf32, #tpu.memory_space<vmem>>) target_semaphore(%44 : memref<!tpu.dma_semaphore, #tpu.memory_space<semaphore_mem>>)
    %c1_28 = arith.constant 1 : index
    %45 = memref.load %arg1[%c1_28] : memref<8xi32, #tpu.memory_space<smem>>
    %c9_i32 = arith.constant 9 : i32
    %c0_i32_29 = arith.constant 0 : i32
    %46 = tpu.memref_slice %arg6[%45, %c0_i32_29] : memref<50x32xf32, #tpu.memory_space<any>> -> memref<1x32xf32, #tpu.memory_space<any>>
    %c9_i32_30 = arith.constant 9 : i32
    %c0_i32_31 = arith.constant 0 : i32
    %47 = tpu.memref_slice %arg9[%c9_i32_30, %c0_i32_31] : memref<32x32xf32, #tpu.memory_space<vmem>> -> memref<1x32xf32, #tpu.memory_space<vmem>>
    %48 = tpu.memref_slice %arg10[%c9_i32] : memref<32x!tpu.dma_semaphore, #tpu.memory_space<semaphore_mem>> -> memref<1x!tpu.dma_semaphore, #tpu.memory_space<semaphore_mem>>
    %49 = tpu.memref_squeeze %48 : memref<1x!tpu.dma_semaphore, #tpu.memory_space<semaphore_mem>> -> memref<!tpu.dma_semaphore, #tpu.memory_space<semaphore_mem>>
    tpu.enqueue_dma source(%46 : memref<1x32xf32, #tpu.memory_space<any>>) target(%47 : memref<1x32xf32, #tpu.memory_space<vmem>>) target_semaphore(%49 : memref<!tpu.dma_semaphore, #tpu.memory_space<semaphore_mem>>)
    %c2_32 = arith.constant 2 : index
    %50 = memref.load %arg1[%c2_32] : memref<8xi32, #tpu.memory_space<smem>>
    %c10_i32 = arith.constant 10 : i32
    %c0_i32_33 = arith.constant 0 : i32
    %51 = tpu.memref_slice %arg6[%50, %c0_i32_33] : memref<50x32xf32, #tpu.memory_space<any>> -> memref<1x32xf32, #tpu.memory_space<any>>
    %c10_i32_34 = arith.constant 10 : i32
    %c0_i32_35 = arith.constant 0 : i32
    %52 = tpu.memref_slice %arg9[%c10_i32_34, %c0_i32_35] : memref<32x32xf32, #tpu.memory_space<vmem>> -> memref<1x32xf32, #tpu.memory_space<vmem>>
    %53 = tpu.memref_slice %arg10[%c10_i32] : memref<32x!tpu.dma_semaphore, #tpu.memory_space<semaphore_mem>> -> memref<1x!tpu.dma_semaphore, #tpu.memory_space<semaphore_mem>>
    %54 = tpu.memref_squeeze %53 : memref<1x!tpu.dma_semaphore, #tpu.memory_space<semaphore_mem>> -> memref<!tpu.dma_semaphore, #tpu.memory_space<semaphore_mem>>
    tpu.enqueue_dma source(%51 : memref<1x32xf32, #tpu.memory_space<any>>) target(%52 : memref<1x32xf32, #tpu.memory_space<vmem>>) target_semaphore(%54 : memref<!tpu.dma_semaphore, #tpu.memory_space<semaphore_mem>>)
    %c3_36 = arith.constant 3 : index
    %55 = memref.load %arg1[%c3_36] : memref<8xi32, #tpu.memory_space<smem>>
    %c11_i32 = arith.constant 11 : i32
    %c0_i32_37 = arith.constant 0 : i32
    %56 = tpu.memref_slice %arg6[%55, %c0_i32_37] : memref<50x32xf32, #tpu.memory_space<any>> -> memref<1x32xf32, #tpu.memory_space<any>>
    %c11_i32_38 = arith.constant 11 : i32
    %c0_i32_39 = arith.constant 0 : i32
    %57 = tpu.memref_slice %arg9[%c11_i32_38, %c0_i32_39] : memref<32x32xf32, #tpu.memory_space<vmem>> -> memref<1x32xf32, #tpu.memory_space<vmem>>
    %58 = tpu.memref_slice %arg10[%c11_i32] : memref<32x!tpu.dma_semaphore, #tpu.memory_space<semaphore_mem>> -> memref<1x!tpu.dma_semaphore, #tpu.memory_space<semaphore_mem>>
    %59 = tpu.memref_squeeze %58 : memref<1x!tpu.dma_semaphore, #tpu.memory_space<semaphore_mem>> -> memref<!tpu.dma_semaphore, #tpu.memory_space<semaphore_mem>>
    tpu.enqueue_dma source(%56 : memref<1x32xf32, #tpu.memory_space<any>>) target(%57 : memref<1x32xf32, #tpu.memory_space<vmem>>) target_semaphore(%59 : memref<!tpu.dma_semaphore, #tpu.memory_space<semaphore_mem>>)
    %c4_40 = arith.constant 4 : index
    %60 = memref.load %arg1[%c4_40] : memref<8xi32, #tpu.memory_space<smem>>
    %c12_i32 = arith.constant 12 : i32
    %c0_i32_41 = arith.constant 0 : i32
    %61 = tpu.memref_slice %arg6[%60, %c0_i32_41] : memref<50x32xf32, #tpu.memory_space<any>> -> memref<1x32xf32, #tpu.memory_space<any>>
    %c12_i32_42 = arith.constant 12 : i32
    %c0_i32_43 = arith.constant 0 : i32
    %62 = tpu.memref_slice %arg9[%c12_i32_42, %c0_i32_43] : memref<32x32xf32, #tpu.memory_space<vmem>> -> memref<1x32xf32, #tpu.memory_space<vmem>>
    %63 = tpu.memref_slice %arg10[%c12_i32] : memref<32x!tpu.dma_semaphore, #tpu.memory_space<semaphore_mem>> -> memref<1x!tpu.dma_semaphore, #tpu.memory_space<semaphore_mem>>
    %64 = tpu.memref_squeeze %63 : memref<1x!tpu.dma_semaphore, #tpu.memory_space<semaphore_mem>> -> memref<!tpu.dma_semaphore, #tpu.memory_space<semaphore_mem>>
    tpu.enqueue_dma source(%61 : memref<1x32xf32, #tpu.memory_space<any>>) target(%62 : memref<1x32xf32, #tpu.memory_space<vmem>>) target_semaphore(%64 : memref<!tpu.dma_semaphore, #tpu.memory_space<semaphore_mem>>)
    %c5_44 = arith.constant 5 : index
    %65 = memref.load %arg1[%c5_44] : memref<8xi32, #tpu.memory_space<smem>>
    %c13_i32 = arith.constant 13 : i32
    %c0_i32_45 = arith.constant 0 : i32
    %66 = tpu.memref_slice %arg6[%65, %c0_i32_45] : memref<50x32xf32, #tpu.memory_space<any>> -> memref<1x32xf32, #tpu.memory_space<any>>
    %c13_i32_46 = arith.constant 13 : i32
    %c0_i32_47 = arith.constant 0 : i32
    %67 = tpu.memref_slice %arg9[%c13_i32_46, %c0_i32_47] : memref<32x32xf32, #tpu.memory_space<vmem>> -> memref<1x32xf32, #tpu.memory_space<vmem>>
    %68 = tpu.memref_slice %arg10[%c13_i32] : memref<32x!tpu.dma_semaphore, #tpu.memory_space<semaphore_mem>> -> memref<1x!tpu.dma_semaphore, #tpu.memory_space<semaphore_mem>>
    %69 = tpu.memref_squeeze %68 : memref<1x!tpu.dma_semaphore, #tpu.memory_space<semaphore_mem>> -> memref<!tpu.dma_semaphore, #tpu.memory_space<semaphore_mem>>
    tpu.enqueue_dma source(%66 : memref<1x32xf32, #tpu.memory_space<any>>) target(%67 : memref<1x32xf32, #tpu.memory_space<vmem>>) target_semaphore(%69 : memref<!tpu.dma_semaphore, #tpu.memory_space<semaphore_mem>>)
    %c6_48 = arith.constant 6 : index
    %70 = memref.load %arg1[%c6_48] : memref<8xi32, #tpu.memory_space<smem>>
    %c14_i32 = arith.constant 14 : i32
    %c0_i32_49 = arith.constant 0 : i32
    %71 = tpu.memref_slice %arg6[%70, %c0_i32_49] : memref<50x32xf32, #tpu.memory_space<any>> -> memref<1x32xf32, #tpu.memory_space<any>>
    %c14_i32_50 = arith.constant 14 : i32
    %c0_i32_51 = arith.constant 0 : i32
    %72 = tpu.memref_slice %arg9[%c14_i32_50, %c0_i32_51] : memref<32x32xf32, #tpu.memory_space<vmem>> -> memref<1x32xf32, #tpu.memory_space<vmem>>
    %73 = tpu.memref_slice %arg10[%c14_i32] : memref<32x!tpu.dma_semaphore, #tpu.memory_space<semaphore_mem>> -> memref<1x!tpu.dma_semaphore, #tpu.memory_space<semaphore_mem>>
    %74 = tpu.memref_squeeze %73 : memref<1x!tpu.dma_semaphore, #tpu.memory_space<semaphore_mem>> -> memref<!tpu.dma_semaphore, #tpu.memory_space<semaphore_mem>>
    tpu.enqueue_dma source(%71 : memref<1x32xf32, #tpu.memory_space<any>>) target(%72 : memref<1x32xf32, #tpu.memory_space<vmem>>) target_semaphore(%74 : memref<!tpu.dma_semaphore, #tpu.memory_space<semaphore_mem>>)
    %c7_52 = arith.constant 7 : index
    %75 = memref.load %arg1[%c7_52] : memref<8xi32, #tpu.memory_space<smem>>
    %c15_i32 = arith.constant 15 : i32
    %c0_i32_53 = arith.constant 0 : i32
    %76 = tpu.memref_slice %arg6[%75, %c0_i32_53] : memref<50x32xf32, #tpu.memory_space<any>> -> memref<1x32xf32, #tpu.memory_space<any>>
    %c15_i32_54 = arith.constant 15 : i32
    %c0_i32_55 = arith.constant 0 : i32
    %77 = tpu.memref_slice %arg9[%c15_i32_54, %c0_i32_55] : memref<32x32xf32, #tpu.memory_space<vmem>> -> memref<1x32xf32, #tpu.memory_space<vmem>>
    %78 = tpu.memref_slice %arg10[%c15_i32] : memref<32x!tpu.dma_semaphore, #tpu.memory_space<semaphore_mem>> -> memref<1x!tpu.dma_semaphore, #tpu.memory_space<semaphore_mem>>
    %79 = tpu.memref_squeeze %78 : memref<1x!tpu.dma_semaphore, #tpu.memory_space<semaphore_mem>> -> memref<!tpu.dma_semaphore, #tpu.memory_space<semaphore_mem>>
    tpu.enqueue_dma source(%76 : memref<1x32xf32, #tpu.memory_space<any>>) target(%77 : memref<1x32xf32, #tpu.memory_space<vmem>>) target_semaphore(%79 : memref<!tpu.dma_semaphore, #tpu.memory_space<semaphore_mem>>)
    %c0_56 = arith.constant 0 : index
    %80 = memref.load %arg2[%c0_56] : memref<8xi32, #tpu.memory_space<smem>>
    %c16_i32 = arith.constant 16 : i32
    %c0_i32_57 = arith.constant 0 : i32
    %81 = tpu.memref_slice %arg7[%80, %c0_i32_57] : memref<60x32xf32, #tpu.memory_space<any>> -> memref<1x32xf32, #tpu.memory_space<any>>
    %c16_i32_58 = arith.constant 16 : i32
    %c0_i32_59 = arith.constant 0 : i32
    %82 = tpu.memref_slice %arg9[%c16_i32_58, %c0_i32_59] : memref<32x32xf32, #tpu.memory_space<vmem>> -> memref<1x32xf32, #tpu.memory_space<vmem>>
    %83 = tpu.memref_slice %arg10[%c16_i32] : memref<32x!tpu.dma_semaphore, #tpu.memory_space<semaphore_mem>> -> memref<1x!tpu.dma_semaphore, #tpu.memory_space<semaphore_mem>>
    %84 = tpu.memref_squeeze %83 : memref<1x!tpu.dma_semaphore, #tpu.memory_space<semaphore_mem>> -> memref<!tpu.dma_semaphore, #tpu.memory_space<semaphore_mem>>
    tpu.enqueue_dma source(%81 : memref<1x32xf32, #tpu.memory_space<any>>) target(%82 : memref<1x32xf32, #tpu.memory_space<vmem>>) target_semaphore(%84 : memref<!tpu.dma_semaphore, #tpu.memory_space<semaphore_mem>>)
    %c1_60 = arith.constant 1 : index
    %85 = memref.load %arg2[%c1_60] : memref<8xi32, #tpu.memory_space<smem>>
    %c17_i32 = arith.constant 17 : i32
    %c0_i32_61 = arith.constant 0 : i32
    %86 = tpu.memref_slice %arg7[%85, %c0_i32_61] : memref<60x32xf32, #tpu.memory_space<any>> -> memref<1x32xf32, #tpu.memory_space<any>>
    %c17_i32_62 = arith.constant 17 : i32
    %c0_i32_63 = arith.constant 0 : i32
    %87 = tpu.memref_slice %arg9[%c17_i32_62, %c0_i32_63] : memref<32x32xf32, #tpu.memory_space<vmem>> -> memref<1x32xf32, #tpu.memory_space<vmem>>
    %88 = tpu.memref_slice %arg10[%c17_i32] : memref<32x!tpu.dma_semaphore, #tpu.memory_space<semaphore_mem>> -> memref<1x!tpu.dma_semaphore, #tpu.memory_space<semaphore_mem>>
    %89 = tpu.memref_squeeze %88 : memref<1x!tpu.dma_semaphore, #tpu.memory_space<semaphore_mem>> -> memref<!tpu.dma_semaphore, #tpu.memory_space<semaphore_mem>>
    tpu.enqueue_dma source(%86 : memref<1x32xf32, #tpu.memory_space<any>>) target(%87 : memref<1x32xf32, #tpu.memory_space<vmem>>) target_semaphore(%89 : memref<!tpu.dma_semaphore, #tpu.memory_space<semaphore_mem>>)
    %c2_64 = arith.constant 2 : index
    %90 = memref.load %arg2[%c2_64] : memref<8xi32, #tpu.memory_space<smem>>
    %c18_i32 = arith.constant 18 : i32
    %c0_i32_65 = arith.constant 0 : i32
    %91 = tpu.memref_slice %arg7[%90, %c0_i32_65] : memref<60x32xf32, #tpu.memory_space<any>> -> memref<1x32xf32, #tpu.memory_space<any>>
    %c18_i32_66 = arith.constant 18 : i32
    %c0_i32_67 = arith.constant 0 : i32
    %92 = tpu.memref_slice %arg9[%c18_i32_66, %c0_i32_67] : memref<32x32xf32, #tpu.memory_space<vmem>> -> memref<1x32xf32, #tpu.memory_space<vmem>>
    %93 = tpu.memref_slice %arg10[%c18_i32] : memref<32x!tpu.dma_semaphore, #tpu.memory_space<semaphore_mem>> -> memref<1x!tpu.dma_semaphore, #tpu.memory_space<semaphore_mem>>
    %94 = tpu.memref_squeeze %93 : memref<1x!tpu.dma_semaphore, #tpu.memory_space<semaphore_mem>> -> memref<!tpu.dma_semaphore, #tpu.memory_space<semaphore_mem>>
    tpu.enqueue_dma source(%91 : memref<1x32xf32, #tpu.memory_space<any>>) target(%92 : memref<1x32xf32, #tpu.memory_space<vmem>>) target_semaphore(%94 : memref<!tpu.dma_semaphore, #tpu.memory_space<semaphore_mem>>)
    %c3_68 = arith.constant 3 : index
    %95 = memref.load %arg2[%c3_68] : memref<8xi32, #tpu.memory_space<smem>>
    %c19_i32 = arith.constant 19 : i32
    %c0_i32_69 = arith.constant 0 : i32
    %96 = tpu.memref_slice %arg7[%95, %c0_i32_69] : memref<60x32xf32, #tpu.memory_space<any>> -> memref<1x32xf32, #tpu.memory_space<any>>
    %c19_i32_70 = arith.constant 19 : i32
    %c0_i32_71 = arith.constant 0 : i32
    %97 = tpu.memref_slice %arg9[%c19_i32_70, %c0_i32_71] : memref<32x32xf32, #tpu.memory_space<vmem>> -> memref<1x32xf32, #tpu.memory_space<vmem>>
    %98 = tpu.memref_slice %arg10[%c19_i32] : memref<32x!tpu.dma_semaphore, #tpu.memory_space<semaphore_mem>> -> memref<1x!tpu.dma_semaphore, #tpu.memory_space<semaphore_mem>>
    %99 = tpu.memref_squeeze %98 : memref<1x!tpu.dma_semaphore, #tpu.memory_space<semaphore_mem>> -> memref<!tpu.dma_semaphore, #tpu.memory_space<semaphore_mem>>
    tpu.enqueue_dma source(%96 : memref<1x32xf32, #tpu.memory_space<any>>) target(%97 : memref<1x32xf32, #tpu.memory_space<vmem>>) target_semaphore(%99 : memref<!tpu.dma_semaphore, #tpu.memory_space<semaphore_mem>>)
    %c4_72 = arith.constant 4 : index
    %100 = memref.load %arg2[%c4_72] : memref<8xi32, #tpu.memory_space<smem>>
    %c20_i32 = arith.constant 20 : i32
    %c0_i32_73 = arith.constant 0 : i32
    %101 = tpu.memref_slice %arg7[%100, %c0_i32_73] : memref<60x32xf32, #tpu.memory_space<any>> -> memref<1x32xf32, #tpu.memory_space<any>>
    %c20_i32_74 = arith.constant 20 : i32
    %c0_i32_75 = arith.constant 0 : i32
    %102 = tpu.memref_slice %arg9[%c20_i32_74, %c0_i32_75] : memref<32x32xf32, #tpu.memory_space<vmem>> -> memref<1x32xf32, #tpu.memory_space<vmem>>
    %103 = tpu.memref_slice %arg10[%c20_i32] : memref<32x!tpu.dma_semaphore, #tpu.memory_space<semaphore_mem>> -> memref<1x!tpu.dma_semaphore, #tpu.memory_space<semaphore_mem>>
    %104 = tpu.memref_squeeze %103 : memref<1x!tpu.dma_semaphore, #tpu.memory_space<semaphore_mem>> -> memref<!tpu.dma_semaphore, #tpu.memory_space<semaphore_mem>>
    tpu.enqueue_dma source(%101 : memref<1x32xf32, #tpu.memory_space<any>>) target(%102 : memref<1x32xf32, #tpu.memory_space<vmem>>) target_semaphore(%104 : memref<!tpu.dma_semaphore, #tpu.memory_space<semaphore_mem>>)
    %c5_76 = arith.constant 5 : index
    %105 = memref.load %arg2[%c5_76] : memref<8xi32, #tpu.memory_space<smem>>
    %c21_i32 = arith.constant 21 : i32
    %c0_i32_77 = arith.constant 0 : i32
    %106 = tpu.memref_slice %arg7[%105, %c0_i32_77] : memref<60x32xf32, #tpu.memory_space<any>> -> memref<1x32xf32, #tpu.memory_space<any>>
    %c21_i32_78 = arith.constant 21 : i32
    %c0_i32_79 = arith.constant 0 : i32
    %107 = tpu.memref_slice %arg9[%c21_i32_78, %c0_i32_79] : memref<32x32xf32, #tpu.memory_space<vmem>> -> memref<1x32xf32, #tpu.memory_space<vmem>>
    %108 = tpu.memref_slice %arg10[%c21_i32] : memref<32x!tpu.dma_semaphore, #tpu.memory_space<semaphore_mem>> -> memref<1x!tpu.dma_semaphore, #tpu.memory_space<semaphore_mem>>
    %109 = tpu.memref_squeeze %108 : memref<1x!tpu.dma_semaphore, #tpu.memory_space<semaphore_mem>> -> memref<!tpu.dma_semaphore, #tpu.memory_space<semaphore_mem>>
    tpu.enqueue_dma source(%106 : memref<1x32xf32, #tpu.memory_space<any>>) target(%107 : memref<1x32xf32, #tpu.memory_space<vmem>>) target_semaphore(%109 : memref<!tpu.dma_semaphore, #tpu.memory_space<semaphore_mem>>)
    %c6_80 = arith.constant 6 : index
    %110 = memref.load %arg2[%c6_80] : memref<8xi32, #tpu.memory_space<smem>>
    %c22_i32 = arith.constant 22 : i32
    %c0_i32_81 = arith.constant 0 : i32
    %111 = tpu.memref_slice %arg7[%110, %c0_i32_81] : memref<60x32xf32, #tpu.memory_space<any>> -> memref<1x32xf32, #tpu.memory_space<any>>
    %c22_i32_82 = arith.constant 22 : i32
    %c0_i32_83 = arith.constant 0 : i32
    %112 = tpu.memref_slice %arg9[%c22_i32_82, %c0_i32_83] : memref<32x32xf32, #tpu.memory_space<vmem>> -> memref<1x32xf32, #tpu.memory_space<vmem>>
    %113 = tpu.memref_slice %arg10[%c22_i32] : memref<32x!tpu.dma_semaphore, #tpu.memory_space<semaphore_mem>> -> memref<1x!tpu.dma_semaphore, #tpu.memory_space<semaphore_mem>>
    %114 = tpu.memref_squeeze %113 : memref<1x!tpu.dma_semaphore, #tpu.memory_space<semaphore_mem>> -> memref<!tpu.dma_semaphore, #tpu.memory_space<semaphore_mem>>
    tpu.enqueue_dma source(%111 : memref<1x32xf32, #tpu.memory_space<any>>) target(%112 : memref<1x32xf32, #tpu.memory_space<vmem>>) target_semaphore(%114 : memref<!tpu.dma_semaphore, #tpu.memory_space<semaphore_mem>>)
    %c7_84 = arith.constant 7 : index
    %115 = memref.load %arg2[%c7_84] : memref<8xi32, #tpu.memory_space<smem>>
    %c23_i32 = arith.constant 23 : i32
    %c0_i32_85 = arith.constant 0 : i32
    %116 = tpu.memref_slice %arg7[%115, %c0_i32_85] : memref<60x32xf32, #tpu.memory_space<any>> -> memref<1x32xf32, #tpu.memory_space<any>>
    %c23_i32_86 = arith.constant 23 : i32
    %c0_i32_87 = arith.constant 0 : i32
    %117 = tpu.memref_slice %arg9[%c23_i32_86, %c0_i32_87] : memref<32x32xf32, #tpu.memory_space<vmem>> -> memref<1x32xf32, #tpu.memory_space<vmem>>
    %118 = tpu.memref_slice %arg10[%c23_i32] : memref<32x!tpu.dma_semaphore, #tpu.memory_space<semaphore_mem>> -> memref<1x!tpu.dma_semaphore, #tpu.memory_space<semaphore_mem>>
    %119 = tpu.memref_squeeze %118 : memref<1x!tpu.dma_semaphore, #tpu.memory_space<semaphore_mem>> -> memref<!tpu.dma_semaphore, #tpu.memory_space<semaphore_mem>>
    tpu.enqueue_dma source(%116 : memref<1x32xf32, #tpu.memory_space<any>>) target(%117 : memref<1x32xf32, #tpu.memory_space<vmem>>) target_semaphore(%119 : memref<!tpu.dma_semaphore, #tpu.memory_space<semaphore_mem>>)
    %c0_88 = arith.constant 0 : index
    %120 = memref.load %arg3[%c0_88] : memref<8xi32, #tpu.memory_space<smem>>
    %c24_i32 = arith.constant 24 : i32
    %c0_i32_89 = arith.constant 0 : i32
    %121 = tpu.memref_slice %arg7[%120, %c0_i32_89] : memref<60x32xf32, #tpu.memory_space<any>> -> memref<1x32xf32, #tpu.memory_space<any>>
    %c24_i32_90 = arith.constant 24 : i32
    %c0_i32_91 = arith.constant 0 : i32
    %122 = tpu.memref_slice %arg9[%c24_i32_90, %c0_i32_91] : memref<32x32xf32, #tpu.memory_space<vmem>> -> memref<1x32xf32, #tpu.memory_space<vmem>>
    %123 = tpu.memref_slice %arg10[%c24_i32] : memref<32x!tpu.dma_semaphore, #tpu.memory_space<semaphore_mem>> -> memref<1x!tpu.dma_semaphore, #tpu.memory_space<semaphore_mem>>
    %124 = tpu.memref_squeeze %123 : memref<1x!tpu.dma_semaphore, #tpu.memory_space<semaphore_mem>> -> memref<!tpu.dma_semaphore, #tpu.memory_space<semaphore_mem>>
    tpu.enqueue_dma source(%121 : memref<1x32xf32, #tpu.memory_space<any>>) target(%122 : memref<1x32xf32, #tpu.memory_space<vmem>>) target_semaphore(%124 : memref<!tpu.dma_semaphore, #tpu.memory_space<semaphore_mem>>)
    %c1_92 = arith.constant 1 : index
    %125 = memref.load %arg3[%c1_92] : memref<8xi32, #tpu.memory_space<smem>>
    %c25_i32 = arith.constant 25 : i32
    %c0_i32_93 = arith.constant 0 : i32
    %126 = tpu.memref_slice %arg7[%125, %c0_i32_93] : memref<60x32xf32, #tpu.memory_space<any>> -> memref<1x32xf32, #tpu.memory_space<any>>
    %c25_i32_94 = arith.constant 25 : i32
    %c0_i32_95 = arith.constant 0 : i32
    %127 = tpu.memref_slice %arg9[%c25_i32_94, %c0_i32_95] : memref<32x32xf32, #tpu.memory_space<vmem>> -> memref<1x32xf32, #tpu.memory_space<vmem>>
    %128 = tpu.memref_slice %arg10[%c25_i32] : memref<32x!tpu.dma_semaphore, #tpu.memory_space<semaphore_mem>> -> memref<1x!tpu.dma_semaphore, #tpu.memory_space<semaphore_mem>>
    %129 = tpu.memref_squeeze %128 : memref<1x!tpu.dma_semaphore, #tpu.memory_space<semaphore_mem>> -> memref<!tpu.dma_semaphore, #tpu.memory_space<semaphore_mem>>
    tpu.enqueue_dma source(%126 : memref<1x32xf32, #tpu.memory_space<any>>) target(%127 : memref<1x32xf32, #tpu.memory_space<vmem>>) target_semaphore(%129 : memref<!tpu.dma_semaphore, #tpu.memory_space<semaphore_mem>>)
    %c2_96 = arith.constant 2 : index
    %130 = memref.load %arg3[%c2_96] : memref<8xi32, #tpu.memory_space<smem>>
    %c26_i32 = arith.constant 26 : i32
    %c0_i32_97 = arith.constant 0 : i32
    %131 = tpu.memref_slice %arg7[%130, %c0_i32_97] : memref<60x32xf32, #tpu.memory_space<any>> -> memref<1x32xf32, #tpu.memory_space<any>>
    %c26_i32_98 = arith.constant 26 : i32
    %c0_i32_99 = arith.constant 0 : i32
    %132 = tpu.memref_slice %arg9[%c26_i32_98, %c0_i32_99] : memref<32x32xf32, #tpu.memory_space<vmem>> -> memref<1x32xf32, #tpu.memory_space<vmem>>
    %133 = tpu.memref_slice %arg10[%c26_i32] : memref<32x!tpu.dma_semaphore, #tpu.memory_space<semaphore_mem>> -> memref<1x!tpu.dma_semaphore, #tpu.memory_space<semaphore_mem>>
    %134 = tpu.memref_squeeze %133 : memref<1x!tpu.dma_semaphore, #tpu.memory_space<semaphore_mem>> -> memref<!tpu.dma_semaphore, #tpu.memory_space<semaphore_mem>>
    tpu.enqueue_dma source(%131 : memref<1x32xf32, #tpu.memory_space<any>>) target(%132 : memref<1x32xf32, #tpu.memory_space<vmem>>) target_semaphore(%134 : memref<!tpu.dma_semaphore, #tpu.memory_space<semaphore_mem>>)
    %c3_100 = arith.constant 3 : index
    %135 = memref.load %arg3[%c3_100] : memref<8xi32, #tpu.memory_space<smem>>
    %c27_i32 = arith.constant 27 : i32
    %c0_i32_101 = arith.constant 0 : i32
    %136 = tpu.memref_slice %arg7[%135, %c0_i32_101] : memref<60x32xf32, #tpu.memory_space<any>> -> memref<1x32xf32, #tpu.memory_space<any>>
    %c27_i32_102 = arith.constant 27 : i32
    %c0_i32_103 = arith.constant 0 : i32
    %137 = tpu.memref_slice %arg9[%c27_i32_102, %c0_i32_103] : memref<32x32xf32, #tpu.memory_space<vmem>> -> memref<1x32xf32, #tpu.memory_space<vmem>>
    %138 = tpu.memref_slice %arg10[%c27_i32] : memref<32x!tpu.dma_semaphore, #tpu.memory_space<semaphore_mem>> -> memref<1x!tpu.dma_semaphore, #tpu.memory_space<semaphore_mem>>
    %139 = tpu.memref_squeeze %138 : memref<1x!tpu.dma_semaphore, #tpu.memory_space<semaphore_mem>> -> memref<!tpu.dma_semaphore, #tpu.memory_space<semaphore_mem>>
    tpu.enqueue_dma source(%136 : memref<1x32xf32, #tpu.memory_space<any>>) target(%137 : memref<1x32xf32, #tpu.memory_space<vmem>>) target_semaphore(%139 : memref<!tpu.dma_semaphore, #tpu.memory_space<semaphore_mem>>)
    %c4_104 = arith.constant 4 : index
    %140 = memref.load %arg3[%c4_104] : memref<8xi32, #tpu.memory_space<smem>>
    %c28_i32 = arith.constant 28 : i32
    %c0_i32_105 = arith.constant 0 : i32
    %141 = tpu.memref_slice %arg7[%140, %c0_i32_105] : memref<60x32xf32, #tpu.memory_space<any>> -> memref<1x32xf32, #tpu.memory_space<any>>
    %c28_i32_106 = arith.constant 28 : i32
    %c0_i32_107 = arith.constant 0 : i32
    %142 = tpu.memref_slice %arg9[%c28_i32_106, %c0_i32_107] : memref<32x32xf32, #tpu.memory_space<vmem>> -> memref<1x32xf32, #tpu.memory_space<vmem>>
    %143 = tpu.memref_slice %arg10[%c28_i32] : memref<32x!tpu.dma_semaphore, #tpu.memory_space<semaphore_mem>> -> memref<1x!tpu.dma_semaphore, #tpu.memory_space<semaphore_mem>>
    %144 = tpu.memref_squeeze %143 : memref<1x!tpu.dma_semaphore, #tpu.memory_space<semaphore_mem>> -> memref<!tpu.dma_semaphore, #tpu.memory_space<semaphore_mem>>
    tpu.enqueue_dma source(%141 : memref<1x32xf32, #tpu.memory_space<any>>) target(%142 : memref<1x32xf32, #tpu.memory_space<vmem>>) target_semaphore(%144 : memref<!tpu.dma_semaphore, #tpu.memory_space<semaphore_mem>>)
    %c5_108 = arith.constant 5 : index
    %145 = memref.load %arg3[%c5_108] : memref<8xi32, #tpu.memory_space<smem>>
    %c29_i32 = arith.constant 29 : i32
    %c0_i32_109 = arith.constant 0 : i32
    %146 = tpu.memref_slice %arg7[%145, %c0_i32_109] : memref<60x32xf32, #tpu.memory_space<any>> -> memref<1x32xf32, #tpu.memory_space<any>>
    %c29_i32_110 = arith.constant 29 : i32
    %c0_i32_111 = arith.constant 0 : i32
    %147 = tpu.memref_slice %arg9[%c29_i32_110, %c0_i32_111] : memref<32x32xf32, #tpu.memory_space<vmem>> -> memref<1x32xf32, #tpu.memory_space<vmem>>
    %148 = tpu.memref_slice %arg10[%c29_i32] : memref<32x!tpu.dma_semaphore, #tpu.memory_space<semaphore_mem>> -> memref<1x!tpu.dma_semaphore, #tpu.memory_space<semaphore_mem>>
    %149 = tpu.memref_squeeze %148 : memref<1x!tpu.dma_semaphore, #tpu.memory_space<semaphore_mem>> -> memref<!tpu.dma_semaphore, #tpu.memory_space<semaphore_mem>>
    tpu.enqueue_dma source(%146 : memref<1x32xf32, #tpu.memory_space<any>>) target(%147 : memref<1x32xf32, #tpu.memory_space<vmem>>) target_semaphore(%149 : memref<!tpu.dma_semaphore, #tpu.memory_space<semaphore_mem>>)
    %c6_112 = arith.constant 6 : index
    %150 = memref.load %arg3[%c6_112] : memref<8xi32, #tpu.memory_space<smem>>
    %c30_i32 = arith.constant 30 : i32
    %c0_i32_113 = arith.constant 0 : i32
    %151 = tpu.memref_slice %arg7[%150, %c0_i32_113] : memref<60x32xf32, #tpu.memory_space<any>> -> memref<1x32xf32, #tpu.memory_space<any>>
    %c30_i32_114 = arith.constant 30 : i32
    %c0_i32_115 = arith.constant 0 : i32
    %152 = tpu.memref_slice %arg9[%c30_i32_114, %c0_i32_115] : memref<32x32xf32, #tpu.memory_space<vmem>> -> memref<1x32xf32, #tpu.memory_space<vmem>>
    %153 = tpu.memref_slice %arg10[%c30_i32] : memref<32x!tpu.dma_semaphore, #tpu.memory_space<semaphore_mem>> -> memref<1x!tpu.dma_semaphore, #tpu.memory_space<semaphore_mem>>
    %154 = tpu.memref_squeeze %153 : memref<1x!tpu.dma_semaphore, #tpu.memory_space<semaphore_mem>> -> memref<!tpu.dma_semaphore, #tpu.memory_space<semaphore_mem>>
    tpu.enqueue_dma source(%151 : memref<1x32xf32, #tpu.memory_space<any>>) target(%152 : memref<1x32xf32, #tpu.memory_space<vmem>>) target_semaphore(%154 : memref<!tpu.dma_semaphore, #tpu.memory_space<semaphore_mem>>)
    %c7_116 = arith.constant 7 : index
    %155 = memref.load %arg3[%c7_116] : memref<8xi32, #tpu.memory_space<smem>>
    %c31_i32 = arith.constant 31 : i32
    %c0_i32_117 = arith.constant 0 : i32
    %156 = tpu.memref_slice %arg7[%155, %c0_i32_117] : memref<60x32xf32, #tpu.memory_space<any>> -> memref<1x32xf32, #tpu.memory_space<any>>
    %c31_i32_118 = arith.constant 31 : i32
    %c0_i32_119 = arith.constant 0 : i32
    %157 = tpu.memref_slice %arg9[%c31_i32_118, %c0_i32_119] : memref<32x32xf32, #tpu.memory_space<vmem>> -> memref<1x32xf32, #tpu.memory_space<vmem>>
    %158 = tpu.memref_slice %arg10[%c31_i32] : memref<32x!tpu.dma_semaphore, #tpu.memory_space<semaphore_mem>> -> memref<1x!tpu.dma_semaphore, #tpu.memory_space<semaphore_mem>>
    %159 = tpu.memref_squeeze %158 : memref<1x!tpu.dma_semaphore, #tpu.memory_space<semaphore_mem>> -> memref<!tpu.dma_semaphore, #tpu.memory_space<semaphore_mem>>
    tpu.enqueue_dma source(%156 : memref<1x32xf32, #tpu.memory_space<any>>) target(%157 : memref<1x32xf32, #tpu.memory_space<vmem>>) target_semaphore(%159 : memref<!tpu.dma_semaphore, #tpu.memory_space<semaphore_mem>>)
    %c0_120 = arith.constant 0 : index
    %160 = memref.load %arg4[%c0_120] : memref<5xf32, #tpu.memory_space<smem>>
    %c1_121 = arith.constant 1 : index
    %161 = memref.load %arg4[%c1_121] : memref<5xf32, #tpu.memory_space<smem>>
    %c2_122 = arith.constant 2 : index
    %162 = memref.load %arg4[%c2_122] : memref<5xf32, #tpu.memory_space<smem>>
    %c3_123 = arith.constant 3 : index
    %163 = memref.load %arg4[%c3_123] : memref<5xf32, #tpu.memory_space<smem>>
    %c4_124 = arith.constant 4 : index
    %164 = memref.load %arg4[%c4_124] : memref<5xf32, #tpu.memory_space<smem>>
    %c0_i32_125 = arith.constant 0 : i32
    %c0_i32_126 = arith.constant 0 : i32
    %165 = tpu.memref_slice %arg6[%0, %c0_i32_126] : memref<50x32xf32, #tpu.memory_space<any>> -> memref<1x32xf32, #tpu.memory_space<any>>
    %c0_i32_127 = arith.constant 0 : i32
    %c0_i32_128 = arith.constant 0 : i32
    %166 = tpu.memref_slice %arg9[%c0_i32_127, %c0_i32_128] : memref<32x32xf32, #tpu.memory_space<vmem>> -> memref<1x32xf32, #tpu.memory_space<vmem>>
    %167 = tpu.memref_slice %arg10[%c0_i32_125] : memref<32x!tpu.dma_semaphore, #tpu.memory_space<semaphore_mem>> -> memref<1x!tpu.dma_semaphore, #tpu.memory_space<semaphore_mem>>
    %168 = tpu.memref_squeeze %167 : memref<1x!tpu.dma_semaphore, #tpu.memory_space<semaphore_mem>> -> memref<!tpu.dma_semaphore, #tpu.memory_space<semaphore_mem>>
    tpu.wait_dma2 semaphore(%168 : memref<!tpu.dma_semaphore, #tpu.memory_space<semaphore_mem>>) src(%165 : memref<1x32xf32, #tpu.memory_space<any>>) dst(%166 : memref<1x32xf32, #tpu.memory_space<vmem>>)
    %c1_i32_129 = arith.constant 1 : i32
    %c0_i32_130 = arith.constant 0 : i32
    %169 = tpu.memref_slice %arg6[%5, %c0_i32_130] : memref<50x32xf32, #tpu.memory_space<any>> -> memref<1x32xf32, #tpu.memory_space<any>>
    %c1_i32_131 = arith.constant 1 : i32
    %c0_i32_132 = arith.constant 0 : i32
    %170 = tpu.memref_slice %arg9[%c1_i32_131, %c0_i32_132] : memref<32x32xf32, #tpu.memory_space<vmem>> -> memref<1x32xf32, #tpu.memory_space<vmem>>
    %171 = tpu.memref_slice %arg10[%c1_i32_129] : memref<32x!tpu.dma_semaphore, #tpu.memory_space<semaphore_mem>> -> memref<1x!tpu.dma_semaphore, #tpu.memory_space<semaphore_mem>>
    %172 = tpu.memref_squeeze %171 : memref<1x!tpu.dma_semaphore, #tpu.memory_space<semaphore_mem>> -> memref<!tpu.dma_semaphore, #tpu.memory_space<semaphore_mem>>
    tpu.wait_dma2 semaphore(%172 : memref<!tpu.dma_semaphore, #tpu.memory_space<semaphore_mem>>) src(%169 : memref<1x32xf32, #tpu.memory_space<any>>) dst(%170 : memref<1x32xf32, #tpu.memory_space<vmem>>)
    %c2_i32_133 = arith.constant 2 : i32
    %c0_i32_134 = arith.constant 0 : i32
    %173 = tpu.memref_slice %arg6[%10, %c0_i32_134] : memref<50x32xf32, #tpu.memory_space<any>> -> memref<1x32xf32, #tpu.memory_space<any>>
    %c2_i32_135 = arith.constant 2 : i32
    %c0_i32_136 = arith.constant 0 : i32
    %174 = tpu.memref_slice %arg9[%c2_i32_135, %c0_i32_136] : memref<32x32xf32, #tpu.memory_space<vmem>> -> memref<1x32xf32, #tpu.memory_space<vmem>>
    %175 = tpu.memref_slice %arg10[%c2_i32_133] : memref<32x!tpu.dma_semaphore, #tpu.memory_space<semaphore_mem>> -> memref<1x!tpu.dma_semaphore, #tpu.memory_space<semaphore_mem>>
    %176 = tpu.memref_squeeze %175 : memref<1x!tpu.dma_semaphore, #tpu.memory_space<semaphore_mem>> -> memref<!tpu.dma_semaphore, #tpu.memory_space<semaphore_mem>>
    tpu.wait_dma2 semaphore(%176 : memref<!tpu.dma_semaphore, #tpu.memory_space<semaphore_mem>>) src(%173 : memref<1x32xf32, #tpu.memory_space<any>>) dst(%174 : memref<1x32xf32, #tpu.memory_space<vmem>>)
    %c3_i32_137 = arith.constant 3 : i32
    %c0_i32_138 = arith.constant 0 : i32
    %177 = tpu.memref_slice %arg6[%15, %c0_i32_138] : memref<50x32xf32, #tpu.memory_space<any>> -> memref<1x32xf32, #tpu.memory_space<any>>
    %c3_i32_139 = arith.constant 3 : i32
    %c0_i32_140 = arith.constant 0 : i32
    %178 = tpu.memref_slice %arg9[%c3_i32_139, %c0_i32_140] : memref<32x32xf32, #tpu.memory_space<vmem>> -> memref<1x32xf32, #tpu.memory_space<vmem>>
    %179 = tpu.memref_slice %arg10[%c3_i32_137] : memref<32x!tpu.dma_semaphore, #tpu.memory_space<semaphore_mem>> -> memref<1x!tpu.dma_semaphore, #tpu.memory_space<semaphore_mem>>
    %180 = tpu.memref_squeeze %179 : memref<1x!tpu.dma_semaphore, #tpu.memory_space<semaphore_mem>> -> memref<!tpu.dma_semaphore, #tpu.memory_space<semaphore_mem>>
    tpu.wait_dma2 semaphore(%180 : memref<!tpu.dma_semaphore, #tpu.memory_space<semaphore_mem>>) src(%177 : memref<1x32xf32, #tpu.memory_space<any>>) dst(%178 : memref<1x32xf32, #tpu.memory_space<vmem>>)
    %c4_i32_141 = arith.constant 4 : i32
    %c0_i32_142 = arith.constant 0 : i32
    %181 = tpu.memref_slice %arg6[%20, %c0_i32_142] : memref<50x32xf32, #tpu.memory_space<any>> -> memref<1x32xf32, #tpu.memory_space<any>>
    %c4_i32_143 = arith.constant 4 : i32
    %c0_i32_144 = arith.constant 0 : i32
    %182 = tpu.memref_slice %arg9[%c4_i32_143, %c0_i32_144] : memref<32x32xf32, #tpu.memory_space<vmem>> -> memref<1x32xf32, #tpu.memory_space<vmem>>
    %183 = tpu.memref_slice %arg10[%c4_i32_141] : memref<32x!tpu.dma_semaphore, #tpu.memory_space<semaphore_mem>> -> memref<1x!tpu.dma_semaphore, #tpu.memory_space<semaphore_mem>>
    %184 = tpu.memref_squeeze %183 : memref<1x!tpu.dma_semaphore, #tpu.memory_space<semaphore_mem>> -> memref<!tpu.dma_semaphore, #tpu.memory_space<semaphore_mem>>
    tpu.wait_dma2 semaphore(%184 : memref<!tpu.dma_semaphore, #tpu.memory_space<semaphore_mem>>) src(%181 : memref<1x32xf32, #tpu.memory_space<any>>) dst(%182 : memref<1x32xf32, #tpu.memory_space<vmem>>)
    %c5_i32_145 = arith.constant 5 : i32
    %c0_i32_146 = arith.constant 0 : i32
    %185 = tpu.memref_slice %arg6[%25, %c0_i32_146] : memref<50x32xf32, #tpu.memory_space<any>> -> memref<1x32xf32, #tpu.memory_space<any>>
    %c5_i32_147 = arith.constant 5 : i32
    %c0_i32_148 = arith.constant 0 : i32
    %186 = tpu.memref_slice %arg9[%c5_i32_147, %c0_i32_148] : memref<32x32xf32, #tpu.memory_space<vmem>> -> memref<1x32xf32, #tpu.memory_space<vmem>>
    %187 = tpu.memref_slice %arg10[%c5_i32_145] : memref<32x!tpu.dma_semaphore, #tpu.memory_space<semaphore_mem>> -> memref<1x!tpu.dma_semaphore, #tpu.memory_space<semaphore_mem>>
    %188 = tpu.memref_squeeze %187 : memref<1x!tpu.dma_semaphore, #tpu.memory_space<semaphore_mem>> -> memref<!tpu.dma_semaphore, #tpu.memory_space<semaphore_mem>>
    tpu.wait_dma2 semaphore(%188 : memref<!tpu.dma_semaphore, #tpu.memory_space<semaphore_mem>>) src(%185 : memref<1x32xf32, #tpu.memory_space<any>>) dst(%186 : memref<1x32xf32, #tpu.memory_space<vmem>>)
    %c6_i32_149 = arith.constant 6 : i32
    %c0_i32_150 = arith.constant 0 : i32
    %189 = tpu.memref_slice %arg6[%30, %c0_i32_150] : memref<50x32xf32, #tpu.memory_space<any>> -> memref<1x32xf32, #tpu.memory_space<any>>
    %c6_i32_151 = arith.constant 6 : i32
    %c0_i32_152 = arith.constant 0 : i32
    %190 = tpu.memref_slice %arg9[%c6_i32_151, %c0_i32_152] : memref<32x32xf32, #tpu.memory_space<vmem>> -> memref<1x32xf32, #tpu.memory_space<vmem>>
    %191 = tpu.memref_slice %arg10[%c6_i32_149] : memref<32x!tpu.dma_semaphore, #tpu.memory_space<semaphore_mem>> -> memref<1x!tpu.dma_semaphore, #tpu.memory_space<semaphore_mem>>
    %192 = tpu.memref_squeeze %191 : memref<1x!tpu.dma_semaphore, #tpu.memory_space<semaphore_mem>> -> memref<!tpu.dma_semaphore, #tpu.memory_space<semaphore_mem>>
    tpu.wait_dma2 semaphore(%192 : memref<!tpu.dma_semaphore, #tpu.memory_space<semaphore_mem>>) src(%189 : memref<1x32xf32, #tpu.memory_space<any>>) dst(%190 : memref<1x32xf32, #tpu.memory_space<vmem>>)
    %c7_i32_153 = arith.constant 7 : i32
    %c0_i32_154 = arith.constant 0 : i32
    %193 = tpu.memref_slice %arg6[%35, %c0_i32_154] : memref<50x32xf32, #tpu.memory_space<any>> -> memref<1x32xf32, #tpu.memory_space<any>>
    %c7_i32_155 = arith.constant 7 : i32
    %c0_i32_156 = arith.constant 0 : i32
    %194 = tpu.memref_slice %arg9[%c7_i32_155, %c0_i32_156] : memref<32x32xf32, #tpu.memory_space<vmem>> -> memref<1x32xf32, #tpu.memory_space<vmem>>
    %195 = tpu.memref_slice %arg10[%c7_i32_153] : memref<32x!tpu.dma_semaphore, #tpu.memory_space<semaphore_mem>> -> memref<1x!tpu.dma_semaphore, #tpu.memory_space<semaphore_mem>>
    %196 = tpu.memref_squeeze %195 : memref<1x!tpu.dma_semaphore, #tpu.memory_space<semaphore_mem>> -> memref<!tpu.dma_semaphore, #tpu.memory_space<semaphore_mem>>
    tpu.wait_dma2 semaphore(%196 : memref<!tpu.dma_semaphore, #tpu.memory_space<semaphore_mem>>) src(%193 : memref<1x32xf32, #tpu.memory_space<any>>) dst(%194 : memref<1x32xf32, #tpu.memory_space<vmem>>)
    %c8_i32_157 = arith.constant 8 : i32
    %c0_i32_158 = arith.constant 0 : i32
    %197 = tpu.memref_slice %arg6[%40, %c0_i32_158] : memref<50x32xf32, #tpu.memory_space<any>> -> memref<1x32xf32, #tpu.memory_space<any>>
    %c8_i32_159 = arith.constant 8 : i32
    %c0_i32_160 = arith.constant 0 : i32
    %198 = tpu.memref_slice %arg9[%c8_i32_159, %c0_i32_160] : memref<32x32xf32, #tpu.memory_space<vmem>> -> memref<1x32xf32, #tpu.memory_space<vmem>>
    %199 = tpu.memref_slice %arg10[%c8_i32_157] : memref<32x!tpu.dma_semaphore, #tpu.memory_space<semaphore_mem>> -> memref<1x!tpu.dma_semaphore, #tpu.memory_space<semaphore_mem>>
    %200 = tpu.memref_squeeze %199 : memref<1x!tpu.dma_semaphore, #tpu.memory_space<semaphore_mem>> -> memref<!tpu.dma_semaphore, #tpu.memory_space<semaphore_mem>>
    tpu.wait_dma2 semaphore(%200 : memref<!tpu.dma_semaphore, #tpu.memory_space<semaphore_mem>>) src(%197 : memref<1x32xf32, #tpu.memory_space<any>>) dst(%198 : memref<1x32xf32, #tpu.memory_space<vmem>>)
    %c9_i32_161 = arith.constant 9 : i32
    %c0_i32_162 = arith.constant 0 : i32
    %201 = tpu.memref_slice %arg6[%45, %c0_i32_162] : memref<50x32xf32, #tpu.memory_space<any>> -> memref<1x32xf32, #tpu.memory_space<any>>
    %c9_i32_163 = arith.constant 9 : i32
    %c0_i32_164 = arith.constant 0 : i32
    %202 = tpu.memref_slice %arg9[%c9_i32_163, %c0_i32_164] : memref<32x32xf32, #tpu.memory_space<vmem>> -> memref<1x32xf32, #tpu.memory_space<vmem>>
    %203 = tpu.memref_slice %arg10[%c9_i32_161] : memref<32x!tpu.dma_semaphore, #tpu.memory_space<semaphore_mem>> -> memref<1x!tpu.dma_semaphore, #tpu.memory_space<semaphore_mem>>
    %204 = tpu.memref_squeeze %203 : memref<1x!tpu.dma_semaphore, #tpu.memory_space<semaphore_mem>> -> memref<!tpu.dma_semaphore, #tpu.memory_space<semaphore_mem>>
    tpu.wait_dma2 semaphore(%204 : memref<!tpu.dma_semaphore, #tpu.memory_space<semaphore_mem>>) src(%201 : memref<1x32xf32, #tpu.memory_space<any>>) dst(%202 : memref<1x32xf32, #tpu.memory_space<vmem>>)
    %c10_i32_165 = arith.constant 10 : i32
    %c0_i32_166 = arith.constant 0 : i32
    %205 = tpu.memref_slice %arg6[%50, %c0_i32_166] : memref<50x32xf32, #tpu.memory_space<any>> -> memref<1x32xf32, #tpu.memory_space<any>>
    %c10_i32_167 = arith.constant 10 : i32
    %c0_i32_168 = arith.constant 0 : i32
    %206 = tpu.memref_slice %arg9[%c10_i32_167, %c0_i32_168] : memref<32x32xf32, #tpu.memory_space<vmem>> -> memref<1x32xf32, #tpu.memory_space<vmem>>
    %207 = tpu.memref_slice %arg10[%c10_i32_165] : memref<32x!tpu.dma_semaphore, #tpu.memory_space<semaphore_mem>> -> memref<1x!tpu.dma_semaphore, #tpu.memory_space<semaphore_mem>>
    %208 = tpu.memref_squeeze %207 : memref<1x!tpu.dma_semaphore, #tpu.memory_space<semaphore_mem>> -> memref<!tpu.dma_semaphore, #tpu.memory_space<semaphore_mem>>
    tpu.wait_dma2 semaphore(%208 : memref<!tpu.dma_semaphore, #tpu.memory_space<semaphore_mem>>) src(%205 : memref<1x32xf32, #tpu.memory_space<any>>) dst(%206 : memref<1x32xf32, #tpu.memory_space<vmem>>)
    %c11_i32_169 = arith.constant 11 : i32
    %c0_i32_170 = arith.constant 0 : i32
    %209 = tpu.memref_slice %arg6[%55, %c0_i32_170] : memref<50x32xf32, #tpu.memory_space<any>> -> memref<1x32xf32, #tpu.memory_space<any>>
    %c11_i32_171 = arith.constant 11 : i32
    %c0_i32_172 = arith.constant 0 : i32
    %210 = tpu.memref_slice %arg9[%c11_i32_171, %c0_i32_172] : memref<32x32xf32, #tpu.memory_space<vmem>> -> memref<1x32xf32, #tpu.memory_space<vmem>>
    %211 = tpu.memref_slice %arg10[%c11_i32_169] : memref<32x!tpu.dma_semaphore, #tpu.memory_space<semaphore_mem>> -> memref<1x!tpu.dma_semaphore, #tpu.memory_space<semaphore_mem>>
    %212 = tpu.memref_squeeze %211 : memref<1x!tpu.dma_semaphore, #tpu.memory_space<semaphore_mem>> -> memref<!tpu.dma_semaphore, #tpu.memory_space<semaphore_mem>>
    tpu.wait_dma2 semaphore(%212 : memref<!tpu.dma_semaphore, #tpu.memory_space<semaphore_mem>>) src(%209 : memref<1x32xf32, #tpu.memory_space<any>>) dst(%210 : memref<1x32xf32, #tpu.memory_space<vmem>>)
    %c12_i32_173 = arith.constant 12 : i32
    %c0_i32_174 = arith.constant 0 : i32
    %213 = tpu.memref_slice %arg6[%60, %c0_i32_174] : memref<50x32xf32, #tpu.memory_space<any>> -> memref<1x32xf32, #tpu.memory_space<any>>
    %c12_i32_175 = arith.constant 12 : i32
    %c0_i32_176 = arith.constant 0 : i32
    %214 = tpu.memref_slice %arg9[%c12_i32_175, %c0_i32_176] : memref<32x32xf32, #tpu.memory_space<vmem>> -> memref<1x32xf32, #tpu.memory_space<vmem>>
    %215 = tpu.memref_slice %arg10[%c12_i32_173] : memref<32x!tpu.dma_semaphore, #tpu.memory_space<semaphore_mem>> -> memref<1x!tpu.dma_semaphore, #tpu.memory_space<semaphore_mem>>
    %216 = tpu.memref_squeeze %215 : memref<1x!tpu.dma_semaphore, #tpu.memory_space<semaphore_mem>> -> memref<!tpu.dma_semaphore, #tpu.memory_space<semaphore_mem>>
    tpu.wait_dma2 semaphore(%216 : memref<!tpu.dma_semaphore, #tpu.memory_space<semaphore_mem>>) src(%213 : memref<1x32xf32, #tpu.memory_space<any>>) dst(%214 : memref<1x32xf32, #tpu.memory_space<vmem>>)
    %c13_i32_177 = arith.constant 13 : i32
    %c0_i32_178 = arith.constant 0 : i32
    %217 = tpu.memref_slice %arg6[%65, %c0_i32_178] : memref<50x32xf32, #tpu.memory_space<any>> -> memref<1x32xf32, #tpu.memory_space<any>>
    %c13_i32_179 = arith.constant 13 : i32
    %c0_i32_180 = arith.constant 0 : i32
    %218 = tpu.memref_slice %arg9[%c13_i32_179, %c0_i32_180] : memref<32x32xf32, #tpu.memory_space<vmem>> -> memref<1x32xf32, #tpu.memory_space<vmem>>
    %219 = tpu.memref_slice %arg10[%c13_i32_177] : memref<32x!tpu.dma_semaphore, #tpu.memory_space<semaphore_mem>> -> memref<1x!tpu.dma_semaphore, #tpu.memory_space<semaphore_mem>>
    %220 = tpu.memref_squeeze %219 : memref<1x!tpu.dma_semaphore, #tpu.memory_space<semaphore_mem>> -> memref<!tpu.dma_semaphore, #tpu.memory_space<semaphore_mem>>
    tpu.wait_dma2 semaphore(%220 : memref<!tpu.dma_semaphore, #tpu.memory_space<semaphore_mem>>) src(%217 : memref<1x32xf32, #tpu.memory_space<any>>) dst(%218 : memref<1x32xf32, #tpu.memory_space<vmem>>)
    %c14_i32_181 = arith.constant 14 : i32
    %c0_i32_182 = arith.constant 0 : i32
    %221 = tpu.memref_slice %arg6[%70, %c0_i32_182] : memref<50x32xf32, #tpu.memory_space<any>> -> memref<1x32xf32, #tpu.memory_space<any>>
    %c14_i32_183 = arith.constant 14 : i32
    %c0_i32_184 = arith.constant 0 : i32
    %222 = tpu.memref_slice %arg9[%c14_i32_183, %c0_i32_184] : memref<32x32xf32, #tpu.memory_space<vmem>> -> memref<1x32xf32, #tpu.memory_space<vmem>>
    %223 = tpu.memref_slice %arg10[%c14_i32_181] : memref<32x!tpu.dma_semaphore, #tpu.memory_space<semaphore_mem>> -> memref<1x!tpu.dma_semaphore, #tpu.memory_space<semaphore_mem>>
    %224 = tpu.memref_squeeze %223 : memref<1x!tpu.dma_semaphore, #tpu.memory_space<semaphore_mem>> -> memref<!tpu.dma_semaphore, #tpu.memory_space<semaphore_mem>>
    tpu.wait_dma2 semaphore(%224 : memref<!tpu.dma_semaphore, #tpu.memory_space<semaphore_mem>>) src(%221 : memref<1x32xf32, #tpu.memory_space<any>>) dst(%222 : memref<1x32xf32, #tpu.memory_space<vmem>>)
    %c15_i32_185 = arith.constant 15 : i32
    %c0_i32_186 = arith.constant 0 : i32
    %225 = tpu.memref_slice %arg6[%75, %c0_i32_186] : memref<50x32xf32, #tpu.memory_space<any>> -> memref<1x32xf32, #tpu.memory_space<any>>
    %c15_i32_187 = arith.constant 15 : i32
    %c0_i32_188 = arith.constant 0 : i32
    %226 = tpu.memref_slice %arg9[%c15_i32_187, %c0_i32_188] : memref<32x32xf32, #tpu.memory_space<vmem>> -> memref<1x32xf32, #tpu.memory_space<vmem>>
    %227 = tpu.memref_slice %arg10[%c15_i32_185] : memref<32x!tpu.dma_semaphore, #tpu.memory_space<semaphore_mem>> -> memref<1x!tpu.dma_semaphore, #tpu.memory_space<semaphore_mem>>
    %228 = tpu.memref_squeeze %227 : memref<1x!tpu.dma_semaphore, #tpu.memory_space<semaphore_mem>> -> memref<!tpu.dma_semaphore, #tpu.memory_space<semaphore_mem>>
    tpu.wait_dma2 semaphore(%228 : memref<!tpu.dma_semaphore, #tpu.memory_space<semaphore_mem>>) src(%225 : memref<1x32xf32, #tpu.memory_space<any>>) dst(%226 : memref<1x32xf32, #tpu.memory_space<vmem>>)
    %c16_i32_189 = arith.constant 16 : i32
    %c0_i32_190 = arith.constant 0 : i32
    %229 = tpu.memref_slice %arg7[%80, %c0_i32_190] : memref<60x32xf32, #tpu.memory_space<any>> -> memref<1x32xf32, #tpu.memory_space<any>>
    %c16_i32_191 = arith.constant 16 : i32
    %c0_i32_192 = arith.constant 0 : i32
    %230 = tpu.memref_slice %arg9[%c16_i32_191, %c0_i32_192] : memref<32x32xf32, #tpu.memory_space<vmem>> -> memref<1x32xf32, #tpu.memory_space<vmem>>
    %231 = tpu.memref_slice %arg10[%c16_i32_189] : memref<32x!tpu.dma_semaphore, #tpu.memory_space<semaphore_mem>> -> memref<1x!tpu.dma_semaphore, #tpu.memory_space<semaphore_mem>>
    %232 = tpu.memref_squeeze %231 : memref<1x!tpu.dma_semaphore, #tpu.memory_space<semaphore_mem>> -> memref<!tpu.dma_semaphore, #tpu.memory_space<semaphore_mem>>
    tpu.wait_dma2 semaphore(%232 : memref<!tpu.dma_semaphore, #tpu.memory_space<semaphore_mem>>) src(%229 : memref<1x32xf32, #tpu.memory_space<any>>) dst(%230 : memref<1x32xf32, #tpu.memory_space<vmem>>)
    %c17_i32_193 = arith.constant 17 : i32
    %c0_i32_194 = arith.constant 0 : i32
    %233 = tpu.memref_slice %arg7[%85, %c0_i32_194] : memref<60x32xf32, #tpu.memory_space<any>> -> memref<1x32xf32, #tpu.memory_space<any>>
    %c17_i32_195 = arith.constant 17 : i32
    %c0_i32_196 = arith.constant 0 : i32
    %234 = tpu.memref_slice %arg9[%c17_i32_195, %c0_i32_196] : memref<32x32xf32, #tpu.memory_space<vmem>> -> memref<1x32xf32, #tpu.memory_space<vmem>>
    %235 = tpu.memref_slice %arg10[%c17_i32_193] : memref<32x!tpu.dma_semaphore, #tpu.memory_space<semaphore_mem>> -> memref<1x!tpu.dma_semaphore, #tpu.memory_space<semaphore_mem>>
    %236 = tpu.memref_squeeze %235 : memref<1x!tpu.dma_semaphore, #tpu.memory_space<semaphore_mem>> -> memref<!tpu.dma_semaphore, #tpu.memory_space<semaphore_mem>>
    tpu.wait_dma2 semaphore(%236 : memref<!tpu.dma_semaphore, #tpu.memory_space<semaphore_mem>>) src(%233 : memref<1x32xf32, #tpu.memory_space<any>>) dst(%234 : memref<1x32xf32, #tpu.memory_space<vmem>>)
    %c18_i32_197 = arith.constant 18 : i32
    %c0_i32_198 = arith.constant 0 : i32
    %237 = tpu.memref_slice %arg7[%90, %c0_i32_198] : memref<60x32xf32, #tpu.memory_space<any>> -> memref<1x32xf32, #tpu.memory_space<any>>
    %c18_i32_199 = arith.constant 18 : i32
    %c0_i32_200 = arith.constant 0 : i32
    %238 = tpu.memref_slice %arg9[%c18_i32_199, %c0_i32_200] : memref<32x32xf32, #tpu.memory_space<vmem>> -> memref<1x32xf32, #tpu.memory_space<vmem>>
    %239 = tpu.memref_slice %arg10[%c18_i32_197] : memref<32x!tpu.dma_semaphore, #tpu.memory_space<semaphore_mem>> -> memref<1x!tpu.dma_semaphore, #tpu.memory_space<semaphore_mem>>
    %240 = tpu.memref_squeeze %239 : memref<1x!tpu.dma_semaphore, #tpu.memory_space<semaphore_mem>> -> memref<!tpu.dma_semaphore, #tpu.memory_space<semaphore_mem>>
    tpu.wait_dma2 semaphore(%240 : memref<!tpu.dma_semaphore, #tpu.memory_space<semaphore_mem>>) src(%237 : memref<1x32xf32, #tpu.memory_space<any>>) dst(%238 : memref<1x32xf32, #tpu.memory_space<vmem>>)
    %c19_i32_201 = arith.constant 19 : i32
    %c0_i32_202 = arith.constant 0 : i32
    %241 = tpu.memref_slice %arg7[%95, %c0_i32_202] : memref<60x32xf32, #tpu.memory_space<any>> -> memref<1x32xf32, #tpu.memory_space<any>>
    %c19_i32_203 = arith.constant 19 : i32
    %c0_i32_204 = arith.constant 0 : i32
    %242 = tpu.memref_slice %arg9[%c19_i32_203, %c0_i32_204] : memref<32x32xf32, #tpu.memory_space<vmem>> -> memref<1x32xf32, #tpu.memory_space<vmem>>
    %243 = tpu.memref_slice %arg10[%c19_i32_201] : memref<32x!tpu.dma_semaphore, #tpu.memory_space<semaphore_mem>> -> memref<1x!tpu.dma_semaphore, #tpu.memory_space<semaphore_mem>>
    %244 = tpu.memref_squeeze %243 : memref<1x!tpu.dma_semaphore, #tpu.memory_space<semaphore_mem>> -> memref<!tpu.dma_semaphore, #tpu.memory_space<semaphore_mem>>
    tpu.wait_dma2 semaphore(%244 : memref<!tpu.dma_semaphore, #tpu.memory_space<semaphore_mem>>) src(%241 : memref<1x32xf32, #tpu.memory_space<any>>) dst(%242 : memref<1x32xf32, #tpu.memory_space<vmem>>)
    %c20_i32_205 = arith.constant 20 : i32
    %c0_i32_206 = arith.constant 0 : i32
    %245 = tpu.memref_slice %arg7[%100, %c0_i32_206] : memref<60x32xf32, #tpu.memory_space<any>> -> memref<1x32xf32, #tpu.memory_space<any>>
    %c20_i32_207 = arith.constant 20 : i32
    %c0_i32_208 = arith.constant 0 : i32
    %246 = tpu.memref_slice %arg9[%c20_i32_207, %c0_i32_208] : memref<32x32xf32, #tpu.memory_space<vmem>> -> memref<1x32xf32, #tpu.memory_space<vmem>>
    %247 = tpu.memref_slice %arg10[%c20_i32_205] : memref<32x!tpu.dma_semaphore, #tpu.memory_space<semaphore_mem>> -> memref<1x!tpu.dma_semaphore, #tpu.memory_space<semaphore_mem>>
    %248 = tpu.memref_squeeze %247 : memref<1x!tpu.dma_semaphore, #tpu.memory_space<semaphore_mem>> -> memref<!tpu.dma_semaphore, #tpu.memory_space<semaphore_mem>>
    tpu.wait_dma2 semaphore(%248 : memref<!tpu.dma_semaphore, #tpu.memory_space<semaphore_mem>>) src(%245 : memref<1x32xf32, #tpu.memory_space<any>>) dst(%246 : memref<1x32xf32, #tpu.memory_space<vmem>>)
    %c21_i32_209 = arith.constant 21 : i32
    %c0_i32_210 = arith.constant 0 : i32
    %249 = tpu.memref_slice %arg7[%105, %c0_i32_210] : memref<60x32xf32, #tpu.memory_space<any>> -> memref<1x32xf32, #tpu.memory_space<any>>
    %c21_i32_211 = arith.constant 21 : i32
    %c0_i32_212 = arith.constant 0 : i32
    %250 = tpu.memref_slice %arg9[%c21_i32_211, %c0_i32_212] : memref<32x32xf32, #tpu.memory_space<vmem>> -> memref<1x32xf32, #tpu.memory_space<vmem>>
    %251 = tpu.memref_slice %arg10[%c21_i32_209] : memref<32x!tpu.dma_semaphore, #tpu.memory_space<semaphore_mem>> -> memref<1x!tpu.dma_semaphore, #tpu.memory_space<semaphore_mem>>
    %252 = tpu.memref_squeeze %251 : memref<1x!tpu.dma_semaphore, #tpu.memory_space<semaphore_mem>> -> memref<!tpu.dma_semaphore, #tpu.memory_space<semaphore_mem>>
    tpu.wait_dma2 semaphore(%252 : memref<!tpu.dma_semaphore, #tpu.memory_space<semaphore_mem>>) src(%249 : memref<1x32xf32, #tpu.memory_space<any>>) dst(%250 : memref<1x32xf32, #tpu.memory_space<vmem>>)
    %c22_i32_213 = arith.constant 22 : i32
    %c0_i32_214 = arith.constant 0 : i32
    %253 = tpu.memref_slice %arg7[%110, %c0_i32_214] : memref<60x32xf32, #tpu.memory_space<any>> -> memref<1x32xf32, #tpu.memory_space<any>>
    %c22_i32_215 = arith.constant 22 : i32
    %c0_i32_216 = arith.constant 0 : i32
    %254 = tpu.memref_slice %arg9[%c22_i32_215, %c0_i32_216] : memref<32x32xf32, #tpu.memory_space<vmem>> -> memref<1x32xf32, #tpu.memory_space<vmem>>
    %255 = tpu.memref_slice %arg10[%c22_i32_213] : memref<32x!tpu.dma_semaphore, #tpu.memory_space<semaphore_mem>> -> memref<1x!tpu.dma_semaphore, #tpu.memory_space<semaphore_mem>>
    %256 = tpu.memref_squeeze %255 : memref<1x!tpu.dma_semaphore, #tpu.memory_space<semaphore_mem>> -> memref<!tpu.dma_semaphore, #tpu.memory_space<semaphore_mem>>
    tpu.wait_dma2 semaphore(%256 : memref<!tpu.dma_semaphore, #tpu.memory_space<semaphore_mem>>) src(%253 : memref<1x32xf32, #tpu.memory_space<any>>) dst(%254 : memref<1x32xf32, #tpu.memory_space<vmem>>)
    %c23_i32_217 = arith.constant 23 : i32
    %c0_i32_218 = arith.constant 0 : i32
    %257 = tpu.memref_slice %arg7[%115, %c0_i32_218] : memref<60x32xf32, #tpu.memory_space<any>> -> memref<1x32xf32, #tpu.memory_space<any>>
    %c23_i32_219 = arith.constant 23 : i32
    %c0_i32_220 = arith.constant 0 : i32
    %258 = tpu.memref_slice %arg9[%c23_i32_219, %c0_i32_220] : memref<32x32xf32, #tpu.memory_space<vmem>> -> memref<1x32xf32, #tpu.memory_space<vmem>>
    %259 = tpu.memref_slice %arg10[%c23_i32_217] : memref<32x!tpu.dma_semaphore, #tpu.memory_space<semaphore_mem>> -> memref<1x!tpu.dma_semaphore, #tpu.memory_space<semaphore_mem>>
    %260 = tpu.memref_squeeze %259 : memref<1x!tpu.dma_semaphore, #tpu.memory_space<semaphore_mem>> -> memref<!tpu.dma_semaphore, #tpu.memory_space<semaphore_mem>>
    tpu.wait_dma2 semaphore(%260 : memref<!tpu.dma_semaphore, #tpu.memory_space<semaphore_mem>>) src(%257 : memref<1x32xf32, #tpu.memory_space<any>>) dst(%258 : memref<1x32xf32, #tpu.memory_space<vmem>>)
    %c24_i32_221 = arith.constant 24 : i32
    %c0_i32_222 = arith.constant 0 : i32
    %261 = tpu.memref_slice %arg7[%120, %c0_i32_222] : memref<60x32xf32, #tpu.memory_space<any>> -> memref<1x32xf32, #tpu.memory_space<any>>
    %c24_i32_223 = arith.constant 24 : i32
    %c0_i32_224 = arith.constant 0 : i32
    %262 = tpu.memref_slice %arg9[%c24_i32_223, %c0_i32_224] : memref<32x32xf32, #tpu.memory_space<vmem>> -> memref<1x32xf32, #tpu.memory_space<vmem>>
    %263 = tpu.memref_slice %arg10[%c24_i32_221] : memref<32x!tpu.dma_semaphore, #tpu.memory_space<semaphore_mem>> -> memref<1x!tpu.dma_semaphore, #tpu.memory_space<semaphore_mem>>
    %264 = tpu.memref_squeeze %263 : memref<1x!tpu.dma_semaphore, #tpu.memory_space<semaphore_mem>> -> memref<!tpu.dma_semaphore, #tpu.memory_space<semaphore_mem>>
    tpu.wait_dma2 semaphore(%264 : memref<!tpu.dma_semaphore, #tpu.memory_space<semaphore_mem>>) src(%261 : memref<1x32xf32, #tpu.memory_space<any>>) dst(%262 : memref<1x32xf32, #tpu.memory_space<vmem>>)
    %c25_i32_225 = arith.constant 25 : i32
    %c0_i32_226 = arith.constant 0 : i32
    %265 = tpu.memref_slice %arg7[%125, %c0_i32_226] : memref<60x32xf32, #tpu.memory_space<any>> -> memref<1x32xf32, #tpu.memory_space<any>>
    %c25_i32_227 = arith.constant 25 : i32
    %c0_i32_228 = arith.constant 0 : i32
    %266 = tpu.memref_slice %arg9[%c25_i32_227, %c0_i32_228] : memref<32x32xf32, #tpu.memory_space<vmem>> -> memref<1x32xf32, #tpu.memory_space<vmem>>
    %267 = tpu.memref_slice %arg10[%c25_i32_225] : memref<32x!tpu.dma_semaphore, #tpu.memory_space<semaphore_mem>> -> memref<1x!tpu.dma_semaphore, #tpu.memory_space<semaphore_mem>>
    %268 = tpu.memref_squeeze %267 : memref<1x!tpu.dma_semaphore, #tpu.memory_space<semaphore_mem>> -> memref<!tpu.dma_semaphore, #tpu.memory_space<semaphore_mem>>
    tpu.wait_dma2 semaphore(%268 : memref<!tpu.dma_semaphore, #tpu.memory_space<semaphore_mem>>) src(%265 : memref<1x32xf32, #tpu.memory_space<any>>) dst(%266 : memref<1x32xf32, #tpu.memory_space<vmem>>)
    %c26_i32_229 = arith.constant 26 : i32
    %c0_i32_230 = arith.constant 0 : i32
    %269 = tpu.memref_slice %arg7[%130, %c0_i32_230] : memref<60x32xf32, #tpu.memory_space<any>> -> memref<1x32xf32, #tpu.memory_space<any>>
    %c26_i32_231 = arith.constant 26 : i32
    %c0_i32_232 = arith.constant 0 : i32
    %270 = tpu.memref_slice %arg9[%c26_i32_231, %c0_i32_232] : memref<32x32xf32, #tpu.memory_space<vmem>> -> memref<1x32xf32, #tpu.memory_space<vmem>>
    %271 = tpu.memref_slice %arg10[%c26_i32_229] : memref<32x!tpu.dma_semaphore, #tpu.memory_space<semaphore_mem>> -> memref<1x!tpu.dma_semaphore, #tpu.memory_space<semaphore_mem>>
    %272 = tpu.memref_squeeze %271 : memref<1x!tpu.dma_semaphore, #tpu.memory_space<semaphore_mem>> -> memref<!tpu.dma_semaphore, #tpu.memory_space<semaphore_mem>>
    tpu.wait_dma2 semaphore(%272 : memref<!tpu.dma_semaphore, #tpu.memory_space<semaphore_mem>>) src(%269 : memref<1x32xf32, #tpu.memory_space<any>>) dst(%270 : memref<1x32xf32, #tpu.memory_space<vmem>>)
    %c27_i32_233 = arith.constant 27 : i32
    %c0_i32_234 = arith.constant 0 : i32
    %273 = tpu.memref_slice %arg7[%135, %c0_i32_234] : memref<60x32xf32, #tpu.memory_space<any>> -> memref<1x32xf32, #tpu.memory_space<any>>
    %c27_i32_235 = arith.constant 27 : i32
    %c0_i32_236 = arith.constant 0 : i32
    %274 = tpu.memref_slice %arg9[%c27_i32_235, %c0_i32_236] : memref<32x32xf32, #tpu.memory_space<vmem>> -> memref<1x32xf32, #tpu.memory_space<vmem>>
    %275 = tpu.memref_slice %arg10[%c27_i32_233] : memref<32x!tpu.dma_semaphore, #tpu.memory_space<semaphore_mem>> -> memref<1x!tpu.dma_semaphore, #tpu.memory_space<semaphore_mem>>
    %276 = tpu.memref_squeeze %275 : memref<1x!tpu.dma_semaphore, #tpu.memory_space<semaphore_mem>> -> memref<!tpu.dma_semaphore, #tpu.memory_space<semaphore_mem>>
    tpu.wait_dma2 semaphore(%276 : memref<!tpu.dma_semaphore, #tpu.memory_space<semaphore_mem>>) src(%273 : memref<1x32xf32, #tpu.memory_space<any>>) dst(%274 : memref<1x32xf32, #tpu.memory_space<vmem>>)
    %c28_i32_237 = arith.constant 28 : i32
    %c0_i32_238 = arith.constant 0 : i32
    %277 = tpu.memref_slice %arg7[%140, %c0_i32_238] : memref<60x32xf32, #tpu.memory_space<any>> -> memref<1x32xf32, #tpu.memory_space<any>>
    %c28_i32_239 = arith.constant 28 : i32
    %c0_i32_240 = arith.constant 0 : i32
    %278 = tpu.memref_slice %arg9[%c28_i32_239, %c0_i32_240] : memref<32x32xf32, #tpu.memory_space<vmem>> -> memref<1x32xf32, #tpu.memory_space<vmem>>
    %279 = tpu.memref_slice %arg10[%c28_i32_237] : memref<32x!tpu.dma_semaphore, #tpu.memory_space<semaphore_mem>> -> memref<1x!tpu.dma_semaphore, #tpu.memory_space<semaphore_mem>>
    %280 = tpu.memref_squeeze %279 : memref<1x!tpu.dma_semaphore, #tpu.memory_space<semaphore_mem>> -> memref<!tpu.dma_semaphore, #tpu.memory_space<semaphore_mem>>
    tpu.wait_dma2 semaphore(%280 : memref<!tpu.dma_semaphore, #tpu.memory_space<semaphore_mem>>) src(%277 : memref<1x32xf32, #tpu.memory_space<any>>) dst(%278 : memref<1x32xf32, #tpu.memory_space<vmem>>)
    %c29_i32_241 = arith.constant 29 : i32
    %c0_i32_242 = arith.constant 0 : i32
    %281 = tpu.memref_slice %arg7[%145, %c0_i32_242] : memref<60x32xf32, #tpu.memory_space<any>> -> memref<1x32xf32, #tpu.memory_space<any>>
    %c29_i32_243 = arith.constant 29 : i32
    %c0_i32_244 = arith.constant 0 : i32
    %282 = tpu.memref_slice %arg9[%c29_i32_243, %c0_i32_244] : memref<32x32xf32, #tpu.memory_space<vmem>> -> memref<1x32xf32, #tpu.memory_space<vmem>>
    %283 = tpu.memref_slice %arg10[%c29_i32_241] : memref<32x!tpu.dma_semaphore, #tpu.memory_space<semaphore_mem>> -> memref<1x!tpu.dma_semaphore, #tpu.memory_space<semaphore_mem>>
    %284 = tpu.memref_squeeze %283 : memref<1x!tpu.dma_semaphore, #tpu.memory_space<semaphore_mem>> -> memref<!tpu.dma_semaphore, #tpu.memory_space<semaphore_mem>>
    tpu.wait_dma2 semaphore(%284 : memref<!tpu.dma_semaphore, #tpu.memory_space<semaphore_mem>>) src(%281 : memref<1x32xf32, #tpu.memory_space<any>>) dst(%282 : memref<1x32xf32, #tpu.memory_space<vmem>>)
    %c30_i32_245 = arith.constant 30 : i32
    %c0_i32_246 = arith.constant 0 : i32
    %285 = tpu.memref_slice %arg7[%150, %c0_i32_246] : memref<60x32xf32, #tpu.memory_space<any>> -> memref<1x32xf32, #tpu.memory_space<any>>
    %c30_i32_247 = arith.constant 30 : i32
    %c0_i32_248 = arith.constant 0 : i32
    %286 = tpu.memref_slice %arg9[%c30_i32_247, %c0_i32_248] : memref<32x32xf32, #tpu.memory_space<vmem>> -> memref<1x32xf32, #tpu.memory_space<vmem>>
    %287 = tpu.memref_slice %arg10[%c30_i32_245] : memref<32x!tpu.dma_semaphore, #tpu.memory_space<semaphore_mem>> -> memref<1x!tpu.dma_semaphore, #tpu.memory_space<semaphore_mem>>
    %288 = tpu.memref_squeeze %287 : memref<1x!tpu.dma_semaphore, #tpu.memory_space<semaphore_mem>> -> memref<!tpu.dma_semaphore, #tpu.memory_space<semaphore_mem>>
    tpu.wait_dma2 semaphore(%288 : memref<!tpu.dma_semaphore, #tpu.memory_space<semaphore_mem>>) src(%285 : memref<1x32xf32, #tpu.memory_space<any>>) dst(%286 : memref<1x32xf32, #tpu.memory_space<vmem>>)
    %c31_i32_249 = arith.constant 31 : i32
    %c0_i32_250 = arith.constant 0 : i32
    %289 = tpu.memref_slice %arg7[%155, %c0_i32_250] : memref<60x32xf32, #tpu.memory_space<any>> -> memref<1x32xf32, #tpu.memory_space<any>>
    %c31_i32_251 = arith.constant 31 : i32
    %c0_i32_252 = arith.constant 0 : i32
    %290 = tpu.memref_slice %arg9[%c31_i32_251, %c0_i32_252] : memref<32x32xf32, #tpu.memory_space<vmem>> -> memref<1x32xf32, #tpu.memory_space<vmem>>
    %291 = tpu.memref_slice %arg10[%c31_i32_249] : memref<32x!tpu.dma_semaphore, #tpu.memory_space<semaphore_mem>> -> memref<1x!tpu.dma_semaphore, #tpu.memory_space<semaphore_mem>>
    %292 = tpu.memref_squeeze %291 : memref<1x!tpu.dma_semaphore, #tpu.memory_space<semaphore_mem>> -> memref<!tpu.dma_semaphore, #tpu.memory_space<semaphore_mem>>
    tpu.wait_dma2 semaphore(%292 : memref<!tpu.dma_semaphore, #tpu.memory_space<semaphore_mem>>) src(%289 : memref<1x32xf32, #tpu.memory_space<any>>) dst(%290 : memref<1x32xf32, #tpu.memory_space<vmem>>)
    %c0_253 = arith.constant 0 : index
    %c0_254 = arith.constant 0 : index
    %293 = vector.load %arg9[%c0_253, %c0_254] : memref<32x32xf32, #tpu.memory_space<vmem>>, vector<32x32xf32>
    %294 = vector.extract_strided_slice %293 {offsets = [0, 0], sizes = [8, 32], strides = [1, 1]} : vector<32x32xf32> to vector<8x32xf32>
    %295 = vector.extract_strided_slice %293 {offsets = [8, 0], sizes = [8, 32], strides = [1, 1]} : vector<32x32xf32> to vector<8x32xf32>
    %296 = vector.extract_strided_slice %293 {offsets = [16, 0], sizes = [8, 32], strides = [1, 1]} : vector<32x32xf32> to vector<8x32xf32>
    %297 = vector.extract_strided_slice %293 {offsets = [24, 0], sizes = [8, 32], strides = [1, 1]} : vector<32x32xf32> to vector<8x32xf32>
    %c0_255 = arith.constant 0 : index
    %c0_256 = arith.constant 0 : index
    %298 = vector.load %arg5[%c0_255, %c0_256] : memref<2x32xf32, #tpu.memory_space<vmem>>, vector<2x32xf32>
    %299 = vector.extract_strided_slice %298 {offsets = [0, 0], sizes = [1, 32], strides = [1, 1]} : vector<2x32xf32> to vector<1x32xf32>
    %300 = vector.extract_strided_slice %298 {offsets = [1, 0], sizes = [1, 32], strides = [1, 1]} : vector<2x32xf32> to vector<1x32xf32>
    %301 = vector.broadcast %299 : vector<1x32xf32> to vector<8x32xf32>
    %302 = arith.mulf %294, %301 : vector<8x32xf32>
    %cst = arith.constant dense<0.000000e+00> : vector<8xf32>
    %303 = vector.multi_reduction <add>, %302, %cst [1] : vector<8x32xf32> to vector<8xf32>
    %304 = vector.shape_cast %303 : vector<8xf32> to vector<8x1xf32>
    %305 = vector.broadcast %160 : f32 to vector<8x1xf32>
    %306 = arith.addf %304, %305 : vector<8x1xf32>
    %307 = vector.broadcast %299 : vector<1x32xf32> to vector<8x32xf32>
    %308 = arith.mulf %295, %307 : vector<8x32xf32>
    %cst_257 = arith.constant dense<0.000000e+00> : vector<8xf32>
    %309 = vector.multi_reduction <add>, %308, %cst_257 [1] : vector<8x32xf32> to vector<8xf32>
    %310 = vector.shape_cast %309 : vector<8xf32> to vector<8x1xf32>
    %311 = vector.broadcast %160 : f32 to vector<8x1xf32>
    %312 = arith.addf %310, %311 : vector<8x1xf32>
    %313 = vector.broadcast %300 : vector<1x32xf32> to vector<8x32xf32>
    %314 = arith.mulf %296, %313 : vector<8x32xf32>
    %cst_258 = arith.constant dense<0.000000e+00> : vector<8xf32>
    %315 = vector.multi_reduction <add>, %314, %cst_258 [1] : vector<8x32xf32> to vector<8xf32>
    %316 = vector.shape_cast %315 : vector<8xf32> to vector<8x1xf32>
    %317 = vector.broadcast %161 : f32 to vector<8x1xf32>
    %318 = arith.addf %316, %317 : vector<8x1xf32>
    %319 = vector.broadcast %300 : vector<1x32xf32> to vector<8x32xf32>
    %320 = arith.mulf %297, %319 : vector<8x32xf32>
    %cst_259 = arith.constant dense<0.000000e+00> : vector<8xf32>
    %321 = vector.multi_reduction <add>, %320, %cst_259 [1] : vector<8x32xf32> to vector<8xf32>
    %322 = vector.shape_cast %321 : vector<8xf32> to vector<8x1xf32>
    %323 = vector.broadcast %161 : f32 to vector<8x1xf32>
    %324 = arith.addf %322, %323 : vector<8x1xf32>
    %325 = arith.mulf %294, %296 : vector<8x32xf32>
    %cst_260 = arith.constant dense<0.000000e+00> : vector<8xf32>
    %326 = vector.multi_reduction <add>, %325, %cst_260 [1] : vector<8x32xf32> to vector<8xf32>
    %327 = vector.shape_cast %326 : vector<8xf32> to vector<8x1xf32>
    %328 = arith.mulf %294, %297 : vector<8x32xf32>
    %cst_261 = arith.constant dense<0.000000e+00> : vector<8xf32>
    %329 = vector.multi_reduction <add>, %328, %cst_261 [1] : vector<8x32xf32> to vector<8xf32>
    %330 = vector.shape_cast %329 : vector<8xf32> to vector<8x1xf32>
    %331 = arith.mulf %294, %294 : vector<8x32xf32>
    %332 = arith.mulf %296, %296 : vector<8x32xf32>
    %333 = arith.addf %331, %332 : vector<8x32xf32>
    %334 = arith.mulf %297, %297 : vector<8x32xf32>
    %335 = arith.addf %333, %334 : vector<8x32xf32>
    %336 = vector.shape_cast %335 : vector<8x32xf32> to vector<1x8x32xf32>
    %cst_262 = arith.constant dense<0.000000e+00> : vector<1xf32>
    %337 = vector.multi_reduction <add>, %336, %cst_262 [1, 2] : vector<1x8x32xf32> to vector<1xf32>
    %338 = vector.shape_cast %337 : vector<1xf32> to vector<1x1x1xf32>
    %339 = vector.extract %338[0, 0, 0] : f32 from vector<1x1x1xf32>
    %340 = arith.negf %306 : vector<8x1xf32>
    %341 = math.exp %340 : vector<8x1xf32>
    %cst_263 = arith.constant 1.000000e+00 : f32
    %342 = vector.broadcast %cst_263 : f32 to vector<8x1xf32>
    %343 = arith.addf %342, %341 : vector<8x1xf32>
    %344 = arith.divf %342, %343 : vector<8x1xf32>
    %345 = arith.negf %318 : vector<8x1xf32>
    %346 = math.exp %345 : vector<8x1xf32>
    %cst_264 = arith.constant 1.000000e+00 : f32
    %347 = vector.broadcast %cst_264 : f32 to vector<8x1xf32>
    %348 = arith.addf %347, %346 : vector<8x1xf32>
    %349 = arith.divf %347, %348 : vector<8x1xf32>
    %350 = arith.negf %324 : vector<8x1xf32>
    %351 = math.exp %350 : vector<8x1xf32>
    %cst_265 = arith.constant 1.000000e+00 : f32
    %352 = vector.broadcast %cst_265 : f32 to vector<8x1xf32>
    %353 = arith.addf %352, %351 : vector<8x1xf32>
    %354 = arith.divf %352, %353 : vector<8x1xf32>
    %355 = tpu.iota {dimensions = array<i32: 0>} : vector<8x8xi32>
    %356 = tpu.iota {dimensions = array<i32: 1>} : vector<8x8xi32>
    %357 = arith.cmpi eq, %355, %356 : vector<8x8xi32>
    %cst_266 = arith.constant 0.000000e+00 : f32
    %358 = vector.shape_cast %327 : vector<8x1xf32> to vector<8x1xf32>
    %359 = vector.broadcast %358 : vector<8x1xf32> to vector<8x8xf32>
    %360 = vector.broadcast %cst_266 : f32 to vector<8x8xf32>
    %361 = arith.select %357, %359, %360 : vector<8x8xi1>, vector<8x8xf32>
    %cst_267 = arith.constant dense<0.000000e+00> : vector<8xf32>
    %362 = vector.multi_reduction <add>, %361, %cst_267 [0] : vector<8x8xf32> to vector<8xf32>
    %363 = vector.shape_cast %362 : vector<8xf32> to vector<1x8xf32>
    %cst_268 = arith.constant 0.000000e+00 : f32
    %364 = vector.shape_cast %330 : vector<8x1xf32> to vector<8x1xf32>
    %365 = vector.broadcast %364 : vector<8x1xf32> to vector<8x8xf32>
    %366 = vector.broadcast %cst_268 : f32 to vector<8x8xf32>
    %367 = arith.select %357, %365, %366 : vector<8x8xi1>, vector<8x8xf32>
    %cst_269 = arith.constant dense<0.000000e+00> : vector<8xf32>
    %368 = vector.multi_reduction <add>, %367, %cst_269 [0] : vector<8x8xf32> to vector<8xf32>
    %369 = vector.shape_cast %368 : vector<8xf32> to vector<1x8xf32>
    %370 = arith.mulf %344, %349 : vector<8x1xf32>
    %371 = vector.broadcast %370 : vector<8x1xf32> to vector<8x8xf32>
    %372 = vector.broadcast %363 : vector<1x8xf32> to vector<8x8xf32>
    %373 = arith.mulf %371, %372 : vector<8x8xf32>
    %374 = arith.mulf %344, %354 : vector<8x1xf32>
    %375 = vector.broadcast %374 : vector<8x1xf32> to vector<8x8xf32>
    %376 = vector.broadcast %369 : vector<1x8xf32> to vector<8x8xf32>
    %377 = arith.mulf %375, %376 : vector<8x8xf32>
    %cst_270 = arith.constant 0.000000e+00 : f32
    %378 = vector.broadcast %cst_270 : f32 to vector<8x8xf32>
    %379 = arith.subf %378, %373 : vector<8x8xf32>
    %cst_271 = arith.constant 0.000000e+00 : f32
    %380 = vector.broadcast %cst_271 : f32 to vector<8x8xf32>
    %381 = arith.maximumf %379, %380 : vector<8x8xf32>
    %382 = math.absf %379 : vector<8x8xf32>
    %cst_272 = arith.constant 0.000000e+00 : f32
    %383 = vector.broadcast %cst_272 : f32 to vector<8x8xf32>
    %384 = arith.subf %383, %382 : vector<8x8xf32>
    %385 = math.exp %384 : vector<8x8xf32>
    %386 = math.log1p %385 : vector<8x8xf32>
    %387 = arith.addf %381, %386 : vector<8x8xf32>
    %cst_273 = arith.constant 0.000000e+00 : f32
    %388 = vector.broadcast %cst_273 : f32 to vector<8x8xf32>
    %389 = arith.maximumf %377, %388 : vector<8x8xf32>
    %390 = math.absf %377 : vector<8x8xf32>
    %cst_274 = arith.constant 0.000000e+00 : f32
    %391 = vector.broadcast %cst_274 : f32 to vector<8x8xf32>
    %392 = arith.subf %391, %390 : vector<8x8xf32>
    %393 = math.exp %392 : vector<8x8xf32>
    %394 = math.log1p %393 : vector<8x8xf32>
    %395 = arith.addf %389, %394 : vector<8x8xf32>
    %396 = arith.addf %387, %395 : vector<8x8xf32>
    %397 = vector.shape_cast %396 : vector<8x8xf32> to vector<1x8x8xf32>
    %cst_275 = arith.constant dense<0.000000e+00> : vector<1xf32>
    %398 = vector.multi_reduction <add>, %397, %cst_275 [1, 2] : vector<1x8x8xf32> to vector<1xf32>
    %399 = vector.shape_cast %398 : vector<1xf32> to vector<1x1x1xf32>
    %400 = vector.extract %399[0, 0, 0] : f32 from vector<1x1x1xf32>
    %cst_276 = arith.constant 0.000000e+00 : f32
    %401 = vector.broadcast %cst_276 : f32 to vector<8x1xf32>
    %402 = arith.subf %401, %306 : vector<8x1xf32>
    %cst_277 = arith.constant 0.000000e+00 : f32
    %403 = vector.broadcast %cst_277 : f32 to vector<8x1xf32>
    %404 = arith.maximumf %402, %403 : vector<8x1xf32>
    %405 = math.absf %402 : vector<8x1xf32>
    %cst_278 = arith.constant 0.000000e+00 : f32
    %406 = vector.broadcast %cst_278 : f32 to vector<8x1xf32>
    %407 = arith.subf %406, %405 : vector<8x1xf32>
    %408 = math.exp %407 : vector<8x1xf32>
    %409 = math.log1p %408 : vector<8x1xf32>
    %410 = arith.addf %404, %409 : vector<8x1xf32>
    %cst_279 = arith.constant 0.000000e+00 : f32
    %411 = vector.broadcast %cst_279 : f32 to vector<8x1xf32>
    %412 = arith.maximumf %312, %411 : vector<8x1xf32>
    %413 = math.absf %312 : vector<8x1xf32>
    %cst_280 = arith.constant 0.000000e+00 : f32
    %414 = vector.broadcast %cst_280 : f32 to vector<8x1xf32>
    %415 = arith.subf %414, %413 : vector<8x1xf32>
    %416 = math.exp %415 : vector<8x1xf32>
    %417 = math.log1p %416 : vector<8x1xf32>
    %418 = arith.addf %412, %417 : vector<8x1xf32>
    %419 = arith.addf %410, %418 : vector<8x1xf32>
    %420 = vector.broadcast %162 : f32 to vector<8x1xf32>
    %421 = arith.mulf %420, %419 : vector<8x1xf32>
    %cst_281 = arith.constant 0.000000e+00 : f32
    %422 = vector.broadcast %cst_281 : f32 to vector<8x1xf32>
    %423 = arith.subf %422, %318 : vector<8x1xf32>
    %cst_282 = arith.constant 0.000000e+00 : f32
    %424 = vector.broadcast %cst_282 : f32 to vector<8x1xf32>
    %425 = arith.maximumf %423, %424 : vector<8x1xf32>
    %426 = math.absf %423 : vector<8x1xf32>
    %cst_283 = arith.constant 0.000000e+00 : f32
    %427 = vector.broadcast %cst_283 : f32 to vector<8x1xf32>
    %428 = arith.subf %427, %426 : vector<8x1xf32>
    %429 = math.exp %428 : vector<8x1xf32>
    %430 = math.log1p %429 : vector<8x1xf32>
    %431 = arith.addf %425, %430 : vector<8x1xf32>
    %cst_284 = arith.constant 0.000000e+00 : f32
    %432 = vector.broadcast %cst_284 : f32 to vector<8x1xf32>
    %433 = arith.maximumf %324, %432 : vector<8x1xf32>
    %434 = math.absf %324 : vector<8x1xf32>
    %cst_285 = arith.constant 0.000000e+00 : f32
    %435 = vector.broadcast %cst_285 : f32 to vector<8x1xf32>
    %436 = arith.subf %435, %434 : vector<8x1xf32>
    %437 = math.exp %436 : vector<8x1xf32>
    %438 = math.log1p %437 : vector<8x1xf32>
    %439 = arith.addf %433, %438 : vector<8x1xf32>
    %440 = arith.addf %431, %439 : vector<8x1xf32>
    %441 = vector.broadcast %163 : f32 to vector<8x1xf32>
    %442 = arith.mulf %441, %440 : vector<8x1xf32>
    %443 = arith.addf %421, %442 : vector<8x1xf32>
    %444 = vector.shape_cast %443 : vector<8x1xf32> to vector<1x8x1xf32>
    %cst_286 = arith.constant dense<0.000000e+00> : vector<1xf32>
    %445 = vector.multi_reduction <add>, %444, %cst_286 [1, 2] : vector<1x8x1xf32> to vector<1xf32>
    %446 = vector.shape_cast %445 : vector<1xf32> to vector<1x1x1xf32>
    %447 = vector.extract %446[0, 0, 0] : f32 from vector<1x1x1xf32>
    %cst_287 = arith.constant 1.562500e-02 : f32
    %448 = arith.mulf %400, %cst_287 : f32
    %cst_288 = arith.constant 1.250000e-01 : f32
    %449 = arith.mulf %447, %cst_288 : f32
    %450 = arith.addf %448, %449 : f32
    %cst_289 = arith.constant 1.250000e-01 : f32
    %451 = arith.mulf %339, %cst_289 : f32
    %452 = arith.mulf %164, %451 : f32
    %453 = arith.addf %450, %452 : f32
    %c0_290 = arith.constant 0 : index
    %c0_291 = arith.constant 0 : index
    %454 = memref.load %arg8[%c0_290, %c0_291] : memref<1x1xf32, #tpu.memory_space<smem>>
    memref.store %453, %arg8[%c0_290, %c0_291] : memref<1x1xf32, #tpu.memory_space<smem>>
    return
  }
}

</mosaic_0001>

<llo_original>
// kernel: tpu_custom_call.1
$region0: #{tpu_custom_call.1}
  #allocation0 [shape = 'u32[]', space=smem, size = 0x4, offset = 0x4, fixed_abs, tag = 'smem constant byte address 0x4 - core index']
  #allocation1 [shape = 'u32[144,128]{1,0:T(1,128)}', space=vmem, size = 0x12000, scoped, tag = 'internal scratch']
  #allocation2 [shape = 'f32[32,32]{1,0:T(8,128)}', space=vmem, size = 0x4000, scoped, tag = 'scratch operand']
  #allocation3 [shape = 's32[32]{0}', space=sflag, size = 0x80, scoped, tag = 'scratch operand']
  #allocation14 [shape = 's32[]', space=sflag, size = 0x4, offset = 0, fixed_abs, tag = 'sflag constant byte address 0x0 - dummy sync flag']
  #allocation15 [shape = 's32[]', space=sflag, size = 0x4, offset = 0, fixed_abs, tag = 'sflag constant byte address 0x0 - dummy sync flag']
  #allocation16 [shape = 's32[]', space=sflag, size = 0x4, offset = 0, fixed_abs, tag = 'sflag constant byte address 0x0 - dummy sync flag']
  #allocation17 [shape = 's32[]', space=sflag, size = 0x4, offset = 0, fixed_abs, tag = 'sflag constant byte address 0x0 - dummy sync flag']
  #allocation18 [shape = 's32[]', space=sflag, size = 0x4, offset = 0, fixed_abs, tag = 'sflag constant byte address 0x0 - dummy sync flag']
  #allocation19 [shape = 's32[]', space=sflag, size = 0x4, offset = 0, fixed_abs, tag = 'sflag constant byte address 0x0 - dummy sync flag']
  #allocation20 [shape = 's32[]', space=sflag, size = 0x4, offset = 0, fixed_abs, tag = 'sflag constant byte address 0x0 - dummy sync flag']
  #allocation21 [shape = 's32[]', space=sflag, size = 0x4, offset = 0, fixed_abs, tag = 'sflag constant byte address 0x0 - dummy sync flag']
  #allocation22 [shape = 's32[]', space=sflag, size = 0x4, offset = 0, fixed_abs, tag = 'sflag constant byte address 0x0 - dummy sync flag']
  #allocation23 [shape = 's32[]', space=sflag, size = 0x4, offset = 0, fixed_abs, tag = 'sflag constant byte address 0x0 - dummy sync flag']
  #allocation24 [shape = 's32[]', space=sflag, size = 0x4, offset = 0, fixed_abs, tag = 'sflag constant byte address 0x0 - dummy sync flag']
  #allocation25 [shape = 's32[]', space=sflag, size = 0x4, offset = 0, fixed_abs, tag = 'sflag constant byte address 0x0 - dummy sync flag']
  #allocation26 [shape = 's32[]', space=sflag, size = 0x4, offset = 0, fixed_abs, tag = 'sflag constant byte address 0x0 - dummy sync flag']
  #allocation27 [shape = 's32[]', space=sflag, size = 0x4, offset = 0, fixed_abs, tag = 'sflag constant byte address 0x0 - dummy sync flag']
  #allocation28 [shape = 's32[]', space=sflag, size = 0x4, offset = 0, fixed_abs, tag = 'sflag constant byte address 0x0 - dummy sync flag']
  #allocation29 [shape = 's32[]', space=sflag, size = 0x4, offset = 0, fixed_abs, tag = 'sflag constant byte address 0x0 - dummy sync flag']
  #allocation30 [shape = 's32[]', space=sflag, size = 0x4, offset = 0, fixed_abs, tag = 'sflag constant byte address 0x0 - dummy sync flag']
  #allocation31 [shape = 's32[]', space=sflag, size = 0x4, offset = 0, fixed_abs, tag = 'sflag constant byte address 0x0 - dummy sync flag']
  #allocation32 [shape = 's32[]', space=sflag, size = 0x4, offset = 0, fixed_abs, tag = 'sflag constant byte address 0x0 - dummy sync flag']
  #allocation33 [shape = 's32[]', space=sflag, size = 0x4, offset = 0, fixed_abs, tag = 'sflag constant byte address 0x0 - dummy sync flag']
  #allocation34 [shape = 's32[]', space=sflag, size = 0x4, offset = 0, fixed_abs, tag = 'sflag constant byte address 0x0 - dummy sync flag']
  #allocation35 [shape = 's32[]', space=sflag, size = 0x4, offset = 0, fixed_abs, tag = 'sflag constant byte address 0x0 - dummy sync flag']
  #allocation36 [shape = 's32[]', space=sflag, size = 0x4, offset = 0, fixed_abs, tag = 'sflag constant byte address 0x0 - dummy sync flag']
  #allocation37 [shape = 's32[]', space=sflag, size = 0x4, offset = 0, fixed_abs, tag = 'sflag constant byte address 0x0 - dummy sync flag']
  #allocation38 [shape = 's32[]', space=sflag, size = 0x4, offset = 0, fixed_abs, tag = 'sflag constant byte address 0x0 - dummy sync flag']
  #allocation39 [shape = 's32[]', space=sflag, size = 0x4, offset = 0, fixed_abs, tag = 'sflag constant byte address 0x0 - dummy sync flag']
  #allocation40 [shape = 's32[]', space=sflag, size = 0x4, offset = 0, fixed_abs, tag = 'sflag constant byte address 0x0 - dummy sync flag']
  #allocation41 [shape = 's32[]', space=sflag, size = 0x4, offset = 0, fixed_abs, tag = 'sflag constant byte address 0x0 - dummy sync flag']
  #allocation42 [shape = 's32[]', space=sflag, size = 0x4, offset = 0, fixed_abs, tag = 'sflag constant byte address 0x0 - dummy sync flag']
  #allocation43 [shape = 's32[]', space=sflag, size = 0x4, offset = 0, fixed_abs, tag = 'sflag constant byte address 0x0 - dummy sync flag']
  #allocation44 [shape = 's32[]', space=sflag, size = 0x4, offset = 0, fixed_abs, tag = 'sflag constant byte address 0x0 - dummy sync flag']
  #allocation45 [shape = 's32[]', space=sflag, size = 0x4, offset = 0, fixed_abs, tag = 'sflag constant byte address 0x0 - dummy sync flag']
  %s0 = inlined_call_operand.vmem [shape: s32[8], index: 0, kind: input, shape index: {}]
  %s1 = inlined_call_operand.vmem [shape: s32[8], index: 1, kind: input, shape index: {}]
  %s2 = inlined_call_operand.vmem [shape: s32[8], index: 2, kind: input, shape index: {}]
  %s3 = inlined_call_operand.vmem [shape: s32[8], index: 3, kind: input, shape index: {}]
  %s4 = inlined_call_operand.vmem [shape: f32[5], index: 4, kind: input, shape index: {}]
  %s5 = inlined_call_operand.vmem [shape: f32[2,32], index: 5, kind: input, shape index: {}]
  %s6 = inlined_call_operand.vmem [shape: f32[50,32], index: 6, kind: input, shape index: {}]
  %s7 = inlined_call_operand.vmem [shape: f32[60,32], index: 7, kind: input, shape index: {}]
  %s8 = inlined_call_operand.hbm [shape: f32[1,1], index: 8, kind: output, shape index: {}]
  %s9 = sld [smem:[#allocation0]]
  $region1014: #{tpu_custom_call.1} parent=0
    _
  %s11 = ssub.s32 1, %s9
  %s12 = scalar_select 0, %s11, %s9
  $region1: #{tpu_custom_call.1} parent=0
    #allocation4 [shape = 'u8[512]{0}', space=smem, size = 0x200, scoped, tag = 'input window, operand 0, single buffered']
    #allocation5 [shape = 's32[1]{0}', space=sflag, size = 0x4, scoped, tag = 'scoped memory for tpu_custom_call.1']
    #allocation6 [shape = 's32[1]{0}', space=sflag, size = 0x4, scoped, tag = 'scoped memory for tpu_custom_call.1']
    #allocation7 [shape = 'u8[512]{0}', space=smem, size = 0x200, scoped, tag = 'input window, operand 1, single buffered']
    #allocation8 [shape = 's32[1]{0}', space=sflag, size = 0x4, scoped, tag = 'scoped memory for tpu_custom_call.1']
    #allocation9 [shape = 'u8[512]{0}', space=smem, size = 0x200, scoped, tag = 'input window, operand 2, single buffered']
    #allocation10 [shape = 'u8[512]{0}', space=smem, size = 0x200, scoped, tag = 'input window, operand 3, single buffered']
    #allocation11 [shape = 's32[1]{0}', space=sflag, size = 0x4, scoped, tag = 'scoped memory for tpu_custom_call.1']
    #allocation12 [shape = 'u8[512]{0}', space=smem, size = 0x200, scoped, tag = 'input window, operand 4, single buffered']
    #allocation13 [shape = 'u8[512]{0}', space=smem, size = 0x200, scoped, tag = 'output window, operand 0, single buffered']
    %13 = vsyncpa [#allocation6], 0
    %14 = vsyncpa [#allocation8], 0
    %15 = vsyncpa [#allocation11], 0
    %16 = vsyncpa [#allocation5], 0
    // Predicated region
    $region2: #{tpu_custom_call.1} parent=1 // pred_check
      _
    $region3: #{tpu_custom_call.1} parent=1 // pred_check_branch
      %18 = sbr.rel (0) target = $region5
    $region4: #{tpu_custom_call.1} parent=1 // pred_region
      %s20 = ssub.s32 16, 16
      %21 = vsyncadd [#allocation6], %s20
      %s23 = sshll.u32 %s0, 4
      %s24 = int_to_ptr.vmem [resolvable:$true] %s23
      %26 = dma.vmem_to_smem %s24, 16, [#allocation4], [#allocation6]
    $region5: #{tpu_custom_call.1} parent=1 // pred_fallthru
      _
    // Predicated region
    $region6: #{tpu_custom_call.1} parent=1 // pred_check
      _
    $region7: #{tpu_custom_call.1} parent=1 // pred_check_branch
      %28 = sbr.rel (0) target = $region9
    $region8: #{tpu_custom_call.1} parent=1 // pred_region
      %s30 = ssub.s32 16, 16
      %31 = vsyncadd [#allocation8], %s30
      %s33 = sshll.u32 %s1, 4
      %s34 = int_to_ptr.vmem [resolvable:$true] %s33
      %36 = dma.vmem_to_smem %s34, 16, [#allocation7], [#allocation8]
    $region9: #{tpu_custom_call.1} parent=1 // pred_fallthru
      _
    // Predicated region
    $region10: #{tpu_custom_call.1} parent=1 // pred_check
      _
    $region11: #{tpu_custom_call.1} parent=1 // pred_check_branch
      %38 = sbr.rel (0) target = $region13
    $region12: #{tpu_custom_call.1} parent=1 // pred_region
      %s40 = ssub.s32 16, 16
      %41 = vsyncadd [#allocation8], %s40
      %s43 = sshll.u32 %s2, 4
      %s44 = int_to_ptr.vmem [resolvable:$true] %s43
      %46 = dma.vmem_to_smem %s44, 16, [#allocation9], [#allocation8]
    $region13: #{tpu_custom_call.1} parent=1 // pred_fallthru
      _
    // Predicated region
    $region14: #{tpu_custom_call.1} parent=1 // pred_check
      _
    $region15: #{tpu_custom_call.1} parent=1 // pred_check_branch
      %48 = sbr.rel (0) target = $region17
    $region16: #{tpu_custom_call.1} parent=1 // pred_region
      %s50 = ssub.s32 16, 16
      %51 = vsyncadd [#allocation11], %s50
      %s53 = sshll.u32 %s3, 4
      %s54 = int_to_ptr.vmem [resolvable:$true] %s53
      %56 = dma.vmem_to_smem %s54, 16, [#allocation10], [#allocation11]
    $region17: #{tpu_custom_call.1} parent=1 // pred_fallthru
      _
    // Predicated region
    $region18: #{tpu_custom_call.1} parent=1 // pred_check
      _
    $region19: #{tpu_custom_call.1} parent=1 // pred_check_branch
      %58 = sbr.rel (0) target = $region21
    $region20: #{tpu_custom_call.1} parent=1 // pred_region
      %s60 = ssub.s32 16, 16
      %61 = vsyncadd [#allocation11], %s60
      %s63 = sshll.u32 %s4, 4
      %s64 = int_to_ptr.vmem [resolvable:$true] %s63
      %66 = dma.vmem_to_smem %s64, 16, [#allocation12], [#allocation11]
    $region21: #{tpu_custom_call.1} parent=1 // pred_fallthru
      _
    // Predicated region
    $region22: #{tpu_custom_call.1} parent=1 // pred_check
      _
    $region23: #{tpu_custom_call.1} parent=1 // pred_check_branch
      %68 = sbr.rel (0) target = $region25
    $region24: #{tpu_custom_call.1} parent=1 // pred_region
      _
    $region25: #{tpu_custom_call.1} parent=1 // pred_fallthru
      _
    // Predicated region
    $region26: #{tpu_custom_call.1} parent=1 // pred_check
      _
    $region27: #{tpu_custom_call.1} parent=1 // pred_check_branch
      %70 = sbr.rel (0) target = $region29
    $region28: #{tpu_custom_call.1} parent=1 // pred_region
      %71 = dma.done [#allocation6], 16
    $region29: #{tpu_custom_call.1} parent=1 // pred_fallthru
      _
    // Predicated region
    $region30: #{tpu_custom_call.1} parent=1 // pred_check
      _
    $region31: #{tpu_custom_call.1} parent=1 // pred_check_branch
      %73 = sbr.rel (0) target = $region33
    $region32: #{tpu_custom_call.1} parent=1 // pred_region
      %74 = dma.done [#allocation8], 16
    $region33: #{tpu_custom_call.1} parent=1 // pred_fallthru
      _
    // Predicated region
    $region34: #{tpu_custom_call.1} parent=1 // pred_check
      _
    $region35: #{tpu_custom_call.1} parent=1 // pred_check_branch
      %76 = sbr.rel (0) target = $region37
    $region36: #{tpu_custom_call.1} parent=1 // pred_region
      %77 = dma.done [#allocation8], 16
    $region37: #{tpu_custom_call.1} parent=1 // pred_fallthru
      _
    // Predicated region
    $region38: #{tpu_custom_call.1} parent=1 // pred_check
      _
    $region39: #{tpu_custom_call.1} parent=1 // pred_check_branch
      %79 = sbr.rel (0) target = $region41
    $region40: #{tpu_custom_call.1} parent=1 // pred_region
      %80 = dma.done [#allocation11], 16
    $region41: #{tpu_custom_call.1} parent=1 // pred_fallthru
      _
    // Predicated region
    $region42: #{tpu_custom_call.1} parent=1 // pred_check
      _
    $region43: #{tpu_custom_call.1} parent=1 // pred_check_branch
      %82 = sbr.rel (0) target = $region45
    $region44: #{tpu_custom_call.1} parent=1 // pred_region
      %83 = dma.done [#allocation11], 16
    $region45: #{tpu_custom_call.1} parent=1 // pred_fallthru
      _
    %84 = sfence
    %s85 = sld [smem:[#allocation4]]
    %s86 = scalar_lea.vmem %s6, %s85
    %p88 = scmp.lt.u32.totalorder 1, 8
    %p89 = pneg %p88
    // Predicated region
    $region46: #{tpu_custom_call.1} parent=1 // pred_check
      _
    $region47: #{tpu_custom_call.1} parent=1 // pred_check_branch
      %91 = sbr.rel (%p88) target = $region49
    $region48: #{tpu_custom_call.1} parent=1 // pred_region
      %s106 = sand.u32 1, 7
      %p107 = scmp.eq.s32.totalorder %s106, 0
      %p108 = pneg %p107
      // Predicated region
      $region61: #{tpu_custom_call.1} parent=48 // pred_check
        _
      $region62: #{tpu_custom_call.1} parent=48 // pred_check_branch
        %110 = sbr.rel (%p107) target = $region64
      $region63: #{tpu_custom_call.1} parent=48 // pred_region
        %s111 = sand.u32 1, 7
        %s112 = ssub.s32 1, %s111
        %s113 = scalar_lea.vmem %s86, %s112
        %s114 = ssub.s32 1, %s111
        %s115 = scalar_lea.vmem [#allocation2], %s114
        %s116 = sshllo.u32 0, %s111
        loop: start=0, step=1, limit=1
        $region65: #{tpu_custom_call.1} parent=63 // loop_pre_header
          _
        $region66: #{tpu_custom_call.1} parent=63 // loop_header
          %s118 = sphi 0, %s122
          %p119 = scmp.ge.s32.totalorder %s118, 1
          %s123 = sphi %s113, %s113
          %s124 = sphi %s115, %s115
        $region67: #{tpu_custom_call.1} parent=63 // loop_header_branch
          %121 = sbr.rel (%p119) target = $region71
        $region68: #{tpu_custom_call.1} parent=63 // loop_body
          %v125 = vld [vmem:[%s123] sm:%s116]
          %126 = vst [vmem:[%s124] sm:%s116] %v125
        $region69: #{tpu_custom_call.1} parent=63 // loop_footer
          %s122 = sadd.s32 1, %s118
        $region70: #{tpu_custom_call.1} parent=63 // loop_footer_branch
          %117 = sbr.rel target = $region66
        $region71: #{tpu_custom_call.1} parent=63 // loop_exit
          _
      $region64: #{tpu_custom_call.1} parent=48 // pred_fallthru
        _
    $region49: #{tpu_custom_call.1} parent=1 // pred_fallthru
      _
    // Predicated region
    $region50: #{tpu_custom_call.1} parent=1 // pred_check
      %p92 = pneg %p88
    $region51: #{tpu_custom_call.1} parent=1 // pred_check_branch
      %94 = sbr.rel (%p92) target = $region53
    $region52: #{tpu_custom_call.1} parent=1 // pred_region
      %s95 = sshllo.u32 0, 1
      loop: start=0, step=1, limit=1
      $region54: #{tpu_custom_call.1} parent=52 // loop_pre_header
        _
      $region55: #{tpu_custom_call.1} parent=52 // loop_header
        %s97 = sphi 0, %s101
        %p98 = scmp.ge.s32.totalorder %s97, 1
        %s102 = sphi %s86, %s86
        %s103 = sphi [#allocation2], [#allocation2]
      $region56: #{tpu_custom_call.1} parent=52 // loop_header_branch
        %100 = sbr.rel (%p98) target = $region60
      $region57: #{tpu_custom_call.1} parent=52 // loop_body
        %v104 = vld [vmem:[%s102] sm:%s95]
        %105 = vst [vmem:[%s103] sm:%s95] %v104
      $region58: #{tpu_custom_call.1} parent=52 // loop_footer
        %s101 = sadd.s32 1, %s97
      $region59: #{tpu_custom_call.1} parent=52 // loop_footer_branch
        %96 = sbr.rel target = $region55
      $region60: #{tpu_custom_call.1} parent=52 // loop_exit
        _
    $region53: #{tpu_custom_call.1} parent=1 // pred_fallthru
      _
    // Predicated region
    $region72: #{tpu_custom_call.1} parent=1 // pred_check
      _
    $region73: #{tpu_custom_call.1} parent=1 // pred_check_branch
      %129 = sbr.rel (0) target = $region75
    $region74: #{tpu_custom_call.1} parent=1 // pred_region
      %130 = vsyncadd [#allocation3], 16
    $region75: #{tpu_custom_call.1} parent=1 // pred_fallthru
      _
    %s131 = sld [smem:[#allocation4 + $0x1]]
    %s132 = scalar_lea.vmem %s6, %s131
    %s133 = scalar_lea.vmem [#allocation2], 1
    %s134 = scalar_lea.sflag [#allocation3], 1
    %p136 = scmp.lt.u32.totalorder 1, 8
    %p137 = pneg %p136
    // Predicated region
    $region76: #{tpu_custom_call.1} parent=1 // pred_check
      _
    $region77: #{tpu_custom_call.1} parent=1 // pred_check_branch
      %139 = sbr.rel (%p136) target = $region79
    $region78: #{tpu_custom_call.1} parent=1 // pred_region
      %s154 = sand.u32 1, 7
      %p155 = scmp.eq.s32.totalorder %s154, 0
      %p156 = pneg %p155
      // Predicated region
      $region91: #{tpu_custom_call.1} parent=78 // pred_check
        _
      $region92: #{tpu_custom_call.1} parent=78 // pred_check_branch
        %158 = sbr.rel (%p155) target = $region94
      $region93: #{tpu_custom_call.1} parent=78 // pred_region
        %s159 = sand.u32 1, 7
        %s160 = ssub.s32 1, %s159
        %s161 = scalar_lea.vmem %s132, %s160
        %s162 = ssub.s32 1, %s159
        %s163 = scalar_lea.vmem %s133, %s162 [#allocation2]
        %s164 = sshllo.u32 0, %s159
        loop: start=0, step=1, limit=1
        $region95: #{tpu_custom_call.1} parent=93 // loop_pre_header
          _
        $region96: #{tpu_custom_call.1} parent=93 // loop_header
          %s166 = sphi 0, %s170
          %p167 = scmp.ge.s32.totalorder %s166, 1
          %s171 = sphi %s161, %s161
          %s172 = sphi %s163, %s163
        $region97: #{tpu_custom_call.1} parent=93 // loop_header_branch
          %169 = sbr.rel (%p167) target = $region101
        $region98: #{tpu_custom_call.1} parent=93 // loop_body
          %v173 = vld [vmem:[%s171] sm:%s164]
          %174 = vst [vmem:[%s172] sm:%s164] %v173
        $region99: #{tpu_custom_call.1} parent=93 // loop_footer
          %s170 = sadd.s32 1, %s166
        $region100: #{tpu_custom_call.1} parent=93 // loop_footer_branch
          %165 = sbr.rel target = $region96
        $region101: #{tpu_custom_call.1} parent=93 // loop_exit
          _
      $region94: #{tpu_custom_call.1} parent=78 // pred_fallthru
        _
    $region79: #{tpu_custom_call.1} parent=1 // pred_fallthru
      _
    // Predicated region
    $region80: #{tpu_custom_call.1} parent=1 // pred_check
      %p140 = pneg %p136
    $region81: #{tpu_custom_call.1} parent=1 // pred_check_branch
      %142 = sbr.rel (%p140) target = $region83
    $region82: #{tpu_custom_call.1} parent=1 // pred_region
      %s143 = sshllo.u32 0, 1
      loop: start=0, step=1, limit=1
      $region84: #{tpu_custom_call.1} parent=82 // loop_pre_header
        _
      $region85: #{tpu_custom_call.1} parent=82 // loop_header
        %s145 = sphi 0, %s149
        %p146 = scmp.ge.s32.totalorder %s145, 1
        %s150 = sphi %s132, %s132
        %s151 = sphi %s133, %s133
      $region86: #{tpu_custom_call.1} parent=82 // loop_header_branch
        %148 = sbr.rel (%p146) target = $region90
      $region87: #{tpu_custom_call.1} parent=82 // loop_body
        %v152 = vld [vmem:[%s150] sm:%s143]
        %153 = vst [vmem:[%s151] sm:%s143] %v152
      $region88: #{tpu_custom_call.1} parent=82 // loop_footer
        %s149 = sadd.s32 1, %s145
      $region89: #{tpu_custom_call.1} parent=82 // loop_footer_branch
        %144 = sbr.rel target = $region85
      $region90: #{tpu_custom_call.1} parent=82 // loop_exit
        _
    $region83: #{tpu_custom_call.1} parent=1 // pred_fallthru
      _
    // Predicated region
    $region102: #{tpu_custom_call.1} parent=1 // pred_check
      _
    $region103: #{tpu_custom_call.1} parent=1 // pred_check_branch
      %177 = sbr.rel (0) target = $region105
    $region104: #{tpu_custom_call.1} parent=1 // pred_region
      %178 = vsyncadd %s134, 16
    $region105: #{tpu_custom_call.1} parent=1 // pred_fallthru
      _
    %s179 = sld [smem:[#allocation4 + $0x2]]
    %s180 = scalar_lea.vmem %s6, %s179
    %s181 = scalar_lea.vmem [#allocation2], 2
    %s182 = scalar_lea.sflag [#allocation3], 2
    %p184 = scmp.lt.u32.totalorder 1, 8
    %p185 = pneg %p184
    // Predicated region
    $region106: #{tpu_custom_call.1} parent=1 // pred_check
      _
    $region107: #{tpu_custom_call.1} parent=1 // pred_check_branch
      %187 = sbr.rel (%p184) target = $region109
    $region108: #{tpu_custom_call.1} parent=1 // pred_region
      %s202 = sand.u32 1, 7
      %p203 = scmp.eq.s32.totalorder %s202, 0
      %p204 = pneg %p203
      // Predicated region
      $region121: #{tpu_custom_call.1} parent=108 // pred_check
        _
      $region122: #{tpu_custom_call.1} parent=108 // pred_check_branch
        %206 = sbr.rel (%p203) target = $region124
      $region123: #{tpu_custom_call.1} parent=108 // pred_region
        %s207 = sand.u32 1, 7
        %s208 = ssub.s32 1, %s207
        %s209 = scalar_lea.vmem %s180, %s208
        %s210 = ssub.s32 1, %s207
        %s211 = scalar_lea.vmem %s181, %s210 [#allocation2]
        %s212 = sshllo.u32 0, %s207
        loop: start=0, step=1, limit=1
        $region125: #{tpu_custom_call.1} parent=123 // loop_pre_header
          _
        $region126: #{tpu_custom_call.1} parent=123 // loop_header
          %s214 = sphi 0, %s218
          %p215 = scmp.ge.s32.totalorder %s214, 1
          %s219 = sphi %s209, %s209
          %s220 = sphi %s211, %s211
        $region127: #{tpu_custom_call.1} parent=123 // loop_header_branch
          %217 = sbr.rel (%p215) target = $region131
        $region128: #{tpu_custom_call.1} parent=123 // loop_body
          %v221 = vld [vmem:[%s219] sm:%s212]
          %222 = vst [vmem:[%s220] sm:%s212] %v221
        $region129: #{tpu_custom_call.1} parent=123 // loop_footer
          %s218 = sadd.s32 1, %s214
        $region130: #{tpu_custom_call.1} parent=123 // loop_footer_branch
          %213 = sbr.rel target = $region126
        $region131: #{tpu_custom_call.1} parent=123 // loop_exit
          _
      $region124: #{tpu_custom_call.1} parent=108 // pred_fallthru
        _
    $region109: #{tpu_custom_call.1} parent=1 // pred_fallthru
      _
    // Predicated region
    $region110: #{tpu_custom_call.1} parent=1 // pred_check
      %p188 = pneg %p184
    $region111: #{tpu_custom_call.1} parent=1 // pred_check_branch
      %190 = sbr.rel (%p188) target = $region113
    $region112: #{tpu_custom_call.1} parent=1 // pred_region
      %s191 = sshllo.u32 0, 1
      loop: start=0, step=1, limit=1
      $region114: #{tpu_custom_call.1} parent=112 // loop_pre_header
        _
      $region115: #{tpu_custom_call.1} parent=112 // loop_header
        %s193 = sphi 0, %s197
        %p194 = scmp.ge.s32.totalorder %s193, 1
        %s198 = sphi %s180, %s180
        %s199 = sphi %s181, %s181
      $region116: #{tpu_custom_call.1} parent=112 // loop_header_branch
        %196 = sbr.rel (%p194) target = $region120
      $region117: #{tpu_custom_call.1} parent=112 // loop_body
        %v200 = vld [vmem:[%s198] sm:%s191]
        %201 = vst [vmem:[%s199] sm:%s191] %v200
      $region118: #{tpu_custom_call.1} parent=112 // loop_footer
        %s197 = sadd.s32 1, %s193
      $region119: #{tpu_custom_call.1} parent=112 // loop_footer_branch
        %192 = sbr.rel target = $region115
      $region120: #{tpu_custom_call.1} parent=112 // loop_exit
        _
    $region113: #{tpu_custom_call.1} parent=1 // pred_fallthru
      _
    // Predicated region
    $region132: #{tpu_custom_call.1} parent=1 // pred_check
      _
    $region133: #{tpu_custom_call.1} parent=1 // pred_check_branch
      %225 = sbr.rel (0) target = $region135
    $region134: #{tpu_custom_call.1} parent=1 // pred_region
      %226 = vsyncadd %s182, 16
    $region135: #{tpu_custom_call.1} parent=1 // pred_fallthru
      _
    %s227 = sld [smem:[#allocation4 + $0x3]]
    %s228 = scalar_lea.vmem %s6, %s227
    %s229 = scalar_lea.vmem [#allocation2], 3
    %s230 = scalar_lea.sflag [#allocation3], 3
    %p232 = scmp.lt.u32.totalorder 1, 8
    %p233 = pneg %p232
    // Predicated region
    $region136: #{tpu_custom_call.1} parent=1 // pred_check
      _
    $region137: #{tpu_custom_call.1} parent=1 // pred_check_branch
      %235 = sbr.rel (%p232) target = $region139
    $region138: #{tpu_custom_call.1} parent=1 // pred_region
      %s250 = sand.u32 1, 7
      %p251 = scmp.eq.s32.totalorder %s250, 0
      %p252 = pneg %p251
      // Predicated region
      $region151: #{tpu_custom_call.1} parent=138 // pred_check
        _
      $region152: #{tpu_custom_call.1} parent=138 // pred_check_branch
        %254 = sbr.rel (%p251) target = $region154
      $region153: #{tpu_custom_call.1} parent=138 // pred_region
        %s255 = sand.u32 1, 7
        %s256 = ssub.s32 1, %s255
        %s257 = scalar_lea.vmem %s228, %s256
        %s258 = ssub.s32 1, %s255
        %s259 = scalar_lea.vmem %s229, %s258 [#allocation2]
        %s260 = sshllo.u32 0, %s255
        loop: start=0, step=1, limit=1
        $region155: #{tpu_custom_call.1} parent=153 // loop_pre_header
          _
        $region156: #{tpu_custom_call.1} parent=153 // loop_header
          %s262 = sphi 0, %s266
          %p263 = scmp.ge.s32.totalorder %s262, 1
          %s267 = sphi %s257, %s257
          %s268 = sphi %s259, %s259
        $region157: #{tpu_custom_call.1} parent=153 // loop_header_branch
          %265 = sbr.rel (%p263) target = $region161
        $region158: #{tpu_custom_call.1} parent=153 // loop_body
          %v269 = vld [vmem:[%s267] sm:%s260]
          %270 = vst [vmem:[%s268] sm:%s260] %v269
        $region159: #{tpu_custom_call.1} parent=153 // loop_footer
          %s266 = sadd.s32 1, %s262
        $region160: #{tpu_custom_call.1} parent=153 // loop_footer_branch
          %261 = sbr.rel target = $region156
        $region161: #{tpu_custom_call.1} parent=153 // loop_exit
          _
      $region154: #{tpu_custom_call.1} parent=138 // pred_fallthru
        _
    $region139: #{tpu_custom_call.1} parent=1 // pred_fallthru
      _
    // Predicated region
    $region140: #{tpu_custom_call.1} parent=1 // pred_check
      %p236 = pneg %p232
    $region141: #{tpu_custom_call.1} parent=1 // pred_check_branch
      %238 = sbr.rel (%p236) target = $region143
    $region142: #{tpu_custom_call.1} parent=1 // pred_region
      %s239 = sshllo.u32 0, 1
      loop: start=0, step=1, limit=1
      $region144: #{tpu_custom_call.1} parent=142 // loop_pre_header
        _
      $region145: #{tpu_custom_call.1} parent=142 // loop_header
        %s241 = sphi 0, %s245
        %p242 = scmp.ge.s32.totalorder %s241, 1
        %s246 = sphi %s228, %s228
        %s247 = sphi %s229, %s229
      $region146: #{tpu_custom_call.1} parent=142 // loop_header_branch
        %244 = sbr.rel (%p242) target = $region150
      $region147: #{tpu_custom_call.1} parent=142 // loop_body
        %v248 = vld [vmem:[%s246] sm:%s239]
        %249 = vst [vmem:[%s247] sm:%s239] %v248
      $region148: #{tpu_custom_call.1} parent=142 // loop_footer
        %s245 = sadd.s32 1, %s241
      $region149: #{tpu_custom_call.1} parent=142 // loop_footer_branch
        %240 = sbr.rel target = $region145
      $region150: #{tpu_custom_call.1} parent=142 // loop_exit
        _
    $region143: #{tpu_custom_call.1} parent=1 // pred_fallthru
      _
    // Predicated region
    $region162: #{tpu_custom_call.1} parent=1 // pred_check
      _
    $region163: #{tpu_custom_call.1} parent=1 // pred_check_branch
      %273 = sbr.rel (0) target = $region165
    $region164: #{tpu_custom_call.1} parent=1 // pred_region
      %274 = vsyncadd %s230, 16
    $region165: #{tpu_custom_call.1} parent=1 // pred_fallthru
      _
    %s275 = sld [smem:[#allocation4 + $0x4]]
    %s276 = scalar_lea.vmem %s6, %s275
    %s277 = scalar_lea.vmem [#allocation2], 4
    %s278 = scalar_lea.sflag [#allocation3], 4
    %p280 = scmp.lt.u32.totalorder 1, 8
    %p281 = pneg %p280
    // Predicated region
    $region166: #{tpu_custom_call.1} parent=1 // pred_check
      _
    $region167: #{tpu_custom_call.1} parent=1 // pred_check_branch
      %283 = sbr.rel (%p280) target = $region169
    $region168: #{tpu_custom_call.1} parent=1 // pred_region
      %s298 = sand.u32 1, 7
      %p299 = scmp.eq.s32.totalorder %s298, 0
      %p300 = pneg %p299
      // Predicated region
      $region181: #{tpu_custom_call.1} parent=168 // pred_check
        _
      $region182: #{tpu_custom_call.1} parent=168 // pred_check_branch
        %302 = sbr.rel (%p299) target = $region184
      $region183: #{tpu_custom_call.1} parent=168 // pred_region
        %s303 = sand.u32 1, 7
        %s304 = ssub.s32 1, %s303
        %s305 = scalar_lea.vmem %s276, %s304
        %s306 = ssub.s32 1, %s303
        %s307 = scalar_lea.vmem %s277, %s306 [#allocation2]
        %s308 = sshllo.u32 0, %s303
        loop: start=0, step=1, limit=1
        $region185: #{tpu_custom_call.1} parent=183 // loop_pre_header
          _
        $region186: #{tpu_custom_call.1} parent=183 // loop_header
          %s310 = sphi 0, %s314
          %p311 = scmp.ge.s32.totalorder %s310, 1
          %s315 = sphi %s305, %s305
          %s316 = sphi %s307, %s307
        $region187: #{tpu_custom_call.1} parent=183 // loop_header_branch
          %313 = sbr.rel (%p311) target = $region191
        $region188: #{tpu_custom_call.1} parent=183 // loop_body
          %v317 = vld [vmem:[%s315] sm:%s308]
          %318 = vst [vmem:[%s316] sm:%s308] %v317
        $region189: #{tpu_custom_call.1} parent=183 // loop_footer
          %s314 = sadd.s32 1, %s310
        $region190: #{tpu_custom_call.1} parent=183 // loop_footer_branch
          %309 = sbr.rel target = $region186
        $region191: #{tpu_custom_call.1} parent=183 // loop_exit
          _
      $region184: #{tpu_custom_call.1} parent=168 // pred_fallthru
        _
    $region169: #{tpu_custom_call.1} parent=1 // pred_fallthru
      _
    // Predicated region
    $region170: #{tpu_custom_call.1} parent=1 // pred_check
      %p284 = pneg %p280
    $region171: #{tpu_custom_call.1} parent=1 // pred_check_branch
      %286 = sbr.rel (%p284) target = $region173
    $region172: #{tpu_custom_call.1} parent=1 // pred_region
      %s287 = sshllo.u32 0, 1
      loop: start=0, step=1, limit=1
      $region174: #{tpu_custom_call.1} parent=172 // loop_pre_header
        _
      $region175: #{tpu_custom_call.1} parent=172 // loop_header
        %s289 = sphi 0, %s293
        %p290 = scmp.ge.s32.totalorder %s289, 1
        %s294 = sphi %s276, %s276
        %s295 = sphi %s277, %s277
      $region176: #{tpu_custom_call.1} parent=172 // loop_header_branch
        %292 = sbr.rel (%p290) target = $region180
      $region177: #{tpu_custom_call.1} parent=172 // loop_body
        %v296 = vld [vmem:[%s294] sm:%s287]
        %297 = vst [vmem:[%s295] sm:%s287] %v296
      $region178: #{tpu_custom_call.1} parent=172 // loop_footer
        %s293 = sadd.s32 1, %s289
      $region179: #{tpu_custom_call.1} parent=172 // loop_footer_branch
        %288 = sbr.rel target = $region175
      $region180: #{tpu_custom_call.1} parent=172 // loop_exit
        _
    $region173: #{tpu_custom_call.1} parent=1 // pred_fallthru
      _
    // Predicated region
    $region192: #{tpu_custom_call.1} parent=1 // pred_check
      _
    $region193: #{tpu_custom_call.1} parent=1 // pred_check_branch
      %321 = sbr.rel (0) target = $region195
    $region194: #{tpu_custom_call.1} parent=1 // pred_region
      %322 = vsyncadd %s278, 16
    $region195: #{tpu_custom_call.1} parent=1 // pred_fallthru
      _
    %s323 = sld [smem:[#allocation4 + $0x5]]
    %s324 = scalar_lea.vmem %s6, %s323
    %s325 = scalar_lea.vmem [#allocation2], 5
    %s326 = scalar_lea.sflag [#allocation3], 5
    %p328 = scmp.lt.u32.totalorder 1, 8
    %p329 = pneg %p328
    // Predicated region
    $region196: #{tpu_custom_call.1} parent=1 // pred_check
      _
    $region197: #{tpu_custom_call.1} parent=1 // pred_check_branch
      %331 = sbr.rel (%p328) target = $region199
    $region198: #{tpu_custom_call.1} parent=1 // pred_region
      %s346 = sand.u32 1, 7
      %p347 = scmp.eq.s32.totalorder %s346, 0
      %p348 = pneg %p347
      // Predicated region
      $region211: #{tpu_custom_call.1} parent=198 // pred_check
        _
      $region212: #{tpu_custom_call.1} parent=198 // pred_check_branch
        %350 = sbr.rel (%p347) target = $region214
      $region213: #{tpu_custom_call.1} parent=198 // pred_region
        %s351 = sand.u32 1, 7
        %s352 = ssub.s32 1, %s351
        %s353 = scalar_lea.vmem %s324, %s352
        %s354 = ssub.s32 1, %s351
        %s355 = scalar_lea.vmem %s325, %s354 [#allocation2]
        %s356 = sshllo.u32 0, %s351
        loop: start=0, step=1, limit=1
        $region215: #{tpu_custom_call.1} parent=213 // loop_pre_header
          _
        $region216: #{tpu_custom_call.1} parent=213 // loop_header
          %s358 = sphi 0, %s362
          %p359 = scmp.ge.s32.totalorder %s358, 1
          %s363 = sphi %s353, %s353
          %s364 = sphi %s355, %s355
        $region217: #{tpu_custom_call.1} parent=213 // loop_header_branch
          %361 = sbr.rel (%p359) target = $region221
        $region218: #{tpu_custom_call.1} parent=213 // loop_body
          %v365 = vld [vmem:[%s363] sm:%s356]
          %366 = vst [vmem:[%s364] sm:%s356] %v365
        $region219: #{tpu_custom_call.1} parent=213 // loop_footer
          %s362 = sadd.s32 1, %s358
        $region220: #{tpu_custom_call.1} parent=213 // loop_footer_branch
          %357 = sbr.rel target = $region216
        $region221: #{tpu_custom_call.1} parent=213 // loop_exit
          _
      $region214: #{tpu_custom_call.1} parent=198 // pred_fallthru
        _
    $region199: #{tpu_custom_call.1} parent=1 // pred_fallthru
      _
    // Predicated region
    $region200: #{tpu_custom_call.1} parent=1 // pred_check
      %p332 = pneg %p328
    $region201: #{tpu_custom_call.1} parent=1 // pred_check_branch
      %334 = sbr.rel (%p332) target = $region203
    $region202: #{tpu_custom_call.1} parent=1 // pred_region
      %s335 = sshllo.u32 0, 1
      loop: start=0, step=1, limit=1
      $region204: #{tpu_custom_call.1} parent=202 // loop_pre_header
        _
      $region205: #{tpu_custom_call.1} parent=202 // loop_header
        %s337 = sphi 0, %s341
        %p338 = scmp.ge.s32.totalorder %s337, 1
        %s342 = sphi %s324, %s324
        %s343 = sphi %s325, %s325
      $region206: #{tpu_custom_call.1} parent=202 // loop_header_branch
        %340 = sbr.rel (%p338) target = $region210
      $region207: #{tpu_custom_call.1} parent=202 // loop_body
        %v344 = vld [vmem:[%s342] sm:%s335]
        %345 = vst [vmem:[%s343] sm:%s335] %v344
      $region208: #{tpu_custom_call.1} parent=202 // loop_footer
        %s341 = sadd.s32 1, %s337
      $region209: #{tpu_custom_call.1} parent=202 // loop_footer_branch
        %336 = sbr.rel target = $region205
      $region210: #{tpu_custom_call.1} parent=202 // loop_exit
        _
    $region203: #{tpu_custom_call.1} parent=1 // pred_fallthru
      _
    // Predicated region
    $region222: #{tpu_custom_call.1} parent=1 // pred_check
      _
    $region223: #{tpu_custom_call.1} parent=1 // pred_check_branch
      %369 = sbr.rel (0) target = $region225
    $region224: #{tpu_custom_call.1} parent=1 // pred_region
      %370 = vsyncadd %s326, 16
    $region225: #{tpu_custom_call.1} parent=1 // pred_fallthru
      _
    %s371 = sld [smem:[#allocation4 + $0x6]]
    %s372 = scalar_lea.vmem %s6, %s371
    %s373 = scalar_lea.vmem [#allocation2], 6
    %s374 = scalar_lea.sflag [#allocation3], 6
    %p376 = scmp.lt.u32.totalorder 1, 8
    %p377 = pneg %p376
    // Predicated region
    $region226: #{tpu_custom_call.1} parent=1 // pred_check
      _
    $region227: #{tpu_custom_call.1} parent=1 // pred_check_branch
      %379 = sbr.rel (%p376) target = $region229
    $region228: #{tpu_custom_call.1} parent=1 // pred_region
      %s394 = sand.u32 1, 7
      %p395 = scmp.eq.s32.totalorder %s394, 0
      %p396 = pneg %p395
      // Predicated region
      $region241: #{tpu_custom_call.1} parent=228 // pred_check
        _
      $region242: #{tpu_custom_call.1} parent=228 // pred_check_branch
        %398 = sbr.rel (%p395) target = $region244
      $region243: #{tpu_custom_call.1} parent=228 // pred_region
        %s399 = sand.u32 1, 7
        %s400 = ssub.s32 1, %s399
        %s401 = scalar_lea.vmem %s372, %s400
        %s402 = ssub.s32 1, %s399
        %s403 = scalar_lea.vmem %s373, %s402 [#allocation2]
        %s404 = sshllo.u32 0, %s399
        loop: start=0, step=1, limit=1
        $region245: #{tpu_custom_call.1} parent=243 // loop_pre_header
          _
        $region246: #{tpu_custom_call.1} parent=243 // loop_header
          %s406 = sphi 0, %s410
          %p407 = scmp.ge.s32.totalorder %s406, 1
          %s411 = sphi %s401, %s401
          %s412 = sphi %s403, %s403
        $region247: #{tpu_custom_call.1} parent=243 // loop_header_branch
          %409 = sbr.rel (%p407) target = $region251
        $region248: #{tpu_custom_call.1} parent=243 // loop_body
          %v413 = vld [vmem:[%s411] sm:%s404]
          %414 = vst [vmem:[%s412] sm:%s404] %v413
        $region249: #{tpu_custom_call.1} parent=243 // loop_footer
          %s410 = sadd.s32 1, %s406
        $region250: #{tpu_custom_call.1} parent=243 // loop_footer_branch
          %405 = sbr.rel target = $region246
        $region251: #{tpu_custom_call.1} parent=243 // loop_exit
          _
      $region244: #{tpu_custom_call.1} parent=228 // pred_fallthru
        _
    $region229: #{tpu_custom_call.1} parent=1 // pred_fallthru
      _
    // Predicated region
    $region230: #{tpu_custom_call.1} parent=1 // pred_check
      %p380 = pneg %p376
    $region231: #{tpu_custom_call.1} parent=1 // pred_check_branch
      %382 = sbr.rel (%p380) target = $region233
    $region232: #{tpu_custom_call.1} parent=1 // pred_region
      %s383 = sshllo.u32 0, 1
      loop: start=0, step=1, limit=1
      $region234: #{tpu_custom_call.1} parent=232 // loop_pre_header
        _
      $region235: #{tpu_custom_call.1} parent=232 // loop_header
        %s385 = sphi 0, %s389
        %p386 = scmp.ge.s32.totalorder %s385, 1
        %s390 = sphi %s372, %s372
        %s391 = sphi %s373, %s373
      $region236: #{tpu_custom_call.1} parent=232 // loop_header_branch
        %388 = sbr.rel (%p386) target = $region240
      $region237: #{tpu_custom_call.1} parent=232 // loop_body
        %v392 = vld [vmem:[%s390] sm:%s383]
        %393 = vst [vmem:[%s391] sm:%s383] %v392
      $region238: #{tpu_custom_call.1} parent=232 // loop_footer
        %s389 = sadd.s32 1, %s385
      $region239: #{tpu_custom_call.1} parent=232 // loop_footer_branch
        %384 = sbr.rel target = $region235
      $region240: #{tpu_custom_call.1} parent=232 // loop_exit
        _
    $region233: #{tpu_custom_call.1} parent=1 // pred_fallthru
      _
    // Predicated region
    $region252: #{tpu_custom_call.1} parent=1 // pred_check
      _
    $region253: #{tpu_custom_call.1} parent=1 // pred_check_branch
      %417 = sbr.rel (0) target = $region255
    $region254: #{tpu_custom_call.1} parent=1 // pred_region
      %418 = vsyncadd %s374, 16
    $region255: #{tpu_custom_call.1} parent=1 // pred_fallthru
      _
    %s419 = sld [smem:[#allocation4 + $0x7]]
    %s420 = scalar_lea.vmem %s6, %s419
    %s421 = scalar_lea.vmem [#allocation2], 7
    %s422 = scalar_lea.sflag [#allocation3], 7
    %p424 = scmp.lt.u32.totalorder 1, 8
    %p425 = pneg %p424
    // Predicated region
    $region256: #{tpu_custom_call.1} parent=1 // pred_check
      _
    $region257: #{tpu_custom_call.1} parent=1 // pred_check_branch
      %427 = sbr.rel (%p424) target = $region259
    $region258: #{tpu_custom_call.1} parent=1 // pred_region
      %s442 = sand.u32 1, 7
      %p443 = scmp.eq.s32.totalorder %s442, 0
      %p444 = pneg %p443
      // Predicated region
      $region271: #{tpu_custom_call.1} parent=258 // pred_check
        _
      $region272: #{tpu_custom_call.1} parent=258 // pred_check_branch
        %446 = sbr.rel (%p443) target = $region274
      $region273: #{tpu_custom_call.1} parent=258 // pred_region
        %s447 = sand.u32 1, 7
        %s448 = ssub.s32 1, %s447
        %s449 = scalar_lea.vmem %s420, %s448
        %s450 = ssub.s32 1, %s447
        %s451 = scalar_lea.vmem %s421, %s450 [#allocation2]
        %s452 = sshllo.u32 0, %s447
        loop: start=0, step=1, limit=1
        $region275: #{tpu_custom_call.1} parent=273 // loop_pre_header
          _
        $region276: #{tpu_custom_call.1} parent=273 // loop_header
          %s454 = sphi 0, %s458
          %p455 = scmp.ge.s32.totalorder %s454, 1
          %s459 = sphi %s449, %s449
          %s460 = sphi %s451, %s451
        $region277: #{tpu_custom_call.1} parent=273 // loop_header_branch
          %457 = sbr.rel (%p455) target = $region281
        $region278: #{tpu_custom_call.1} parent=273 // loop_body
          %v461 = vld [vmem:[%s459] sm:%s452]
          %462 = vst [vmem:[%s460] sm:%s452] %v461
        $region279: #{tpu_custom_call.1} parent=273 // loop_footer
          %s458 = sadd.s32 1, %s454
        $region280: #{tpu_custom_call.1} parent=273 // loop_footer_branch
          %453 = sbr.rel target = $region276
        $region281: #{tpu_custom_call.1} parent=273 // loop_exit
          _
      $region274: #{tpu_custom_call.1} parent=258 // pred_fallthru
        _
    $region259: #{tpu_custom_call.1} parent=1 // pred_fallthru
      _
    // Predicated region
    $region260: #{tpu_custom_call.1} parent=1 // pred_check
      %p428 = pneg %p424
    $region261: #{tpu_custom_call.1} parent=1 // pred_check_branch
      %430 = sbr.rel (%p428) target = $region263
    $region262: #{tpu_custom_call.1} parent=1 // pred_region
      %s431 = sshllo.u32 0, 1
      loop: start=0, step=1, limit=1
      $region264: #{tpu_custom_call.1} parent=262 // loop_pre_header
        _
      $region265: #{tpu_custom_call.1} parent=262 // loop_header
        %s433 = sphi 0, %s437
        %p434 = scmp.ge.s32.totalorder %s433, 1
        %s438 = sphi %s420, %s420
        %s439 = sphi %s421, %s421
      $region266: #{tpu_custom_call.1} parent=262 // loop_header_branch
        %436 = sbr.rel (%p434) target = $region270
      $region267: #{tpu_custom_call.1} parent=262 // loop_body
        %v440 = vld [vmem:[%s438] sm:%s431]
        %441 = vst [vmem:[%s439] sm:%s431] %v440
      $region268: #{tpu_custom_call.1} parent=262 // loop_footer
        %s437 = sadd.s32 1, %s433
      $region269: #{tpu_custom_call.1} parent=262 // loop_footer_branch
        %432 = sbr.rel target = $region265
      $region270: #{tpu_custom_call.1} parent=262 // loop_exit
        _
    $region263: #{tpu_custom_call.1} parent=1 // pred_fallthru
      _
    // Predicated region
    $region282: #{tpu_custom_call.1} parent=1 // pred_check
      _
    $region283: #{tpu_custom_call.1} parent=1 // pred_check_branch
      %465 = sbr.rel (0) target = $region285
    $region284: #{tpu_custom_call.1} parent=1 // pred_region
      %466 = vsyncadd %s422, 16
    $region285: #{tpu_custom_call.1} parent=1 // pred_fallthru
      _
    %s467 = sld [smem:[#allocation7]]
    %s468 = scalar_lea.vmem %s6, %s467
    %s469 = scalar_lea.vmem [#allocation2], 8
    %s470 = scalar_lea.sflag [#allocation3], 8
    %p472 = scmp.lt.u32.totalorder 1, 8
    %p473 = pneg %p472
    // Predicated region
    $region286: #{tpu_custom_call.1} parent=1 // pred_check
      _
    $region287: #{tpu_custom_call.1} parent=1 // pred_check_branch
      %475 = sbr.rel (%p472) target = $region289
    $region288: #{tpu_custom_call.1} parent=1 // pred_region
      %s490 = sand.u32 1, 7
      %p491 = scmp.eq.s32.totalorder %s490, 0
      %p492 = pneg %p491
      // Predicated region
      $region301: #{tpu_custom_call.1} parent=288 // pred_check
        _
      $region302: #{tpu_custom_call.1} parent=288 // pred_check_branch
        %494 = sbr.rel (%p491) target = $region304
      $region303: #{tpu_custom_call.1} parent=288 // pred_region
        %s495 = sand.u32 1, 7
        %s496 = ssub.s32 1, %s495
        %s497 = scalar_lea.vmem %s468, %s496
        %s498 = ssub.s32 1, %s495
        %s499 = scalar_lea.vmem %s469, %s498 [#allocation2]
        %s500 = sshllo.u32 0, %s495
        loop: start=0, step=1, limit=1
        $region305: #{tpu_custom_call.1} parent=303 // loop_pre_header
          _
        $region306: #{tpu_custom_call.1} parent=303 // loop_header
          %s502 = sphi 0, %s506
          %p503 = scmp.ge.s32.totalorder %s502, 1
          %s507 = sphi %s497, %s497
          %s508 = sphi %s499, %s499
        $region307: #{tpu_custom_call.1} parent=303 // loop_header_branch
          %505 = sbr.rel (%p503) target = $region311
        $region308: #{tpu_custom_call.1} parent=303 // loop_body
          %v509 = vld [vmem:[%s507] sm:%s500]
          %510 = vst [vmem:[%s508] sm:%s500] %v509
        $region309: #{tpu_custom_call.1} parent=303 // loop_footer
          %s506 = sadd.s32 1, %s502
        $region310: #{tpu_custom_call.1} parent=303 // loop_footer_branch
          %501 = sbr.rel target = $region306
        $region311: #{tpu_custom_call.1} parent=303 // loop_exit
          _
      $region304: #{tpu_custom_call.1} parent=288 // pred_fallthru
        _
    $region289: #{tpu_custom_call.1} parent=1 // pred_fallthru
      _
    // Predicated region
    $region290: #{tpu_custom_call.1} parent=1 // pred_check
      %p476 = pneg %p472
    $region291: #{tpu_custom_call.1} parent=1 // pred_check_branch
      %478 = sbr.rel (%p476) target = $region293
    $region292: #{tpu_custom_call.1} parent=1 // pred_region
      %s479 = sshllo.u32 0, 1
      loop: start=0, step=1, limit=1
      $region294: #{tpu_custom_call.1} parent=292 // loop_pre_header
        _
      $region295: #{tpu_custom_call.1} parent=292 // loop_header
        %s481 = sphi 0, %s485
        %p482 = scmp.ge.s32.totalorder %s481, 1
        %s486 = sphi %s468, %s468
        %s487 = sphi %s469, %s469
      $region296: #{tpu_custom_call.1} parent=292 // loop_header_branch
        %484 = sbr.rel (%p482) target = $region300
      $region297: #{tpu_custom_call.1} parent=292 // loop_body
        %v488 = vld [vmem:[%s486] sm:%s479]
        %489 = vst [vmem:[%s487] sm:%s479] %v488
      $region298: #{tpu_custom_call.1} parent=292 // loop_footer
        %s485 = sadd.s32 1, %s481
      $region299: #{tpu_custom_call.1} parent=292 // loop_footer_branch
        %480 = sbr.rel target = $region295
      $region300: #{tpu_custom_call.1} parent=292 // loop_exit
        _
    $region293: #{tpu_custom_call.1} parent=1 // pred_fallthru
      _
    // Predicated region
    $region312: #{tpu_custom_call.1} parent=1 // pred_check
      _
    $region313: #{tpu_custom_call.1} parent=1 // pred_check_branch
      %513 = sbr.rel (0) target = $region315
    $region314: #{tpu_custom_call.1} parent=1 // pred_region
      %514 = vsyncadd %s470, 16
    $region315: #{tpu_custom_call.1} parent=1 // pred_fallthru
      _
    %s515 = sld [smem:[#allocation7 + $0x1]]
    %s516 = scalar_lea.vmem %s6, %s515
    %s517 = scalar_lea.vmem [#allocation2], 9
    %s518 = scalar_lea.sflag [#allocation3], 9
    %p520 = scmp.lt.u32.totalorder 1, 8
    %p521 = pneg %p520
    // Predicated region
    $region316: #{tpu_custom_call.1} parent=1 // pred_check
      _
    $region317: #{tpu_custom_call.1} parent=1 // pred_check_branch
      %523 = sbr.rel (%p520) target = $region319
    $region318: #{tpu_custom_call.1} parent=1 // pred_region
      %s538 = sand.u32 1, 7
      %p539 = scmp.eq.s32.totalorder %s538, 0
      %p540 = pneg %p539
      // Predicated region
      $region331: #{tpu_custom_call.1} parent=318 // pred_check
        _
      $region332: #{tpu_custom_call.1} parent=318 // pred_check_branch
        %542 = sbr.rel (%p539) target = $region334
      $region333: #{tpu_custom_call.1} parent=318 // pred_region
        %s543 = sand.u32 1, 7
        %s544 = ssub.s32 1, %s543
        %s545 = scalar_lea.vmem %s516, %s544
        %s546 = ssub.s32 1, %s543
        %s547 = scalar_lea.vmem %s517, %s546 [#allocation2]
        %s548 = sshllo.u32 0, %s543
        loop: start=0, step=1, limit=1
        $region335: #{tpu_custom_call.1} parent=333 // loop_pre_header
          _
        $region336: #{tpu_custom_call.1} parent=333 // loop_header
          %s550 = sphi 0, %s554
          %p551 = scmp.ge.s32.totalorder %s550, 1
          %s555 = sphi %s545, %s545
          %s556 = sphi %s547, %s547
        $region337: #{tpu_custom_call.1} parent=333 // loop_header_branch
          %553 = sbr.rel (%p551) target = $region341
        $region338: #{tpu_custom_call.1} parent=333 // loop_body
          %v557 = vld [vmem:[%s555] sm:%s548]
          %558 = vst [vmem:[%s556] sm:%s548] %v557
        $region339: #{tpu_custom_call.1} parent=333 // loop_footer
          %s554 = sadd.s32 1, %s550
        $region340: #{tpu_custom_call.1} parent=333 // loop_footer_branch
          %549 = sbr.rel target = $region336
        $region341: #{tpu_custom_call.1} parent=333 // loop_exit
          _
      $region334: #{tpu_custom_call.1} parent=318 // pred_fallthru
        _
    $region319: #{tpu_custom_call.1} parent=1 // pred_fallthru
      _
    // Predicated region
    $region320: #{tpu_custom_call.1} parent=1 // pred_check
      %p524 = pneg %p520
    $region321: #{tpu_custom_call.1} parent=1 // pred_check_branch
      %526 = sbr.rel (%p524) target = $region323
    $region322: #{tpu_custom_call.1} parent=1 // pred_region
      %s527 = sshllo.u32 0, 1
      loop: start=0, step=1, limit=1
      $region324: #{tpu_custom_call.1} parent=322 // loop_pre_header
        _
      $region325: #{tpu_custom_call.1} parent=322 // loop_header
        %s529 = sphi 0, %s533
        %p530 = scmp.ge.s32.totalorder %s529, 1
        %s534 = sphi %s516, %s516
        %s535 = sphi %s517, %s517
      $region326: #{tpu_custom_call.1} parent=322 // loop_header_branch
        %532 = sbr.rel (%p530) target = $region330
      $region327: #{tpu_custom_call.1} parent=322 // loop_body
        %v536 = vld [vmem:[%s534] sm:%s527]
        %537 = vst [vmem:[%s535] sm:%s527] %v536
      $region328: #{tpu_custom_call.1} parent=322 // loop_footer
        %s533 = sadd.s32 1, %s529
      $region329: #{tpu_custom_call.1} parent=322 // loop_footer_branch
        %528 = sbr.rel target = $region325
      $region330: #{tpu_custom_call.1} parent=322 // loop_exit
        _
    $region323: #{tpu_custom_call.1} parent=1 // pred_fallthru
      _
    // Predicated region
    $region342: #{tpu_custom_call.1} parent=1 // pred_check
      _
    $region343: #{tpu_custom_call.1} parent=1 // pred_check_branch
      %561 = sbr.rel (0) target = $region345
    $region344: #{tpu_custom_call.1} parent=1 // pred_region
      %562 = vsyncadd %s518, 16
    $region345: #{tpu_custom_call.1} parent=1 // pred_fallthru
      _
    %s563 = sld [smem:[#allocation7 + $0x2]]
    %s564 = scalar_lea.vmem %s6, %s563
    %s565 = scalar_lea.vmem [#allocation2], 10
    %s566 = scalar_lea.sflag [#allocation3], 10
    %p568 = scmp.lt.u32.totalorder 1, 8
    %p569 = pneg %p568
    // Predicated region
    $region346: #{tpu_custom_call.1} parent=1 // pred_check
      _
    $region347: #{tpu_custom_call.1} parent=1 // pred_check_branch
      %571 = sbr.rel (%p568) target = $region349
    $region348: #{tpu_custom_call.1} parent=1 // pred_region
      %s586 = sand.u32 1, 7
      %p587 = scmp.eq.s32.totalorder %s586, 0
      %p588 = pneg %p587
      // Predicated region
      $region361: #{tpu_custom_call.1} parent=348 // pred_check
        _
      $region362: #{tpu_custom_call.1} parent=348 // pred_check_branch
        %590 = sbr.rel (%p587) target = $region364
      $region363: #{tpu_custom_call.1} parent=348 // pred_region
        %s591 = sand.u32 1, 7
        %s592 = ssub.s32 1, %s591
        %s593 = scalar_lea.vmem %s564, %s592
        %s594 = ssub.s32 1, %s591
        %s595 = scalar_lea.vmem %s565, %s594 [#allocation2]
        %s596 = sshllo.u32 0, %s591
        loop: start=0, step=1, limit=1
        $region365: #{tpu_custom_call.1} parent=363 // loop_pre_header
          _
        $region366: #{tpu_custom_call.1} parent=363 // loop_header
          %s598 = sphi 0, %s602
          %p599 = scmp.ge.s32.totalorder %s598, 1
          %s603 = sphi %s593, %s593
          %s604 = sphi %s595, %s595
        $region367: #{tpu_custom_call.1} parent=363 // loop_header_branch
          %601 = sbr.rel (%p599) target = $region371
        $region368: #{tpu_custom_call.1} parent=363 // loop_body
          %v605 = vld [vmem:[%s603] sm:%s596]
          %606 = vst [vmem:[%s604] sm:%s596] %v605
        $region369: #{tpu_custom_call.1} parent=363 // loop_footer
          %s602 = sadd.s32 1, %s598
        $region370: #{tpu_custom_call.1} parent=363 // loop_footer_branch
          %597 = sbr.rel target = $region366
        $region371: #{tpu_custom_call.1} parent=363 // loop_exit
          _
      $region364: #{tpu_custom_call.1} parent=348 // pred_fallthru
        _
    $region349: #{tpu_custom_call.1} parent=1 // pred_fallthru
      _
    // Predicated region
    $region350: #{tpu_custom_call.1} parent=1 // pred_check
      %p572 = pneg %p568
    $region351: #{tpu_custom_call.1} parent=1 // pred_check_branch
      %574 = sbr.rel (%p572) target = $region353
    $region352: #{tpu_custom_call.1} parent=1 // pred_region
      %s575 = sshllo.u32 0, 1
      loop: start=0, step=1, limit=1
      $region354: #{tpu_custom_call.1} parent=352 // loop_pre_header
        _
      $region355: #{tpu_custom_call.1} parent=352 // loop_header
        %s577 = sphi 0, %s581
        %p578 = scmp.ge.s32.totalorder %s577, 1
        %s582 = sphi %s564, %s564
        %s583 = sphi %s565, %s565
      $region356: #{tpu_custom_call.1} parent=352 // loop_header_branch
        %580 = sbr.rel (%p578) target = $region360
      $region357: #{tpu_custom_call.1} parent=352 // loop_body
        %v584 = vld [vmem:[%s582] sm:%s575]
        %585 = vst [vmem:[%s583] sm:%s575] %v584
      $region358: #{tpu_custom_call.1} parent=352 // loop_footer
        %s581 = sadd.s32 1, %s577
      $region359: #{tpu_custom_call.1} parent=352 // loop_footer_branch
        %576 = sbr.rel target = $region355
      $region360: #{tpu_custom_call.1} parent=352 // loop_exit
        _
    $region353: #{tpu_custom_call.1} parent=1 // pred_fallthru
      _
    // Predicated region
    $region372: #{tpu_custom_call.1} parent=1 // pred_check
      _
    $region373: #{tpu_custom_call.1} parent=1 // pred_check_branch
      %609 = sbr.rel (0) target = $region375
    $region374: #{tpu_custom_call.1} parent=1 // pred_region
      %610 = vsyncadd %s566, 16
    $region375: #{tpu_custom_call.1} parent=1 // pred_fallthru
      _
    %s611 = sld [smem:[#allocation7 + $0x3]]
    %s612 = scalar_lea.vmem %s6, %s611
    %s613 = scalar_lea.vmem [#allocation2], 11
    %s614 = scalar_lea.sflag [#allocation3], 11
    %p616 = scmp.lt.u32.totalorder 1, 8
    %p617 = pneg %p616
    // Predicated region
    $region376: #{tpu_custom_call.1} parent=1 // pred_check
      _
    $region377: #{tpu_custom_call.1} parent=1 // pred_check_branch
      %619 = sbr.rel (%p616) target = $region379
    $region378: #{tpu_custom_call.1} parent=1 // pred_region
      %s634 = sand.u32 1, 7
      %p635 = scmp.eq.s32.totalorder %s634, 0
      %p636 = pneg %p635
      // Predicated region
      $region391: #{tpu_custom_call.1} parent=378 // pred_check
        _
      $region392: #{tpu_custom_call.1} parent=378 // pred_check_branch
        %638 = sbr.rel (%p635) target = $region394
      $region393: #{tpu_custom_call.1} parent=378 // pred_region
        %s639 = sand.u32 1, 7
        %s640 = ssub.s32 1, %s639
        %s641 = scalar_lea.vmem %s612, %s640
        %s642 = ssub.s32 1, %s639
        %s643 = scalar_lea.vmem %s613, %s642 [#allocation2]
        %s644 = sshllo.u32 0, %s639
        loop: start=0, step=1, limit=1
        $region395: #{tpu_custom_call.1} parent=393 // loop_pre_header
          _
        $region396: #{tpu_custom_call.1} parent=393 // loop_header
          %s646 = sphi 0, %s650
          %p647 = scmp.ge.s32.totalorder %s646, 1
          %s651 = sphi %s641, %s641
          %s652 = sphi %s643, %s643
        $region397: #{tpu_custom_call.1} parent=393 // loop_header_branch
          %649 = sbr.rel (%p647) target = $region401
        $region398: #{tpu_custom_call.1} parent=393 // loop_body
          %v653 = vld [vmem:[%s651] sm:%s644]
          %654 = vst [vmem:[%s652] sm:%s644] %v653
        $region399: #{tpu_custom_call.1} parent=393 // loop_footer
          %s650 = sadd.s32 1, %s646
        $region400: #{tpu_custom_call.1} parent=393 // loop_footer_branch
          %645 = sbr.rel target = $region396
        $region401: #{tpu_custom_call.1} parent=393 // loop_exit
          _
      $region394: #{tpu_custom_call.1} parent=378 // pred_fallthru
        _
    $region379: #{tpu_custom_call.1} parent=1 // pred_fallthru
      _
    // Predicated region
    $region380: #{tpu_custom_call.1} parent=1 // pred_check
      %p620 = pneg %p616
    $region381: #{tpu_custom_call.1} parent=1 // pred_check_branch
      %622 = sbr.rel (%p620) target = $region383
    $region382: #{tpu_custom_call.1} parent=1 // pred_region
      %s623 = sshllo.u32 0, 1
      loop: start=0, step=1, limit=1
      $region384: #{tpu_custom_call.1} parent=382 // loop_pre_header
        _
      $region385: #{tpu_custom_call.1} parent=382 // loop_header
        %s625 = sphi 0, %s629
        %p626 = scmp.ge.s32.totalorder %s625, 1
        %s630 = sphi %s612, %s612
        %s631 = sphi %s613, %s613
      $region386: #{tpu_custom_call.1} parent=382 // loop_header_branch
        %628 = sbr.rel (%p626) target = $region390
      $region387: #{tpu_custom_call.1} parent=382 // loop_body
        %v632 = vld [vmem:[%s630] sm:%s623]
        %633 = vst [vmem:[%s631] sm:%s623] %v632
      $region388: #{tpu_custom_call.1} parent=382 // loop_footer
        %s629 = sadd.s32 1, %s625
      $region389: #{tpu_custom_call.1} parent=382 // loop_footer_branch
        %624 = sbr.rel target = $region385
      $region390: #{tpu_custom_call.1} parent=382 // loop_exit
        _
    $region383: #{tpu_custom_call.1} parent=1 // pred_fallthru
      _
    // Predicated region
    $region402: #{tpu_custom_call.1} parent=1 // pred_check
      _
    $region403: #{tpu_custom_call.1} parent=1 // pred_check_branch
      %657 = sbr.rel (0) target = $region405
    $region404: #{tpu_custom_call.1} parent=1 // pred_region
      %658 = vsyncadd %s614, 16
    $region405: #{tpu_custom_call.1} parent=1 // pred_fallthru
      _
    %s659 = sld [smem:[#allocation7 + $0x4]]
    %s660 = scalar_lea.vmem %s6, %s659
    %s661 = scalar_lea.vmem [#allocation2], 12
    %s662 = scalar_lea.sflag [#allocation3], 12
    %p664 = scmp.lt.u32.totalorder 1, 8
    %p665 = pneg %p664
    // Predicated region
    $region406: #{tpu_custom_call.1} parent=1 // pred_check
      _
    $region407: #{tpu_custom_call.1} parent=1 // pred_check_branch
      %667 = sbr.rel (%p664) target = $region409
    $region408: #{tpu_custom_call.1} parent=1 // pred_region
      %s682 = sand.u32 1, 7
      %p683 = scmp.eq.s32.totalorder %s682, 0
      %p684 = pneg %p683
      // Predicated region
      $region421: #{tpu_custom_call.1} parent=408 // pred_check
        _
      $region422: #{tpu_custom_call.1} parent=408 // pred_check_branch
        %686 = sbr.rel (%p683) target = $region424
      $region423: #{tpu_custom_call.1} parent=408 // pred_region
        %s687 = sand.u32 1, 7
        %s688 = ssub.s32 1, %s687
        %s689 = scalar_lea.vmem %s660, %s688
        %s690 = ssub.s32 1, %s687
        %s691 = scalar_lea.vmem %s661, %s690 [#allocation2]
        %s692 = sshllo.u32 0, %s687
        loop: start=0, step=1, limit=1
        $region425: #{tpu_custom_call.1} parent=423 // loop_pre_header
          _
        $region426: #{tpu_custom_call.1} parent=423 // loop_header
          %s694 = sphi 0, %s698
          %p695 = scmp.ge.s32.totalorder %s694, 1
          %s699 = sphi %s689, %s689
          %s700 = sphi %s691, %s691
        $region427: #{tpu_custom_call.1} parent=423 // loop_header_branch
          %697 = sbr.rel (%p695) target = $region431
        $region428: #{tpu_custom_call.1} parent=423 // loop_body
          %v701 = vld [vmem:[%s699] sm:%s692]
          %702 = vst [vmem:[%s700] sm:%s692] %v701
        $region429: #{tpu_custom_call.1} parent=423 // loop_footer
          %s698 = sadd.s32 1, %s694
        $region430: #{tpu_custom_call.1} parent=423 // loop_footer_branch
          %693 = sbr.rel target = $region426
        $region431: #{tpu_custom_call.1} parent=423 // loop_exit
          _
      $region424: #{tpu_custom_call.1} parent=408 // pred_fallthru
        _
    $region409: #{tpu_custom_call.1} parent=1 // pred_fallthru
      _
    // Predicated region
    $region410: #{tpu_custom_call.1} parent=1 // pred_check
      %p668 = pneg %p664
    $region411: #{tpu_custom_call.1} parent=1 // pred_check_branch
      %670 = sbr.rel (%p668) target = $region413
    $region412: #{tpu_custom_call.1} parent=1 // pred_region
      %s671 = sshllo.u32 0, 1
      loop: start=0, step=1, limit=1
      $region414: #{tpu_custom_call.1} parent=412 // loop_pre_header
        _
      $region415: #{tpu_custom_call.1} parent=412 // loop_header
        %s673 = sphi 0, %s677
        %p674 = scmp.ge.s32.totalorder %s673, 1
        %s678 = sphi %s660, %s660
        %s679 = sphi %s661, %s661
      $region416: #{tpu_custom_call.1} parent=412 // loop_header_branch
        %676 = sbr.rel (%p674) target = $region420
      $region417: #{tpu_custom_call.1} parent=412 // loop_body
        %v680 = vld [vmem:[%s678] sm:%s671]
        %681 = vst [vmem:[%s679] sm:%s671] %v680
      $region418: #{tpu_custom_call.1} parent=412 // loop_footer
        %s677 = sadd.s32 1, %s673
      $region419: #{tpu_custom_call.1} parent=412 // loop_footer_branch
        %672 = sbr.rel target = $region415
      $region420: #{tpu_custom_call.1} parent=412 // loop_exit
        _
    $region413: #{tpu_custom_call.1} parent=1 // pred_fallthru
      _
    // Predicated region
    $region432: #{tpu_custom_call.1} parent=1 // pred_check
      _
    $region433: #{tpu_custom_call.1} parent=1 // pred_check_branch
      %705 = sbr.rel (0) target = $region435
    $region434: #{tpu_custom_call.1} parent=1 // pred_region
      %706 = vsyncadd %s662, 16
    $region435: #{tpu_custom_call.1} parent=1 // pred_fallthru
      _
    %s707 = sld [smem:[#allocation7 + $0x5]]
    %s708 = scalar_lea.vmem %s6, %s707
    %s709 = scalar_lea.vmem [#allocation2], 13
    %s710 = scalar_lea.sflag [#allocation3], 13
    %p712 = scmp.lt.u32.totalorder 1, 8
    %p713 = pneg %p712
    // Predicated region
    $region436: #{tpu_custom_call.1} parent=1 // pred_check
      _
    $region437: #{tpu_custom_call.1} parent=1 // pred_check_branch
      %715 = sbr.rel (%p712) target = $region439
    $region438: #{tpu_custom_call.1} parent=1 // pred_region
      %s730 = sand.u32 1, 7
      %p731 = scmp.eq.s32.totalorder %s730, 0
      %p732 = pneg %p731
      // Predicated region
      $region451: #{tpu_custom_call.1} parent=438 // pred_check
        _
      $region452: #{tpu_custom_call.1} parent=438 // pred_check_branch
        %734 = sbr.rel (%p731) target = $region454
      $region453: #{tpu_custom_call.1} parent=438 // pred_region
        %s735 = sand.u32 1, 7
        %s736 = ssub.s32 1, %s735
        %s737 = scalar_lea.vmem %s708, %s736
        %s738 = ssub.s32 1, %s735
        %s739 = scalar_lea.vmem %s709, %s738 [#allocation2]
        %s740 = sshllo.u32 0, %s735
        loop: start=0, step=1, limit=1
        $region455: #{tpu_custom_call.1} parent=453 // loop_pre_header
          _
        $region456: #{tpu_custom_call.1} parent=453 // loop_header
          %s742 = sphi 0, %s746
          %p743 = scmp.ge.s32.totalorder %s742, 1
          %s747 = sphi %s737, %s737
          %s748 = sphi %s739, %s739
        $region457: #{tpu_custom_call.1} parent=453 // loop_header_branch
          %745 = sbr.rel (%p743) target = $region461
        $region458: #{tpu_custom_call.1} parent=453 // loop_body
          %v749 = vld [vmem:[%s747] sm:%s740]
          %750 = vst [vmem:[%s748] sm:%s740] %v749
        $region459: #{tpu_custom_call.1} parent=453 // loop_footer
          %s746 = sadd.s32 1, %s742
        $region460: #{tpu_custom_call.1} parent=453 // loop_footer_branch
          %741 = sbr.rel target = $region456
        $region461: #{tpu_custom_call.1} parent=453 // loop_exit
          _
      $region454: #{tpu_custom_call.1} parent=438 // pred_fallthru
        _
    $region439: #{tpu_custom_call.1} parent=1 // pred_fallthru
      _
    // Predicated region
    $region440: #{tpu_custom_call.1} parent=1 // pred_check
      %p716 = pneg %p712
    $region441: #{tpu_custom_call.1} parent=1 // pred_check_branch
      %718 = sbr.rel (%p716) target = $region443
    $region442: #{tpu_custom_call.1} parent=1 // pred_region
      %s719 = sshllo.u32 0, 1
      loop: start=0, step=1, limit=1
      $region444: #{tpu_custom_call.1} parent=442 // loop_pre_header
        _
      $region445: #{tpu_custom_call.1} parent=442 // loop_header
        %s721 = sphi 0, %s725
        %p722 = scmp.ge.s32.totalorder %s721, 1
        %s726 = sphi %s708, %s708
        %s727 = sphi %s709, %s709
      $region446: #{tpu_custom_call.1} parent=442 // loop_header_branch
        %724 = sbr.rel (%p722) target = $region450
      $region447: #{tpu_custom_call.1} parent=442 // loop_body
        %v728 = vld [vmem:[%s726] sm:%s719]
        %729 = vst [vmem:[%s727] sm:%s719] %v728
      $region448: #{tpu_custom_call.1} parent=442 // loop_footer
        %s725 = sadd.s32 1, %s721
      $region449: #{tpu_custom_call.1} parent=442 // loop_footer_branch
        %720 = sbr.rel target = $region445
      $region450: #{tpu_custom_call.1} parent=442 // loop_exit
        _
    $region443: #{tpu_custom_call.1} parent=1 // pred_fallthru
      _
    // Predicated region
    $region462: #{tpu_custom_call.1} parent=1 // pred_check
      _
    $region463: #{tpu_custom_call.1} parent=1 // pred_check_branch
      %753 = sbr.rel (0) target = $region465
    $region464: #{tpu_custom_call.1} parent=1 // pred_region
      %754 = vsyncadd %s710, 16
    $region465: #{tpu_custom_call.1} parent=1 // pred_fallthru
      _
    %s755 = sld [smem:[#allocation7 + $0x6]]
    %s756 = scalar_lea.vmem %s6, %s755
    %s757 = scalar_lea.vmem [#allocation2], 14
    %s758 = scalar_lea.sflag [#allocation3], 14
    %p760 = scmp.lt.u32.totalorder 1, 8
    %p761 = pneg %p760
    // Predicated region
    $region466: #{tpu_custom_call.1} parent=1 // pred_check
      _
    $region467: #{tpu_custom_call.1} parent=1 // pred_check_branch
      %763 = sbr.rel (%p760) target = $region469
    $region468: #{tpu_custom_call.1} parent=1 // pred_region
      %s778 = sand.u32 1, 7
      %p779 = scmp.eq.s32.totalorder %s778, 0
      %p780 = pneg %p779
      // Predicated region
      $region481: #{tpu_custom_call.1} parent=468 // pred_check
        _
      $region482: #{tpu_custom_call.1} parent=468 // pred_check_branch
        %782 = sbr.rel (%p779) target = $region484
      $region483: #{tpu_custom_call.1} parent=468 // pred_region
        %s783 = sand.u32 1, 7
        %s784 = ssub.s32 1, %s783
        %s785 = scalar_lea.vmem %s756, %s784
        %s786 = ssub.s32 1, %s783
        %s787 = scalar_lea.vmem %s757, %s786 [#allocation2]
        %s788 = sshllo.u32 0, %s783
        loop: start=0, step=1, limit=1
        $region485: #{tpu_custom_call.1} parent=483 // loop_pre_header
          _
        $region486: #{tpu_custom_call.1} parent=483 // loop_header
          %s790 = sphi 0, %s794
          %p791 = scmp.ge.s32.totalorder %s790, 1
          %s795 = sphi %s785, %s785
          %s796 = sphi %s787, %s787
        $region487: #{tpu_custom_call.1} parent=483 // loop_header_branch
          %793 = sbr.rel (%p791) target = $region491
        $region488: #{tpu_custom_call.1} parent=483 // loop_body
          %v797 = vld [vmem:[%s795] sm:%s788]
          %798 = vst [vmem:[%s796] sm:%s788] %v797
        $region489: #{tpu_custom_call.1} parent=483 // loop_footer
          %s794 = sadd.s32 1, %s790
        $region490: #{tpu_custom_call.1} parent=483 // loop_footer_branch
          %789 = sbr.rel target = $region486
        $region491: #{tpu_custom_call.1} parent=483 // loop_exit
          _
      $region484: #{tpu_custom_call.1} parent=468 // pred_fallthru
        _
    $region469: #{tpu_custom_call.1} parent=1 // pred_fallthru
      _
    // Predicated region
    $region470: #{tpu_custom_call.1} parent=1 // pred_check
      %p764 = pneg %p760
    $region471: #{tpu_custom_call.1} parent=1 // pred_check_branch
      %766 = sbr.rel (%p764) target = $region473
    $region472: #{tpu_custom_call.1} parent=1 // pred_region
      %s767 = sshllo.u32 0, 1
      loop: start=0, step=1, limit=1
      $region474: #{tpu_custom_call.1} parent=472 // loop_pre_header
        _
      $region475: #{tpu_custom_call.1} parent=472 // loop_header
        %s769 = sphi 0, %s773
        %p770 = scmp.ge.s32.totalorder %s769, 1
        %s774 = sphi %s756, %s756
        %s775 = sphi %s757, %s757
      $region476: #{tpu_custom_call.1} parent=472 // loop_header_branch
        %772 = sbr.rel (%p770) target = $region480
      $region477: #{tpu_custom_call.1} parent=472 // loop_body
        %v776 = vld [vmem:[%s774] sm:%s767]
        %777 = vst [vmem:[%s775] sm:%s767] %v776
      $region478: #{tpu_custom_call.1} parent=472 // loop_footer
        %s773 = sadd.s32 1, %s769
      $region479: #{tpu_custom_call.1} parent=472 // loop_footer_branch
        %768 = sbr.rel target = $region475
      $region480: #{tpu_custom_call.1} parent=472 // loop_exit
        _
    $region473: #{tpu_custom_call.1} parent=1 // pred_fallthru
      _
    // Predicated region
    $region492: #{tpu_custom_call.1} parent=1 // pred_check
      _
    $region493: #{tpu_custom_call.1} parent=1 // pred_check_branch
      %801 = sbr.rel (0) target = $region495
    $region494: #{tpu_custom_call.1} parent=1 // pred_region
      %802 = vsyncadd %s758, 16
    $region495: #{tpu_custom_call.1} parent=1 // pred_fallthru
      _
    %s803 = sld [smem:[#allocation7 + $0x7]]
    %s804 = scalar_lea.vmem %s6, %s803
    %s805 = scalar_lea.vmem [#allocation2], 15
    %s806 = scalar_lea.sflag [#allocation3], 15
    %p808 = scmp.lt.u32.totalorder 1, 8
    %p809 = pneg %p808
    // Predicated region
    $region496: #{tpu_custom_call.1} parent=1 // pred_check
      _
    $region497: #{tpu_custom_call.1} parent=1 // pred_check_branch
      %811 = sbr.rel (%p808) target = $region499
    $region498: #{tpu_custom_call.1} parent=1 // pred_region
      %s826 = sand.u32 1, 7
      %p827 = scmp.eq.s32.totalorder %s826, 0
      %p828 = pneg %p827
      // Predicated region
      $region511: #{tpu_custom_call.1} parent=498 // pred_check
        _
      $region512: #{tpu_custom_call.1} parent=498 // pred_check_branch
        %830 = sbr.rel (%p827) target = $region514
      $region513: #{tpu_custom_call.1} parent=498 // pred_region
        %s831 = sand.u32 1, 7
        %s832 = ssub.s32 1, %s831
        %s833 = scalar_lea.vmem %s804, %s832
        %s834 = ssub.s32 1, %s831
        %s835 = scalar_lea.vmem %s805, %s834 [#allocation2]
        %s836 = sshllo.u32 0, %s831
        loop: start=0, step=1, limit=1
        $region515: #{tpu_custom_call.1} parent=513 // loop_pre_header
          _
        $region516: #{tpu_custom_call.1} parent=513 // loop_header
          %s838 = sphi 0, %s842
          %p839 = scmp.ge.s32.totalorder %s838, 1
          %s843 = sphi %s833, %s833
          %s844 = sphi %s835, %s835
        $region517: #{tpu_custom_call.1} parent=513 // loop_header_branch
          %841 = sbr.rel (%p839) target = $region521
        $region518: #{tpu_custom_call.1} parent=513 // loop_body
          %v845 = vld [vmem:[%s843] sm:%s836]
          %846 = vst [vmem:[%s844] sm:%s836] %v845
        $region519: #{tpu_custom_call.1} parent=513 // loop_footer
          %s842 = sadd.s32 1, %s838
        $region520: #{tpu_custom_call.1} parent=513 // loop_footer_branch
          %837 = sbr.rel target = $region516
        $region521: #{tpu_custom_call.1} parent=513 // loop_exit
          _
      $region514: #{tpu_custom_call.1} parent=498 // pred_fallthru
        _
    $region499: #{tpu_custom_call.1} parent=1 // pred_fallthru
      _
    // Predicated region
    $region500: #{tpu_custom_call.1} parent=1 // pred_check
      %p812 = pneg %p808
    $region501: #{tpu_custom_call.1} parent=1 // pred_check_branch
      %814 = sbr.rel (%p812) target = $region503
    $region502: #{tpu_custom_call.1} parent=1 // pred_region
      %s815 = sshllo.u32 0, 1
      loop: start=0, step=1, limit=1
      $region504: #{tpu_custom_call.1} parent=502 // loop_pre_header
        _
      $region505: #{tpu_custom_call.1} parent=502 // loop_header
        %s817 = sphi 0, %s821
        %p818 = scmp.ge.s32.totalorder %s817, 1
        %s822 = sphi %s804, %s804
        %s823 = sphi %s805, %s805
      $region506: #{tpu_custom_call.1} parent=502 // loop_header_branch
        %820 = sbr.rel (%p818) target = $region510
      $region507: #{tpu_custom_call.1} parent=502 // loop_body
        %v824 = vld [vmem:[%s822] sm:%s815]
        %825 = vst [vmem:[%s823] sm:%s815] %v824
      $region508: #{tpu_custom_call.1} parent=502 // loop_footer
        %s821 = sadd.s32 1, %s817
      $region509: #{tpu_custom_call.1} parent=502 // loop_footer_branch
        %816 = sbr.rel target = $region505
      $region510: #{tpu_custom_call.1} parent=502 // loop_exit
        _
    $region503: #{tpu_custom_call.1} parent=1 // pred_fallthru
      _
    // Predicated region
    $region522: #{tpu_custom_call.1} parent=1 // pred_check
      _
    $region523: #{tpu_custom_call.1} parent=1 // pred_check_branch
      %849 = sbr.rel (0) target = $region525
    $region524: #{tpu_custom_call.1} parent=1 // pred_region
      %850 = vsyncadd %s806, 16
    $region525: #{tpu_custom_call.1} parent=1 // pred_fallthru
      _
    %s851 = sld [smem:[#allocation9]]
    %s852 = scalar_lea.vmem %s7, %s851
    %s853 = scalar_lea.vmem [#allocation2], 16
    %s854 = scalar_lea.sflag [#allocation3], 16
    %p856 = scmp.lt.u32.totalorder 1, 8
    %p857 = pneg %p856
    // Predicated region
    $region526: #{tpu_custom_call.1} parent=1 // pred_check
      _
    $region527: #{tpu_custom_call.1} parent=1 // pred_check_branch
      %859 = sbr.rel (%p856) target = $region529
    $region528: #{tpu_custom_call.1} parent=1 // pred_region
      %s874 = sand.u32 1, 7
      %p875 = scmp.eq.s32.totalorder %s874, 0
      %p876 = pneg %p875
      // Predicated region
      $region541: #{tpu_custom_call.1} parent=528 // pred_check
        _
      $region542: #{tpu_custom_call.1} parent=528 // pred_check_branch
        %878 = sbr.rel (%p875) target = $region544
      $region543: #{tpu_custom_call.1} parent=528 // pred_region
        %s879 = sand.u32 1, 7
        %s880 = ssub.s32 1, %s879
        %s881 = scalar_lea.vmem %s852, %s880
        %s882 = ssub.s32 1, %s879
        %s883 = scalar_lea.vmem %s853, %s882 [#allocation2]
        %s884 = sshllo.u32 0, %s879
        loop: start=0, step=1, limit=1
        $region545: #{tpu_custom_call.1} parent=543 // loop_pre_header
          _
        $region546: #{tpu_custom_call.1} parent=543 // loop_header
          %s886 = sphi 0, %s890
          %p887 = scmp.ge.s32.totalorder %s886, 1
          %s891 = sphi %s881, %s881
          %s892 = sphi %s883, %s883
        $region547: #{tpu_custom_call.1} parent=543 // loop_header_branch
          %889 = sbr.rel (%p887) target = $region551
        $region548: #{tpu_custom_call.1} parent=543 // loop_body
          %v893 = vld [vmem:[%s891] sm:%s884]
          %894 = vst [vmem:[%s892] sm:%s884] %v893
        $region549: #{tpu_custom_call.1} parent=543 // loop_footer
          %s890 = sadd.s32 1, %s886
        $region550: #{tpu_custom_call.1} parent=543 // loop_footer_branch
          %885 = sbr.rel target = $region546
        $region551: #{tpu_custom_call.1} parent=543 // loop_exit
          _
      $region544: #{tpu_custom_call.1} parent=528 // pred_fallthru
        _
    $region529: #{tpu_custom_call.1} parent=1 // pred_fallthru
      _
    // Predicated region
    $region530: #{tpu_custom_call.1} parent=1 // pred_check
      %p860 = pneg %p856
    $region531: #{tpu_custom_call.1} parent=1 // pred_check_branch
      %862 = sbr.rel (%p860) target = $region533
    $region532: #{tpu_custom_call.1} parent=1 // pred_region
      %s863 = sshllo.u32 0, 1
      loop: start=0, step=1, limit=1
      $region534: #{tpu_custom_call.1} parent=532 // loop_pre_header
        _
      $region535: #{tpu_custom_call.1} parent=532 // loop_header
        %s865 = sphi 0, %s869
        %p866 = scmp.ge.s32.totalorder %s865, 1
        %s870 = sphi %s852, %s852
        %s871 = sphi %s853, %s853
      $region536: #{tpu_custom_call.1} parent=532 // loop_header_branch
        %868 = sbr.rel (%p866) target = $region540
      $region537: #{tpu_custom_call.1} parent=532 // loop_body
        %v872 = vld [vmem:[%s870] sm:%s863]
        %873 = vst [vmem:[%s871] sm:%s863] %v872
      $region538: #{tpu_custom_call.1} parent=532 // loop_footer
        %s869 = sadd.s32 1, %s865
      $region539: #{tpu_custom_call.1} parent=532 // loop_footer_branch
        %864 = sbr.rel target = $region535
      $region540: #{tpu_custom_call.1} parent=532 // loop_exit
        _
    $region533: #{tpu_custom_call.1} parent=1 // pred_fallthru
      _
    // Predicated region
    $region552: #{tpu_custom_call.1} parent=1 // pred_check
      _
    $region553: #{tpu_custom_call.1} parent=1 // pred_check_branch
      %897 = sbr.rel (0) target = $region555
    $region554: #{tpu_custom_call.1} parent=1 // pred_region
      %898 = vsyncadd %s854, 16
    $region555: #{tpu_custom_call.1} parent=1 // pred_fallthru
      _
    %s899 = sld [smem:[#allocation9 + $0x1]]
    %s900 = scalar_lea.vmem %s7, %s899
    %s901 = scalar_lea.vmem [#allocation2], 17
    %s902 = scalar_lea.sflag [#allocation3], 17
    %p904 = scmp.lt.u32.totalorder 1, 8
    %p905 = pneg %p904
    // Predicated region
    $region556: #{tpu_custom_call.1} parent=1 // pred_check
      _
    $region557: #{tpu_custom_call.1} parent=1 // pred_check_branch
      %907 = sbr.rel (%p904) target = $region559
    $region558: #{tpu_custom_call.1} parent=1 // pred_region
      %s922 = sand.u32 1, 7
      %p923 = scmp.eq.s32.totalorder %s922, 0
      %p924 = pneg %p923
      // Predicated region
      $region571: #{tpu_custom_call.1} parent=558 // pred_check
        _
      $region572: #{tpu_custom_call.1} parent=558 // pred_check_branch
        %926 = sbr.rel (%p923) target = $region574
      $region573: #{tpu_custom_call.1} parent=558 // pred_region
        %s927 = sand.u32 1, 7
        %s928 = ssub.s32 1, %s927
        %s929 = scalar_lea.vmem %s900, %s928
        %s930 = ssub.s32 1, %s927
        %s931 = scalar_lea.vmem %s901, %s930 [#allocation2]
        %s932 = sshllo.u32 0, %s927
        loop: start=0, step=1, limit=1
        $region575: #{tpu_custom_call.1} parent=573 // loop_pre_header
          _
        $region576: #{tpu_custom_call.1} parent=573 // loop_header
          %s934 = sphi 0, %s938
          %p935 = scmp.ge.s32.totalorder %s934, 1
          %s939 = sphi %s929, %s929
          %s940 = sphi %s931, %s931
        $region577: #{tpu_custom_call.1} parent=573 // loop_header_branch
          %937 = sbr.rel (%p935) target = $region581
        $region578: #{tpu_custom_call.1} parent=573 // loop_body
          %v941 = vld [vmem:[%s939] sm:%s932]
          %942 = vst [vmem:[%s940] sm:%s932] %v941
        $region579: #{tpu_custom_call.1} parent=573 // loop_footer
          %s938 = sadd.s32 1, %s934
        $region580: #{tpu_custom_call.1} parent=573 // loop_footer_branch
          %933 = sbr.rel target = $region576
        $region581: #{tpu_custom_call.1} parent=573 // loop_exit
          _
      $region574: #{tpu_custom_call.1} parent=558 // pred_fallthru
        _
    $region559: #{tpu_custom_call.1} parent=1 // pred_fallthru
      _
    // Predicated region
    $region560: #{tpu_custom_call.1} parent=1 // pred_check
      %p908 = pneg %p904
    $region561: #{tpu_custom_call.1} parent=1 // pred_check_branch
      %910 = sbr.rel (%p908) target = $region563
    $region562: #{tpu_custom_call.1} parent=1 // pred_region
      %s911 = sshllo.u32 0, 1
      loop: start=0, step=1, limit=1
      $region564: #{tpu_custom_call.1} parent=562 // loop_pre_header
        _
      $region565: #{tpu_custom_call.1} parent=562 // loop_header
        %s913 = sphi 0, %s917
        %p914 = scmp.ge.s32.totalorder %s913, 1
        %s918 = sphi %s900, %s900
        %s919 = sphi %s901, %s901
      $region566: #{tpu_custom_call.1} parent=562 // loop_header_branch
        %916 = sbr.rel (%p914) target = $region570
      $region567: #{tpu_custom_call.1} parent=562 // loop_body
        %v920 = vld [vmem:[%s918] sm:%s911]
        %921 = vst [vmem:[%s919] sm:%s911] %v920
      $region568: #{tpu_custom_call.1} parent=562 // loop_footer
        %s917 = sadd.s32 1, %s913
      $region569: #{tpu_custom_call.1} parent=562 // loop_footer_branch
        %912 = sbr.rel target = $region565
      $region570: #{tpu_custom_call.1} parent=562 // loop_exit
        _
    $region563: #{tpu_custom_call.1} parent=1 // pred_fallthru
      _
    // Predicated region
    $region582: #{tpu_custom_call.1} parent=1 // pred_check
      _
    $region583: #{tpu_custom_call.1} parent=1 // pred_check_branch
      %945 = sbr.rel (0) target = $region585
    $region584: #{tpu_custom_call.1} parent=1 // pred_region
      %946 = vsyncadd %s902, 16
    $region585: #{tpu_custom_call.1} parent=1 // pred_fallthru
      _
    %s947 = sld [smem:[#allocation9 + $0x2]]
    %s948 = scalar_lea.vmem %s7, %s947
    %s949 = scalar_lea.vmem [#allocation2], 18
    %s950 = scalar_lea.sflag [#allocation3], 18
    %p952 = scmp.lt.u32.totalorder 1, 8
    %p953 = pneg %p952
    // Predicated region
    $region586: #{tpu_custom_call.1} parent=1 // pred_check
      _
    $region587: #{tpu_custom_call.1} parent=1 // pred_check_branch
      %955 = sbr.rel (%p952) target = $region589
    $region588: #{tpu_custom_call.1} parent=1 // pred_region
      %s970 = sand.u32 1, 7
      %p971 = scmp.eq.s32.totalorder %s970, 0
      %p972 = pneg %p971
      // Predicated region
      $region601: #{tpu_custom_call.1} parent=588 // pred_check
        _
      $region602: #{tpu_custom_call.1} parent=588 // pred_check_branch
        %974 = sbr.rel (%p971) target = $region604
      $region603: #{tpu_custom_call.1} parent=588 // pred_region
        %s975 = sand.u32 1, 7
        %s976 = ssub.s32 1, %s975
        %s977 = scalar_lea.vmem %s948, %s976
        %s978 = ssub.s32 1, %s975
        %s979 = scalar_lea.vmem %s949, %s978 [#allocation2]
        %s980 = sshllo.u32 0, %s975
        loop: start=0, step=1, limit=1
        $region605: #{tpu_custom_call.1} parent=603 // loop_pre_header
          _
        $region606: #{tpu_custom_call.1} parent=603 // loop_header
          %s982 = sphi 0, %s986
          %p983 = scmp.ge.s32.totalorder %s982, 1
          %s987 = sphi %s977, %s977
          %s988 = sphi %s979, %s979
        $region607: #{tpu_custom_call.1} parent=603 // loop_header_branch
          %985 = sbr.rel (%p983) target = $region611
        $region608: #{tpu_custom_call.1} parent=603 // loop_body
          %v989 = vld [vmem:[%s987] sm:%s980]
          %990 = vst [vmem:[%s988] sm:%s980] %v989
        $region609: #{tpu_custom_call.1} parent=603 // loop_footer
          %s986 = sadd.s32 1, %s982
        $region610: #{tpu_custom_call.1} parent=603 // loop_footer_branch
          %981 = sbr.rel target = $region606
        $region611: #{tpu_custom_call.1} parent=603 // loop_exit
          _
      $region604: #{tpu_custom_call.1} parent=588 // pred_fallthru
        _
    $region589: #{tpu_custom_call.1} parent=1 // pred_fallthru
      _
    // Predicated region
    $region590: #{tpu_custom_call.1} parent=1 // pred_check
      %p956 = pneg %p952
    $region591: #{tpu_custom_call.1} parent=1 // pred_check_branch
      %958 = sbr.rel (%p956) target = $region593
    $region592: #{tpu_custom_call.1} parent=1 // pred_region
      %s959 = sshllo.u32 0, 1
      loop: start=0, step=1, limit=1
      $region594: #{tpu_custom_call.1} parent=592 // loop_pre_header
        _
      $region595: #{tpu_custom_call.1} parent=592 // loop_header
        %s961 = sphi 0, %s965
        %p962 = scmp.ge.s32.totalorder %s961, 1
        %s966 = sphi %s948, %s948
        %s967 = sphi %s949, %s949
      $region596: #{tpu_custom_call.1} parent=592 // loop_header_branch
        %964 = sbr.rel (%p962) target = $region600
      $region597: #{tpu_custom_call.1} parent=592 // loop_body
        %v968 = vld [vmem:[%s966] sm:%s959]
        %969 = vst [vmem:[%s967] sm:%s959] %v968
      $region598: #{tpu_custom_call.1} parent=592 // loop_footer
        %s965 = sadd.s32 1, %s961
      $region599: #{tpu_custom_call.1} parent=592 // loop_footer_branch
        %960 = sbr.rel target = $region595
      $region600: #{tpu_custom_call.1} parent=592 // loop_exit
        _
    $region593: #{tpu_custom_call.1} parent=1 // pred_fallthru
      _
    // Predicated region
    $region612: #{tpu_custom_call.1} parent=1 // pred_check
      _
    $region613: #{tpu_custom_call.1} parent=1 // pred_check_branch
      %993 = sbr.rel (0) target = $region615
    $region614: #{tpu_custom_call.1} parent=1 // pred_region
      %994 = vsyncadd %s950, 16
    $region615: #{tpu_custom_call.1} parent=1 // pred_fallthru
      _
    %s995 = sld [smem:[#allocation9 + $0x3]]
    %s996 = scalar_lea.vmem %s7, %s995
    %s997 = scalar_lea.vmem [#allocation2], 19
    %s998 = scalar_lea.sflag [#allocation3], 19
    %p1000 = scmp.lt.u32.totalorder 1, 8
    %p1001 = pneg %p1000
    // Predicated region
    $region616: #{tpu_custom_call.1} parent=1 // pred_check
      _
    $region617: #{tpu_custom_call.1} parent=1 // pred_check_branch
      %1003 = sbr.rel (%p1000) target = $region619
    $region618: #{tpu_custom_call.1} parent=1 // pred_region
      %s1018 = sand.u32 1, 7
      %p1019 = scmp.eq.s32.totalorder %s1018, 0
      %p1020 = pneg %p1019
      // Predicated region
      $region631: #{tpu_custom_call.1} parent=618 // pred_check
        _
      $region632: #{tpu_custom_call.1} parent=618 // pred_check_branch
        %1022 = sbr.rel (%p1019) target = $region634
      $region633: #{tpu_custom_call.1} parent=618 // pred_region
        %s1023 = sand.u32 1, 7
        %s1024 = ssub.s32 1, %s1023
        %s1025 = scalar_lea.vmem %s996, %s1024
        %s1026 = ssub.s32 1, %s1023
        %s1027 = scalar_lea.vmem %s997, %s1026 [#allocation2]
        %s1028 = sshllo.u32 0, %s1023
        loop: start=0, step=1, limit=1
        $region635: #{tpu_custom_call.1} parent=633 // loop_pre_header
          _
        $region636: #{tpu_custom_call.1} parent=633 // loop_header
          %s1030 = sphi 0, %s1034
          %p1031 = scmp.ge.s32.totalorder %s1030, 1
          %s1035 = sphi %s1025, %s1025
          %s1036 = sphi %s1027, %s1027
        $region637: #{tpu_custom_call.1} parent=633 // loop_header_branch
          %1033 = sbr.rel (%p1031) target = $region641
        $region638: #{tpu_custom_call.1} parent=633 // loop_body
          %v1037 = vld [vmem:[%s1035] sm:%s1028]
          %1038 = vst [vmem:[%s1036] sm:%s1028] %v1037
        $region639: #{tpu_custom_call.1} parent=633 // loop_footer
          %s1034 = sadd.s32 1, %s1030
        $region640: #{tpu_custom_call.1} parent=633 // loop_footer_branch
          %1029 = sbr.rel target = $region636
        $region641: #{tpu_custom_call.1} parent=633 // loop_exit
          _
      $region634: #{tpu_custom_call.1} parent=618 // pred_fallthru
        _
    $region619: #{tpu_custom_call.1} parent=1 // pred_fallthru
      _
    // Predicated region
    $region620: #{tpu_custom_call.1} parent=1 // pred_check
      %p1004 = pneg %p1000
    $region621: #{tpu_custom_call.1} parent=1 // pred_check_branch
      %1006 = sbr.rel (%p1004) target = $region623
    $region622: #{tpu_custom_call.1} parent=1 // pred_region
      %s1007 = sshllo.u32 0, 1
      loop: start=0, step=1, limit=1
      $region624: #{tpu_custom_call.1} parent=622 // loop_pre_header
        _
      $region625: #{tpu_custom_call.1} parent=622 // loop_header
        %s1009 = sphi 0, %s1013
        %p1010 = scmp.ge.s32.totalorder %s1009, 1
        %s1014 = sphi %s996, %s996
        %s1015 = sphi %s997, %s997
      $region626: #{tpu_custom_call.1} parent=622 // loop_header_branch
        %1012 = sbr.rel (%p1010) target = $region630
      $region627: #{tpu_custom_call.1} parent=622 // loop_body
        %v1016 = vld [vmem:[%s1014] sm:%s1007]
        %1017 = vst [vmem:[%s1015] sm:%s1007] %v1016
      $region628: #{tpu_custom_call.1} parent=622 // loop_footer
        %s1013 = sadd.s32 1, %s1009
      $region629: #{tpu_custom_call.1} parent=622 // loop_footer_branch
        %1008 = sbr.rel target = $region625
      $region630: #{tpu_custom_call.1} parent=622 // loop_exit
        _
    $region623: #{tpu_custom_call.1} parent=1 // pred_fallthru
      _
    // Predicated region
    $region642: #{tpu_custom_call.1} parent=1 // pred_check
      _
    $region643: #{tpu_custom_call.1} parent=1 // pred_check_branch
      %1041 = sbr.rel (0) target = $region645
    $region644: #{tpu_custom_call.1} parent=1 // pred_region
      %1042 = vsyncadd %s998, 16
    $region645: #{tpu_custom_call.1} parent=1 // pred_fallthru
      _
    %s1043 = sld [smem:[#allocation9 + $0x4]]
    %s1044 = scalar_lea.vmem %s7, %s1043
    %s1045 = scalar_lea.vmem [#allocation2], 20
    %s1046 = scalar_lea.sflag [#allocation3], 20
    %p1048 = scmp.lt.u32.totalorder 1, 8
    %p1049 = pneg %p1048
    // Predicated region
    $region646: #{tpu_custom_call.1} parent=1 // pred_check
      _
    $region647: #{tpu_custom_call.1} parent=1 // pred_check_branch
      %1051 = sbr.rel (%p1048) target = $region649
    $region648: #{tpu_custom_call.1} parent=1 // pred_region
      %s1066 = sand.u32 1, 7
      %p1067 = scmp.eq.s32.totalorder %s1066, 0
      %p1068 = pneg %p1067
      // Predicated region
      $region661: #{tpu_custom_call.1} parent=648 // pred_check
        _
      $region662: #{tpu_custom_call.1} parent=648 // pred_check_branch
        %1070 = sbr.rel (%p1067) target = $region664
      $region663: #{tpu_custom_call.1} parent=648 // pred_region
        %s1071 = sand.u32 1, 7
        %s1072 = ssub.s32 1, %s1071
        %s1073 = scalar_lea.vmem %s1044, %s1072
        %s1074 = ssub.s32 1, %s1071
        %s1075 = scalar_lea.vmem %s1045, %s1074 [#allocation2]
        %s1076 = sshllo.u32 0, %s1071
        loop: start=0, step=1, limit=1
        $region665: #{tpu_custom_call.1} parent=663 // loop_pre_header
          _
        $region666: #{tpu_custom_call.1} parent=663 // loop_header
          %s1078 = sphi 0, %s1082
          %p1079 = scmp.ge.s32.totalorder %s1078, 1
          %s1083 = sphi %s1073, %s1073
          %s1084 = sphi %s1075, %s1075
        $region667: #{tpu_custom_call.1} parent=663 // loop_header_branch
          %1081 = sbr.rel (%p1079) target = $region671
        $region668: #{tpu_custom_call.1} parent=663 // loop_body
          %v1085 = vld [vmem:[%s1083] sm:%s1076]
          %1086 = vst [vmem:[%s1084] sm:%s1076] %v1085
        $region669: #{tpu_custom_call.1} parent=663 // loop_footer
          %s1082 = sadd.s32 1, %s1078
        $region670: #{tpu_custom_call.1} parent=663 // loop_footer_branch
          %1077 = sbr.rel target = $region666
        $region671: #{tpu_custom_call.1} parent=663 // loop_exit
          _
      $region664: #{tpu_custom_call.1} parent=648 // pred_fallthru
        _
    $region649: #{tpu_custom_call.1} parent=1 // pred_fallthru
      _
    // Predicated region
    $region650: #{tpu_custom_call.1} parent=1 // pred_check
      %p1052 = pneg %p1048
    $region651: #{tpu_custom_call.1} parent=1 // pred_check_branch
      %1054 = sbr.rel (%p1052) target = $region653
    $region652: #{tpu_custom_call.1} parent=1 // pred_region
      %s1055 = sshllo.u32 0, 1
      loop: start=0, step=1, limit=1
      $region654: #{tpu_custom_call.1} parent=652 // loop_pre_header
        _
      $region655: #{tpu_custom_call.1} parent=652 // loop_header
        %s1057 = sphi 0, %s1061
        %p1058 = scmp.ge.s32.totalorder %s1057, 1
        %s1062 = sphi %s1044, %s1044
        %s1063 = sphi %s1045, %s1045
      $region656: #{tpu_custom_call.1} parent=652 // loop_header_branch
        %1060 = sbr.rel (%p1058) target = $region660
      $region657: #{tpu_custom_call.1} parent=652 // loop_body
        %v1064 = vld [vmem:[%s1062] sm:%s1055]
        %1065 = vst [vmem:[%s1063] sm:%s1055] %v1064
      $region658: #{tpu_custom_call.1} parent=652 // loop_footer
        %s1061 = sadd.s32 1, %s1057
      $region659: #{tpu_custom_call.1} parent=652 // loop_footer_branch
        %1056 = sbr.rel target = $region655
      $region660: #{tpu_custom_call.1} parent=652 // loop_exit
        _
    $region653: #{tpu_custom_call.1} parent=1 // pred_fallthru
      _
    // Predicated region
    $region672: #{tpu_custom_call.1} parent=1 // pred_check
      _
    $region673: #{tpu_custom_call.1} parent=1 // pred_check_branch
      %1089 = sbr.rel (0) target = $region675
    $region674: #{tpu_custom_call.1} parent=1 // pred_region
      %1090 = vsyncadd %s1046, 16
    $region675: #{tpu_custom_call.1} parent=1 // pred_fallthru
      _
    %s1091 = sld [smem:[#allocation9 + $0x5]]
    %s1092 = scalar_lea.vmem %s7, %s1091
    %s1093 = scalar_lea.vmem [#allocation2], 21
    %s1094 = scalar_lea.sflag [#allocation3], 21
    %p1096 = scmp.lt.u32.totalorder 1, 8
    %p1097 = pneg %p1096
    // Predicated region
    $region676: #{tpu_custom_call.1} parent=1 // pred_check
      _
    $region677: #{tpu_custom_call.1} parent=1 // pred_check_branch
      %1099 = sbr.rel (%p1096) target = $region679
    $region678: #{tpu_custom_call.1} parent=1 // pred_region
      %s1114 = sand.u32 1, 7
      %p1115 = scmp.eq.s32.totalorder %s1114, 0
      %p1116 = pneg %p1115
      // Predicated region
      $region691: #{tpu_custom_call.1} parent=678 // pred_check
        _
      $region692: #{tpu_custom_call.1} parent=678 // pred_check_branch
        %1118 = sbr.rel (%p1115) target = $region694
      $region693: #{tpu_custom_call.1} parent=678 // pred_region
        %s1119 = sand.u32 1, 7
        %s1120 = ssub.s32 1, %s1119
        %s1121 = scalar_lea.vmem %s1092, %s1120
        %s1122 = ssub.s32 1, %s1119
        %s1123 = scalar_lea.vmem %s1093, %s1122 [#allocation2]
        %s1124 = sshllo.u32 0, %s1119
        loop: start=0, step=1, limit=1
        $region695: #{tpu_custom_call.1} parent=693 // loop_pre_header
          _
        $region696: #{tpu_custom_call.1} parent=693 // loop_header
          %s1126 = sphi 0, %s1130
          %p1127 = scmp.ge.s32.totalorder %s1126, 1
          %s1131 = sphi %s1121, %s1121
          %s1132 = sphi %s1123, %s1123
        $region697: #{tpu_custom_call.1} parent=693 // loop_header_branch
          %1129 = sbr.rel (%p1127) target = $region701
        $region698: #{tpu_custom_call.1} parent=693 // loop_body
          %v1133 = vld [vmem:[%s1131] sm:%s1124]
          %1134 = vst [vmem:[%s1132] sm:%s1124] %v1133
        $region699: #{tpu_custom_call.1} parent=693 // loop_footer
          %s1130 = sadd.s32 1, %s1126
        $region700: #{tpu_custom_call.1} parent=693 // loop_footer_branch
          %1125 = sbr.rel target = $region696
        $region701: #{tpu_custom_call.1} parent=693 // loop_exit
          _
      $region694: #{tpu_custom_call.1} parent=678 // pred_fallthru
        _
    $region679: #{tpu_custom_call.1} parent=1 // pred_fallthru
      _
    // Predicated region
    $region680: #{tpu_custom_call.1} parent=1 // pred_check
      %p1100 = pneg %p1096
    $region681: #{tpu_custom_call.1} parent=1 // pred_check_branch
      %1102 = sbr.rel (%p1100) target = $region683
    $region682: #{tpu_custom_call.1} parent=1 // pred_region
      %s1103 = sshllo.u32 0, 1
      loop: start=0, step=1, limit=1
      $region684: #{tpu_custom_call.1} parent=682 // loop_pre_header
        _
      $region685: #{tpu_custom_call.1} parent=682 // loop_header
        %s1105 = sphi 0, %s1109
        %p1106 = scmp.ge.s32.totalorder %s1105, 1
        %s1110 = sphi %s1092, %s1092
        %s1111 = sphi %s1093, %s1093
      $region686: #{tpu_custom_call.1} parent=682 // loop_header_branch
        %1108 = sbr.rel (%p1106) target = $region690
      $region687: #{tpu_custom_call.1} parent=682 // loop_body
        %v1112 = vld [vmem:[%s1110] sm:%s1103]
        %1113 = vst [vmem:[%s1111] sm:%s1103] %v1112
      $region688: #{tpu_custom_call.1} parent=682 // loop_footer
        %s1109 = sadd.s32 1, %s1105
      $region689: #{tpu_custom_call.1} parent=682 // loop_footer_branch
        %1104 = sbr.rel target = $region685
      $region690: #{tpu_custom_call.1} parent=682 // loop_exit
        _
    $region683: #{tpu_custom_call.1} parent=1 // pred_fallthru
      _
    // Predicated region
    $region702: #{tpu_custom_call.1} parent=1 // pred_check
      _
    $region703: #{tpu_custom_call.1} parent=1 // pred_check_branch
      %1137 = sbr.rel (0) target = $region705
    $region704: #{tpu_custom_call.1} parent=1 // pred_region
      %1138 = vsyncadd %s1094, 16
    $region705: #{tpu_custom_call.1} parent=1 // pred_fallthru
      _
    %s1139 = sld [smem:[#allocation9 + $0x6]]
    %s1140 = scalar_lea.vmem %s7, %s1139
    %s1141 = scalar_lea.vmem [#allocation2], 22
    %s1142 = scalar_lea.sflag [#allocation3], 22
    %p1144 = scmp.lt.u32.totalorder 1, 8
    %p1145 = pneg %p1144
    // Predicated region
    $region706: #{tpu_custom_call.1} parent=1 // pred_check
      _
    $region707: #{tpu_custom_call.1} parent=1 // pred_check_branch
      %1147 = sbr.rel (%p1144) target = $region709
    $region708: #{tpu_custom_call.1} parent=1 // pred_region
      %s1162 = sand.u32 1, 7
      %p1163 = scmp.eq.s32.totalorder %s1162, 0
      %p1164 = pneg %p1163
      // Predicated region
      $region721: #{tpu_custom_call.1} parent=708 // pred_check
        _
      $region722: #{tpu_custom_call.1} parent=708 // pred_check_branch
        %1166 = sbr.rel (%p1163) target = $region724
      $region723: #{tpu_custom_call.1} parent=708 // pred_region
        %s1167 = sand.u32 1, 7
        %s1168 = ssub.s32 1, %s1167
        %s1169 = scalar_lea.vmem %s1140, %s1168
        %s1170 = ssub.s32 1, %s1167
        %s1171 = scalar_lea.vmem %s1141, %s1170 [#allocation2]
        %s1172 = sshllo.u32 0, %s1167
        loop: start=0, step=1, limit=1
        $region725: #{tpu_custom_call.1} parent=723 // loop_pre_header
          _
        $region726: #{tpu_custom_call.1} parent=723 // loop_header
          %s1174 = sphi 0, %s1178
          %p1175 = scmp.ge.s32.totalorder %s1174, 1
          %s1179 = sphi %s1169, %s1169
          %s1180 = sphi %s1171, %s1171
        $region727: #{tpu_custom_call.1} parent=723 // loop_header_branch
          %1177 = sbr.rel (%p1175) target = $region731
        $region728: #{tpu_custom_call.1} parent=723 // loop_body
          %v1181 = vld [vmem:[%s1179] sm:%s1172]
          %1182 = vst [vmem:[%s1180] sm:%s1172] %v1181
        $region729: #{tpu_custom_call.1} parent=723 // loop_footer
          %s1178 = sadd.s32 1, %s1174
        $region730: #{tpu_custom_call.1} parent=723 // loop_footer_branch
          %1173 = sbr.rel target = $region726
        $region731: #{tpu_custom_call.1} parent=723 // loop_exit
          _
      $region724: #{tpu_custom_call.1} parent=708 // pred_fallthru
        _
    $region709: #{tpu_custom_call.1} parent=1 // pred_fallthru
      _
    // Predicated region
    $region710: #{tpu_custom_call.1} parent=1 // pred_check
      %p1148 = pneg %p1144
    $region711: #{tpu_custom_call.1} parent=1 // pred_check_branch
      %1150 = sbr.rel (%p1148) target = $region713
    $region712: #{tpu_custom_call.1} parent=1 // pred_region
      %s1151 = sshllo.u32 0, 1
      loop: start=0, step=1, limit=1
      $region714: #{tpu_custom_call.1} parent=712 // loop_pre_header
        _
      $region715: #{tpu_custom_call.1} parent=712 // loop_header
        %s1153 = sphi 0, %s1157
        %p1154 = scmp.ge.s32.totalorder %s1153, 1
        %s1158 = sphi %s1140, %s1140
        %s1159 = sphi %s1141, %s1141
      $region716: #{tpu_custom_call.1} parent=712 // loop_header_branch
        %1156 = sbr.rel (%p1154) target = $region720
      $region717: #{tpu_custom_call.1} parent=712 // loop_body
        %v1160 = vld [vmem:[%s1158] sm:%s1151]
        %1161 = vst [vmem:[%s1159] sm:%s1151] %v1160
      $region718: #{tpu_custom_call.1} parent=712 // loop_footer
        %s1157 = sadd.s32 1, %s1153
      $region719: #{tpu_custom_call.1} parent=712 // loop_footer_branch
        %1152 = sbr.rel target = $region715
      $region720: #{tpu_custom_call.1} parent=712 // loop_exit
        _
    $region713: #{tpu_custom_call.1} parent=1 // pred_fallthru
      _
    // Predicated region
    $region732: #{tpu_custom_call.1} parent=1 // pred_check
      _
    $region733: #{tpu_custom_call.1} parent=1 // pred_check_branch
      %1185 = sbr.rel (0) target = $region735
    $region734: #{tpu_custom_call.1} parent=1 // pred_region
      %1186 = vsyncadd %s1142, 16
    $region735: #{tpu_custom_call.1} parent=1 // pred_fallthru
      _
    %s1187 = sld [smem:[#allocation9 + $0x7]]
    %s1188 = scalar_lea.vmem %s7, %s1187
    %s1189 = scalar_lea.vmem [#allocation2], 23
    %s1190 = scalar_lea.sflag [#allocation3], 23
    %p1192 = scmp.lt.u32.totalorder 1, 8
    %p1193 = pneg %p1192
    // Predicated region
    $region736: #{tpu_custom_call.1} parent=1 // pred_check
      _
    $region737: #{tpu_custom_call.1} parent=1 // pred_check_branch
      %1195 = sbr.rel (%p1192) target = $region739
    $region738: #{tpu_custom_call.1} parent=1 // pred_region
      %s1210 = sand.u32 1, 7
      %p1211 = scmp.eq.s32.totalorder %s1210, 0
      %p1212 = pneg %p1211
      // Predicated region
      $region751: #{tpu_custom_call.1} parent=738 // pred_check
        _
      $region752: #{tpu_custom_call.1} parent=738 // pred_check_branch
        %1214 = sbr.rel (%p1211) target = $region754
      $region753: #{tpu_custom_call.1} parent=738 // pred_region
        %s1215 = sand.u32 1, 7
        %s1216 = ssub.s32 1, %s1215
        %s1217 = scalar_lea.vmem %s1188, %s1216
        %s1218 = ssub.s32 1, %s1215
        %s1219 = scalar_lea.vmem %s1189, %s1218 [#allocation2]
        %s1220 = sshllo.u32 0, %s1215
        loop: start=0, step=1, limit=1
        $region755: #{tpu_custom_call.1} parent=753 // loop_pre_header
          _
        $region756: #{tpu_custom_call.1} parent=753 // loop_header
          %s1222 = sphi 0, %s1226
          %p1223 = scmp.ge.s32.totalorder %s1222, 1
          %s1227 = sphi %s1217, %s1217
          %s1228 = sphi %s1219, %s1219
        $region757: #{tpu_custom_call.1} parent=753 // loop_header_branch
          %1225 = sbr.rel (%p1223) target = $region761
        $region758: #{tpu_custom_call.1} parent=753 // loop_body
          %v1229 = vld [vmem:[%s1227] sm:%s1220]
          %1230 = vst [vmem:[%s1228] sm:%s1220] %v1229
        $region759: #{tpu_custom_call.1} parent=753 // loop_footer
          %s1226 = sadd.s32 1, %s1222
        $region760: #{tpu_custom_call.1} parent=753 // loop_footer_branch
          %1221 = sbr.rel target = $region756
        $region761: #{tpu_custom_call.1} parent=753 // loop_exit
          _
      $region754: #{tpu_custom_call.1} parent=738 // pred_fallthru
        _
    $region739: #{tpu_custom_call.1} parent=1 // pred_fallthru
      _
    // Predicated region
    $region740: #{tpu_custom_call.1} parent=1 // pred_check
      %p1196 = pneg %p1192
    $region741: #{tpu_custom_call.1} parent=1 // pred_check_branch
      %1198 = sbr.rel (%p1196) target = $region743
    $region742: #{tpu_custom_call.1} parent=1 // pred_region
      %s1199 = sshllo.u32 0, 1
      loop: start=0, step=1, limit=1
      $region744: #{tpu_custom_call.1} parent=742 // loop_pre_header
        _
      $region745: #{tpu_custom_call.1} parent=742 // loop_header
        %s1201 = sphi 0, %s1205
        %p1202 = scmp.ge.s32.totalorder %s1201, 1
        %s1206 = sphi %s1188, %s1188
        %s1207 = sphi %s1189, %s1189
      $region746: #{tpu_custom_call.1} parent=742 // loop_header_branch
        %1204 = sbr.rel (%p1202) target = $region750
      $region747: #{tpu_custom_call.1} parent=742 // loop_body
        %v1208 = vld [vmem:[%s1206] sm:%s1199]
        %1209 = vst [vmem:[%s1207] sm:%s1199] %v1208
      $region748: #{tpu_custom_call.1} parent=742 // loop_footer
        %s1205 = sadd.s32 1, %s1201
      $region749: #{tpu_custom_call.1} parent=742 // loop_footer_branch
        %1200 = sbr.rel target = $region745
      $region750: #{tpu_custom_call.1} parent=742 // loop_exit
        _
    $region743: #{tpu_custom_call.1} parent=1 // pred_fallthru
      _
    // Predicated region
    $region762: #{tpu_custom_call.1} parent=1 // pred_check
      _
    $region763: #{tpu_custom_call.1} parent=1 // pred_check_branch
      %1233 = sbr.rel (0) target = $region765
    $region764: #{tpu_custom_call.1} parent=1 // pred_region
      %1234 = vsyncadd %s1190, 16
    $region765: #{tpu_custom_call.1} parent=1 // pred_fallthru
      _
    %s1235 = sld [smem:[#allocation10]]
    %s1236 = scalar_lea.vmem %s7, %s1235
    %s1237 = scalar_lea.vmem [#allocation2], 24
    %s1238 = scalar_lea.sflag [#allocation3], 24
    %p1240 = scmp.lt.u32.totalorder 1, 8
    %p1241 = pneg %p1240
    // Predicated region
    $region766: #{tpu_custom_call.1} parent=1 // pred_check
      _
    $region767: #{tpu_custom_call.1} parent=1 // pred_check_branch
      %1243 = sbr.rel (%p1240) target = $region769
    $region768: #{tpu_custom_call.1} parent=1 // pred_region
      %s1258 = sand.u32 1, 7
      %p1259 = scmp.eq.s32.totalorder %s1258, 0
      %p1260 = pneg %p1259
      // Predicated region
      $region781: #{tpu_custom_call.1} parent=768 // pred_check
        _
      $region782: #{tpu_custom_call.1} parent=768 // pred_check_branch
        %1262 = sbr.rel (%p1259) target = $region784
      $region783: #{tpu_custom_call.1} parent=768 // pred_region
        %s1263 = sand.u32 1, 7
        %s1264 = ssub.s32 1, %s1263
        %s1265 = scalar_lea.vmem %s1236, %s1264
        %s1266 = ssub.s32 1, %s1263
        %s1267 = scalar_lea.vmem %s1237, %s1266 [#allocation2]
        %s1268 = sshllo.u32 0, %s1263
        loop: start=0, step=1, limit=1
        $region785: #{tpu_custom_call.1} parent=783 // loop_pre_header
          _
        $region786: #{tpu_custom_call.1} parent=783 // loop_header
          %s1270 = sphi 0, %s1274
          %p1271 = scmp.ge.s32.totalorder %s1270, 1
          %s1275 = sphi %s1265, %s1265
          %s1276 = sphi %s1267, %s1267
        $region787: #{tpu_custom_call.1} parent=783 // loop_header_branch
          %1273 = sbr.rel (%p1271) target = $region791
        $region788: #{tpu_custom_call.1} parent=783 // loop_body
          %v1277 = vld [vmem:[%s1275] sm:%s1268]
          %1278 = vst [vmem:[%s1276] sm:%s1268] %v1277
        $region789: #{tpu_custom_call.1} parent=783 // loop_footer
          %s1274 = sadd.s32 1, %s1270
        $region790: #{tpu_custom_call.1} parent=783 // loop_footer_branch
          %1269 = sbr.rel target = $region786
        $region791: #{tpu_custom_call.1} parent=783 // loop_exit
          _
      $region784: #{tpu_custom_call.1} parent=768 // pred_fallthru
        _
    $region769: #{tpu_custom_call.1} parent=1 // pred_fallthru
      _
    // Predicated region
    $region770: #{tpu_custom_call.1} parent=1 // pred_check
      %p1244 = pneg %p1240
    $region771: #{tpu_custom_call.1} parent=1 // pred_check_branch
      %1246 = sbr.rel (%p1244) target = $region773
    $region772: #{tpu_custom_call.1} parent=1 // pred_region
      %s1247 = sshllo.u32 0, 1
      loop: start=0, step=1, limit=1
      $region774: #{tpu_custom_call.1} parent=772 // loop_pre_header
        _
      $region775: #{tpu_custom_call.1} parent=772 // loop_header
        %s1249 = sphi 0, %s1253
        %p1250 = scmp.ge.s32.totalorder %s1249, 1
        %s1254 = sphi %s1236, %s1236
        %s1255 = sphi %s1237, %s1237
      $region776: #{tpu_custom_call.1} parent=772 // loop_header_branch
        %1252 = sbr.rel (%p1250) target = $region780
      $region777: #{tpu_custom_call.1} parent=772 // loop_body
        %v1256 = vld [vmem:[%s1254] sm:%s1247]
        %1257 = vst [vmem:[%s1255] sm:%s1247] %v1256
      $region778: #{tpu_custom_call.1} parent=772 // loop_footer
        %s1253 = sadd.s32 1, %s1249
      $region779: #{tpu_custom_call.1} parent=772 // loop_footer_branch
        %1248 = sbr.rel target = $region775
      $region780: #{tpu_custom_call.1} parent=772 // loop_exit
        _
    $region773: #{tpu_custom_call.1} parent=1 // pred_fallthru
      _
    // Predicated region
    $region792: #{tpu_custom_call.1} parent=1 // pred_check
      _
    $region793: #{tpu_custom_call.1} parent=1 // pred_check_branch
      %1281 = sbr.rel (0) target = $region795
    $region794: #{tpu_custom_call.1} parent=1 // pred_region
      %1282 = vsyncadd %s1238, 16
    $region795: #{tpu_custom_call.1} parent=1 // pred_fallthru
      _
    %s1283 = sld [smem:[#allocation10 + $0x1]]
    %s1284 = scalar_lea.vmem %s7, %s1283
    %s1285 = scalar_lea.vmem [#allocation2], 25
    %s1286 = scalar_lea.sflag [#allocation3], 25
    %p1288 = scmp.lt.u32.totalorder 1, 8
    %p1289 = pneg %p1288
    // Predicated region
    $region796: #{tpu_custom_call.1} parent=1 // pred_check
      _
    $region797: #{tpu_custom_call.1} parent=1 // pred_check_branch
      %1291 = sbr.rel (%p1288) target = $region799
    $region798: #{tpu_custom_call.1} parent=1 // pred_region
      %s1306 = sand.u32 1, 7
      %p1307 = scmp.eq.s32.totalorder %s1306, 0
      %p1308 = pneg %p1307
      // Predicated region
      $region811: #{tpu_custom_call.1} parent=798 // pred_check
        _
      $region812: #{tpu_custom_call.1} parent=798 // pred_check_branch
        %1310 = sbr.rel (%p1307) target = $region814
      $region813: #{tpu_custom_call.1} parent=798 // pred_region
        %s1311 = sand.u32 1, 7
        %s1312 = ssub.s32 1, %s1311
        %s1313 = scalar_lea.vmem %s1284, %s1312
        %s1314 = ssub.s32 1, %s1311
        %s1315 = scalar_lea.vmem %s1285, %s1314 [#allocation2]
        %s1316 = sshllo.u32 0, %s1311
        loop: start=0, step=1, limit=1
        $region815: #{tpu_custom_call.1} parent=813 // loop_pre_header
          _
        $region816: #{tpu_custom_call.1} parent=813 // loop_header
          %s1318 = sphi 0, %s1322
          %p1319 = scmp.ge.s32.totalorder %s1318, 1
          %s1323 = sphi %s1313, %s1313
          %s1324 = sphi %s1315, %s1315
        $region817: #{tpu_custom_call.1} parent=813 // loop_header_branch
          %1321 = sbr.rel (%p1319) target = $region821
        $region818: #{tpu_custom_call.1} parent=813 // loop_body
          %v1325 = vld [vmem:[%s1323] sm:%s1316]
          %1326 = vst [vmem:[%s1324] sm:%s1316] %v1325
        $region819: #{tpu_custom_call.1} parent=813 // loop_footer
          %s1322 = sadd.s32 1, %s1318
        $region820: #{tpu_custom_call.1} parent=813 // loop_footer_branch
          %1317 = sbr.rel target = $region816
        $region821: #{tpu_custom_call.1} parent=813 // loop_exit
          _
      $region814: #{tpu_custom_call.1} parent=798 // pred_fallthru
        _
    $region799: #{tpu_custom_call.1} parent=1 // pred_fallthru
      _
    // Predicated region
    $region800: #{tpu_custom_call.1} parent=1 // pred_check
      %p1292 = pneg %p1288
    $region801: #{tpu_custom_call.1} parent=1 // pred_check_branch
      %1294 = sbr.rel (%p1292) target = $region803
    $region802: #{tpu_custom_call.1} parent=1 // pred_region
      %s1295 = sshllo.u32 0, 1
      loop: start=0, step=1, limit=1
      $region804: #{tpu_custom_call.1} parent=802 // loop_pre_header
        _
      $region805: #{tpu_custom_call.1} parent=802 // loop_header
        %s1297 = sphi 0, %s1301
        %p1298 = scmp.ge.s32.totalorder %s1297, 1
        %s1302 = sphi %s1284, %s1284
        %s1303 = sphi %s1285, %s1285
      $region806: #{tpu_custom_call.1} parent=802 // loop_header_branch
        %1300 = sbr.rel (%p1298) target = $region810
      $region807: #{tpu_custom_call.1} parent=802 // loop_body
        %v1304 = vld [vmem:[%s1302] sm:%s1295]
        %1305 = vst [vmem:[%s1303] sm:%s1295] %v1304
      $region808: #{tpu_custom_call.1} parent=802 // loop_footer
        %s1301 = sadd.s32 1, %s1297
      $region809: #{tpu_custom_call.1} parent=802 // loop_footer_branch
        %1296 = sbr.rel target = $region805
      $region810: #{tpu_custom_call.1} parent=802 // loop_exit
        _
    $region803: #{tpu_custom_call.1} parent=1 // pred_fallthru
      _
    // Predicated region
    $region822: #{tpu_custom_call.1} parent=1 // pred_check
      _
    $region823: #{tpu_custom_call.1} parent=1 // pred_check_branch
      %1329 = sbr.rel (0) target = $region825
    $region824: #{tpu_custom_call.1} parent=1 // pred_region
      %1330 = vsyncadd %s1286, 16
    $region825: #{tpu_custom_call.1} parent=1 // pred_fallthru
      _
    %s1331 = sld [smem:[#allocation10 + $0x2]]
    %s1332 = scalar_lea.vmem %s7, %s1331
    %s1333 = scalar_lea.vmem [#allocation2], 26
    %s1334 = scalar_lea.sflag [#allocation3], 26
    %p1336 = scmp.lt.u32.totalorder 1, 8
    %p1337 = pneg %p1336
    // Predicated region
    $region826: #{tpu_custom_call.1} parent=1 // pred_check
      _
    $region827: #{tpu_custom_call.1} parent=1 // pred_check_branch
      %1339 = sbr.rel (%p1336) target = $region829
    $region828: #{tpu_custom_call.1} parent=1 // pred_region
      %s1354 = sand.u32 1, 7
      %p1355 = scmp.eq.s32.totalorder %s1354, 0
      %p1356 = pneg %p1355
      // Predicated region
      $region841: #{tpu_custom_call.1} parent=828 // pred_check
        _
      $region842: #{tpu_custom_call.1} parent=828 // pred_check_branch
        %1358 = sbr.rel (%p1355) target = $region844
      $region843: #{tpu_custom_call.1} parent=828 // pred_region
        %s1359 = sand.u32 1, 7
        %s1360 = ssub.s32 1, %s1359
        %s1361 = scalar_lea.vmem %s1332, %s1360
        %s1362 = ssub.s32 1, %s1359
        %s1363 = scalar_lea.vmem %s1333, %s1362 [#allocation2]
        %s1364 = sshllo.u32 0, %s1359
        loop: start=0, step=1, limit=1
        $region845: #{tpu_custom_call.1} parent=843 // loop_pre_header
          _
        $region846: #{tpu_custom_call.1} parent=843 // loop_header
          %s1366 = sphi 0, %s1370
          %p1367 = scmp.ge.s32.totalorder %s1366, 1
          %s1371 = sphi %s1361, %s1361
          %s1372 = sphi %s1363, %s1363
        $region847: #{tpu_custom_call.1} parent=843 // loop_header_branch
          %1369 = sbr.rel (%p1367) target = $region851
        $region848: #{tpu_custom_call.1} parent=843 // loop_body
          %v1373 = vld [vmem:[%s1371] sm:%s1364]
          %1374 = vst [vmem:[%s1372] sm:%s1364] %v1373
        $region849: #{tpu_custom_call.1} parent=843 // loop_footer
          %s1370 = sadd.s32 1, %s1366
        $region850: #{tpu_custom_call.1} parent=843 // loop_footer_branch
          %1365 = sbr.rel target = $region846
        $region851: #{tpu_custom_call.1} parent=843 // loop_exit
          _
      $region844: #{tpu_custom_call.1} parent=828 // pred_fallthru
        _
    $region829: #{tpu_custom_call.1} parent=1 // pred_fallthru
      _
    // Predicated region
    $region830: #{tpu_custom_call.1} parent=1 // pred_check
      %p1340 = pneg %p1336
    $region831: #{tpu_custom_call.1} parent=1 // pred_check_branch
      %1342 = sbr.rel (%p1340) target = $region833
    $region832: #{tpu_custom_call.1} parent=1 // pred_region
      %s1343 = sshllo.u32 0, 1
      loop: start=0, step=1, limit=1
      $region834: #{tpu_custom_call.1} parent=832 // loop_pre_header
        _
      $region835: #{tpu_custom_call.1} parent=832 // loop_header
        %s1345 = sphi 0, %s1349
        %p1346 = scmp.ge.s32.totalorder %s1345, 1
        %s1350 = sphi %s1332, %s1332
        %s1351 = sphi %s1333, %s1333
      $region836: #{tpu_custom_call.1} parent=832 // loop_header_branch
        %1348 = sbr.rel (%p1346) target = $region840
      $region837: #{tpu_custom_call.1} parent=832 // loop_body
        %v1352 = vld [vmem:[%s1350] sm:%s1343]
        %1353 = vst [vmem:[%s1351] sm:%s1343] %v1352
      $region838: #{tpu_custom_call.1} parent=832 // loop_footer
        %s1349 = sadd.s32 1, %s1345
      $region839: #{tpu_custom_call.1} parent=832 // loop_footer_branch
        %1344 = sbr.rel target = $region835
      $region840: #{tpu_custom_call.1} parent=832 // loop_exit
        _
    $region833: #{tpu_custom_call.1} parent=1 // pred_fallthru
      _
    // Predicated region
    $region852: #{tpu_custom_call.1} parent=1 // pred_check
      _
    $region853: #{tpu_custom_call.1} parent=1 // pred_check_branch
      %1377 = sbr.rel (0) target = $region855
    $region854: #{tpu_custom_call.1} parent=1 // pred_region
      %1378 = vsyncadd %s1334, 16
    $region855: #{tpu_custom_call.1} parent=1 // pred_fallthru
      _
    %s1379 = sld [smem:[#allocation10 + $0x3]]
    %s1380 = scalar_lea.vmem %s7, %s1379
    %s1381 = scalar_lea.vmem [#allocation2], 27
    %s1382 = scalar_lea.sflag [#allocation3], 27
    %p1384 = scmp.lt.u32.totalorder 1, 8
    %p1385 = pneg %p1384
    // Predicated region
    $region856: #{tpu_custom_call.1} parent=1 // pred_check
      _
    $region857: #{tpu_custom_call.1} parent=1 // pred_check_branch
      %1387 = sbr.rel (%p1384) target = $region859
    $region858: #{tpu_custom_call.1} parent=1 // pred_region
      %s1402 = sand.u32 1, 7
      %p1403 = scmp.eq.s32.totalorder %s1402, 0
      %p1404 = pneg %p1403
      // Predicated region
      $region871: #{tpu_custom_call.1} parent=858 // pred_check
        _
      $region872: #{tpu_custom_call.1} parent=858 // pred_check_branch
        %1406 = sbr.rel (%p1403) target = $region874
      $region873: #{tpu_custom_call.1} parent=858 // pred_region
        %s1407 = sand.u32 1, 7
        %s1408 = ssub.s32 1, %s1407
        %s1409 = scalar_lea.vmem %s1380, %s1408
        %s1410 = ssub.s32 1, %s1407
        %s1411 = scalar_lea.vmem %s1381, %s1410 [#allocation2]
        %s1412 = sshllo.u32 0, %s1407
        loop: start=0, step=1, limit=1
        $region875: #{tpu_custom_call.1} parent=873 // loop_pre_header
          _
        $region876: #{tpu_custom_call.1} parent=873 // loop_header
          %s1414 = sphi 0, %s1418
          %p1415 = scmp.ge.s32.totalorder %s1414, 1
          %s1419 = sphi %s1409, %s1409
          %s1420 = sphi %s1411, %s1411
        $region877: #{tpu_custom_call.1} parent=873 // loop_header_branch
          %1417 = sbr.rel (%p1415) target = $region881
        $region878: #{tpu_custom_call.1} parent=873 // loop_body
          %v1421 = vld [vmem:[%s1419] sm:%s1412]
          %1422 = vst [vmem:[%s1420] sm:%s1412] %v1421
        $region879: #{tpu_custom_call.1} parent=873 // loop_footer
          %s1418 = sadd.s32 1, %s1414
        $region880: #{tpu_custom_call.1} parent=873 // loop_footer_branch
          %1413 = sbr.rel target = $region876
        $region881: #{tpu_custom_call.1} parent=873 // loop_exit
          _
      $region874: #{tpu_custom_call.1} parent=858 // pred_fallthru
        _
    $region859: #{tpu_custom_call.1} parent=1 // pred_fallthru
      _
    // Predicated region
    $region860: #{tpu_custom_call.1} parent=1 // pred_check
      %p1388 = pneg %p1384
    $region861: #{tpu_custom_call.1} parent=1 // pred_check_branch
      %1390 = sbr.rel (%p1388) target = $region863
    $region862: #{tpu_custom_call.1} parent=1 // pred_region
      %s1391 = sshllo.u32 0, 1
      loop: start=0, step=1, limit=1
      $region864: #{tpu_custom_call.1} parent=862 // loop_pre_header
        _
      $region865: #{tpu_custom_call.1} parent=862 // loop_header
        %s1393 = sphi 0, %s1397
        %p1394 = scmp.ge.s32.totalorder %s1393, 1
        %s1398 = sphi %s1380, %s1380
        %s1399 = sphi %s1381, %s1381
      $region866: #{tpu_custom_call.1} parent=862 // loop_header_branch
        %1396 = sbr.rel (%p1394) target = $region870
      $region867: #{tpu_custom_call.1} parent=862 // loop_body
        %v1400 = vld [vmem:[%s1398] sm:%s1391]
        %1401 = vst [vmem:[%s1399] sm:%s1391] %v1400
      $region868: #{tpu_custom_call.1} parent=862 // loop_footer
        %s1397 = sadd.s32 1, %s1393
      $region869: #{tpu_custom_call.1} parent=862 // loop_footer_branch
        %1392 = sbr.rel target = $region865
      $region870: #{tpu_custom_call.1} parent=862 // loop_exit
        _
    $region863: #{tpu_custom_call.1} parent=1 // pred_fallthru
      _
    // Predicated region
    $region882: #{tpu_custom_call.1} parent=1 // pred_check
      _
    $region883: #{tpu_custom_call.1} parent=1 // pred_check_branch
      %1425 = sbr.rel (0) target = $region885
    $region884: #{tpu_custom_call.1} parent=1 // pred_region
      %1426 = vsyncadd %s1382, 16
    $region885: #{tpu_custom_call.1} parent=1 // pred_fallthru
      _
    %s1427 = sld [smem:[#allocation10 + $0x4]]
    %s1428 = scalar_lea.vmem %s7, %s1427
    %s1429 = scalar_lea.vmem [#allocation2], 28
    %s1430 = scalar_lea.sflag [#allocation3], 28
    %p1432 = scmp.lt.u32.totalorder 1, 8
    %p1433 = pneg %p1432
    // Predicated region
    $region886: #{tpu_custom_call.1} parent=1 // pred_check
      _
    $region887: #{tpu_custom_call.1} parent=1 // pred_check_branch
      %1435 = sbr.rel (%p1432) target = $region889
    $region888: #{tpu_custom_call.1} parent=1 // pred_region
      %s1450 = sand.u32 1, 7
      %p1451 = scmp.eq.s32.totalorder %s1450, 0
      %p1452 = pneg %p1451
      // Predicated region
      $region901: #{tpu_custom_call.1} parent=888 // pred_check
        _
      $region902: #{tpu_custom_call.1} parent=888 // pred_check_branch
        %1454 = sbr.rel (%p1451) target = $region904
      $region903: #{tpu_custom_call.1} parent=888 // pred_region
        %s1455 = sand.u32 1, 7
        %s1456 = ssub.s32 1, %s1455
        %s1457 = scalar_lea.vmem %s1428, %s1456
        %s1458 = ssub.s32 1, %s1455
        %s1459 = scalar_lea.vmem %s1429, %s1458 [#allocation2]
        %s1460 = sshllo.u32 0, %s1455
        loop: start=0, step=1, limit=1
        $region905: #{tpu_custom_call.1} parent=903 // loop_pre_header
          _
        $region906: #{tpu_custom_call.1} parent=903 // loop_header
          %s1462 = sphi 0, %s1466
          %p1463 = scmp.ge.s32.totalorder %s1462, 1
          %s1467 = sphi %s1457, %s1457
          %s1468 = sphi %s1459, %s1459
        $region907: #{tpu_custom_call.1} parent=903 // loop_header_branch
          %1465 = sbr.rel (%p1463) target = $region911
        $region908: #{tpu_custom_call.1} parent=903 // loop_body
          %v1469 = vld [vmem:[%s1467] sm:%s1460]
          %1470 = vst [vmem:[%s1468] sm:%s1460] %v1469
        $region909: #{tpu_custom_call.1} parent=903 // loop_footer
          %s1466 = sadd.s32 1, %s1462
        $region910: #{tpu_custom_call.1} parent=903 // loop_footer_branch
          %1461 = sbr.rel target = $region906
        $region911: #{tpu_custom_call.1} parent=903 // loop_exit
          _
      $region904: #{tpu_custom_call.1} parent=888 // pred_fallthru
        _
    $region889: #{tpu_custom_call.1} parent=1 // pred_fallthru
      _
    // Predicated region
    $region890: #{tpu_custom_call.1} parent=1 // pred_check
      %p1436 = pneg %p1432
    $region891: #{tpu_custom_call.1} parent=1 // pred_check_branch
      %1438 = sbr.rel (%p1436) target = $region893
    $region892: #{tpu_custom_call.1} parent=1 // pred_region
      %s1439 = sshllo.u32 0, 1
      loop: start=0, step=1, limit=1
      $region894: #{tpu_custom_call.1} parent=892 // loop_pre_header
        _
      $region895: #{tpu_custom_call.1} parent=892 // loop_header
        %s1441 = sphi 0, %s1445
        %p1442 = scmp.ge.s32.totalorder %s1441, 1
        %s1446 = sphi %s1428, %s1428
        %s1447 = sphi %s1429, %s1429
      $region896: #{tpu_custom_call.1} parent=892 // loop_header_branch
        %1444 = sbr.rel (%p1442) target = $region900
      $region897: #{tpu_custom_call.1} parent=892 // loop_body
        %v1448 = vld [vmem:[%s1446] sm:%s1439]
        %1449 = vst [vmem:[%s1447] sm:%s1439] %v1448
      $region898: #{tpu_custom_call.1} parent=892 // loop_footer
        %s1445 = sadd.s32 1, %s1441
      $region899: #{tpu_custom_call.1} parent=892 // loop_footer_branch
        %1440 = sbr.rel target = $region895
      $region900: #{tpu_custom_call.1} parent=892 // loop_exit
        _
    $region893: #{tpu_custom_call.1} parent=1 // pred_fallthru
      _
    // Predicated region
    $region912: #{tpu_custom_call.1} parent=1 // pred_check
      _
    $region913: #{tpu_custom_call.1} parent=1 // pred_check_branch
      %1473 = sbr.rel (0) target = $region915
    $region914: #{tpu_custom_call.1} parent=1 // pred_region
      %1474 = vsyncadd %s1430, 16
    $region915: #{tpu_custom_call.1} parent=1 // pred_fallthru
      _
    %s1475 = sld [smem:[#allocation10 + $0x5]]
    %s1476 = scalar_lea.vmem %s7, %s1475
    %s1477 = scalar_lea.vmem [#allocation2], 29
    %s1478 = scalar_lea.sflag [#allocation3], 29
    %p1480 = scmp.lt.u32.totalorder 1, 8
    %p1481 = pneg %p1480
    // Predicated region
    $region916: #{tpu_custom_call.1} parent=1 // pred_check
      _
    $region917: #{tpu_custom_call.1} parent=1 // pred_check_branch
      %1483 = sbr.rel (%p1480) target = $region919
    $region918: #{tpu_custom_call.1} parent=1 // pred_region
      %s1498 = sand.u32 1, 7
      %p1499 = scmp.eq.s32.totalorder %s1498, 0
      %p1500 = pneg %p1499
      // Predicated region
      $region931: #{tpu_custom_call.1} parent=918 // pred_check
        _
      $region932: #{tpu_custom_call.1} parent=918 // pred_check_branch
        %1502 = sbr.rel (%p1499) target = $region934
      $region933: #{tpu_custom_call.1} parent=918 // pred_region
        %s1503 = sand.u32 1, 7
        %s1504 = ssub.s32 1, %s1503
        %s1505 = scalar_lea.vmem %s1476, %s1504
        %s1506 = ssub.s32 1, %s1503
        %s1507 = scalar_lea.vmem %s1477, %s1506 [#allocation2]
        %s1508 = sshllo.u32 0, %s1503
        loop: start=0, step=1, limit=1
        $region935: #{tpu_custom_call.1} parent=933 // loop_pre_header
          _
        $region936: #{tpu_custom_call.1} parent=933 // loop_header
          %s1510 = sphi 0, %s1514
          %p1511 = scmp.ge.s32.totalorder %s1510, 1
          %s1515 = sphi %s1505, %s1505
          %s1516 = sphi %s1507, %s1507
        $region937: #{tpu_custom_call.1} parent=933 // loop_header_branch
          %1513 = sbr.rel (%p1511) target = $region941
        $region938: #{tpu_custom_call.1} parent=933 // loop_body
          %v1517 = vld [vmem:[%s1515] sm:%s1508]
          %1518 = vst [vmem:[%s1516] sm:%s1508] %v1517
        $region939: #{tpu_custom_call.1} parent=933 // loop_footer
          %s1514 = sadd.s32 1, %s1510
        $region940: #{tpu_custom_call.1} parent=933 // loop_footer_branch
          %1509 = sbr.rel target = $region936
        $region941: #{tpu_custom_call.1} parent=933 // loop_exit
          _
      $region934: #{tpu_custom_call.1} parent=918 // pred_fallthru
        _
    $region919: #{tpu_custom_call.1} parent=1 // pred_fallthru
      _
    // Predicated region
    $region920: #{tpu_custom_call.1} parent=1 // pred_check
      %p1484 = pneg %p1480
    $region921: #{tpu_custom_call.1} parent=1 // pred_check_branch
      %1486 = sbr.rel (%p1484) target = $region923
    $region922: #{tpu_custom_call.1} parent=1 // pred_region
      %s1487 = sshllo.u32 0, 1
      loop: start=0, step=1, limit=1
      $region924: #{tpu_custom_call.1} parent=922 // loop_pre_header
        _
      $region925: #{tpu_custom_call.1} parent=922 // loop_header
        %s1489 = sphi 0, %s1493
        %p1490 = scmp.ge.s32.totalorder %s1489, 1
        %s1494 = sphi %s1476, %s1476
        %s1495 = sphi %s1477, %s1477
      $region926: #{tpu_custom_call.1} parent=922 // loop_header_branch
        %1492 = sbr.rel (%p1490) target = $region930
      $region927: #{tpu_custom_call.1} parent=922 // loop_body
        %v1496 = vld [vmem:[%s1494] sm:%s1487]
        %1497 = vst [vmem:[%s1495] sm:%s1487] %v1496
      $region928: #{tpu_custom_call.1} parent=922 // loop_footer
        %s1493 = sadd.s32 1, %s1489
      $region929: #{tpu_custom_call.1} parent=922 // loop_footer_branch
        %1488 = sbr.rel target = $region925
      $region930: #{tpu_custom_call.1} parent=922 // loop_exit
        _
    $region923: #{tpu_custom_call.1} parent=1 // pred_fallthru
      _
    // Predicated region
    $region942: #{tpu_custom_call.1} parent=1 // pred_check
      _
    $region943: #{tpu_custom_call.1} parent=1 // pred_check_branch
      %1521 = sbr.rel (0) target = $region945
    $region944: #{tpu_custom_call.1} parent=1 // pred_region
      %1522 = vsyncadd %s1478, 16
    $region945: #{tpu_custom_call.1} parent=1 // pred_fallthru
      _
    %s1523 = sld [smem:[#allocation10 + $0x6]]
    %s1524 = scalar_lea.vmem %s7, %s1523
    %s1525 = scalar_lea.vmem [#allocation2], 30
    %s1526 = scalar_lea.sflag [#allocation3], 30
    %p1528 = scmp.lt.u32.totalorder 1, 8
    %p1529 = pneg %p1528
    // Predicated region
    $region946: #{tpu_custom_call.1} parent=1 // pred_check
      _
    $region947: #{tpu_custom_call.1} parent=1 // pred_check_branch
      %1531 = sbr.rel (%p1528) target = $region949
    $region948: #{tpu_custom_call.1} parent=1 // pred_region
      %s1546 = sand.u32 1, 7
      %p1547 = scmp.eq.s32.totalorder %s1546, 0
      %p1548 = pneg %p1547
      // Predicated region
      $region961: #{tpu_custom_call.1} parent=948 // pred_check
        _
      $region962: #{tpu_custom_call.1} parent=948 // pred_check_branch
        %1550 = sbr.rel (%p1547) target = $region964
      $region963: #{tpu_custom_call.1} parent=948 // pred_region
        %s1551 = sand.u32 1, 7
        %s1552 = ssub.s32 1, %s1551
        %s1553 = scalar_lea.vmem %s1524, %s1552
        %s1554 = ssub.s32 1, %s1551
        %s1555 = scalar_lea.vmem %s1525, %s1554 [#allocation2]
        %s1556 = sshllo.u32 0, %s1551
        loop: start=0, step=1, limit=1
        $region965: #{tpu_custom_call.1} parent=963 // loop_pre_header
          _
        $region966: #{tpu_custom_call.1} parent=963 // loop_header
          %s1558 = sphi 0, %s1562
          %p1559 = scmp.ge.s32.totalorder %s1558, 1
          %s1563 = sphi %s1553, %s1553
          %s1564 = sphi %s1555, %s1555
        $region967: #{tpu_custom_call.1} parent=963 // loop_header_branch
          %1561 = sbr.rel (%p1559) target = $region971
        $region968: #{tpu_custom_call.1} parent=963 // loop_body
          %v1565 = vld [vmem:[%s1563] sm:%s1556]
          %1566 = vst [vmem:[%s1564] sm:%s1556] %v1565
        $region969: #{tpu_custom_call.1} parent=963 // loop_footer
          %s1562 = sadd.s32 1, %s1558
        $region970: #{tpu_custom_call.1} parent=963 // loop_footer_branch
          %1557 = sbr.rel target = $region966
        $region971: #{tpu_custom_call.1} parent=963 // loop_exit
          _
      $region964: #{tpu_custom_call.1} parent=948 // pred_fallthru
        _
    $region949: #{tpu_custom_call.1} parent=1 // pred_fallthru
      _
    // Predicated region
    $region950: #{tpu_custom_call.1} parent=1 // pred_check
      %p1532 = pneg %p1528
    $region951: #{tpu_custom_call.1} parent=1 // pred_check_branch
      %1534 = sbr.rel (%p1532) target = $region953
    $region952: #{tpu_custom_call.1} parent=1 // pred_region
      %s1535 = sshllo.u32 0, 1
      loop: start=0, step=1, limit=1
      $region954: #{tpu_custom_call.1} parent=952 // loop_pre_header
        _
      $region955: #{tpu_custom_call.1} parent=952 // loop_header
        %s1537 = sphi 0, %s1541
        %p1538 = scmp.ge.s32.totalorder %s1537, 1
        %s1542 = sphi %s1524, %s1524
        %s1543 = sphi %s1525, %s1525
      $region956: #{tpu_custom_call.1} parent=952 // loop_header_branch
        %1540 = sbr.rel (%p1538) target = $region960
      $region957: #{tpu_custom_call.1} parent=952 // loop_body
        %v1544 = vld [vmem:[%s1542] sm:%s1535]
        %1545 = vst [vmem:[%s1543] sm:%s1535] %v1544
      $region958: #{tpu_custom_call.1} parent=952 // loop_footer
        %s1541 = sadd.s32 1, %s1537
      $region959: #{tpu_custom_call.1} parent=952 // loop_footer_branch
        %1536 = sbr.rel target = $region955
      $region960: #{tpu_custom_call.1} parent=952 // loop_exit
        _
    $region953: #{tpu_custom_call.1} parent=1 // pred_fallthru
      _
    // Predicated region
    $region972: #{tpu_custom_call.1} parent=1 // pred_check
      _
    $region973: #{tpu_custom_call.1} parent=1 // pred_check_branch
      %1569 = sbr.rel (0) target = $region975
    $region974: #{tpu_custom_call.1} parent=1 // pred_region
      %1570 = vsyncadd %s1526, 16
    $region975: #{tpu_custom_call.1} parent=1 // pred_fallthru
      _
    %s1571 = sld [smem:[#allocation10 + $0x7]]
    %s1572 = scalar_lea.vmem %s7, %s1571
    %s1573 = scalar_lea.vmem [#allocation2], 31
    %s1574 = scalar_lea.sflag [#allocation3], 31
    %p1576 = scmp.lt.u32.totalorder 1, 8
    %p1577 = pneg %p1576
    // Predicated region
    $region976: #{tpu_custom_call.1} parent=1 // pred_check
      _
    $region977: #{tpu_custom_call.1} parent=1 // pred_check_branch
      %1579 = sbr.rel (%p1576) target = $region979
    $region978: #{tpu_custom_call.1} parent=1 // pred_region
      %s1594 = sand.u32 1, 7
      %p1595 = scmp.eq.s32.totalorder %s1594, 0
      %p1596 = pneg %p1595
      // Predicated region
      $region991: #{tpu_custom_call.1} parent=978 // pred_check
        _
      $region992: #{tpu_custom_call.1} parent=978 // pred_check_branch
        %1598 = sbr.rel (%p1595) target = $region994
      $region993: #{tpu_custom_call.1} parent=978 // pred_region
        %s1599 = sand.u32 1, 7
        %s1600 = ssub.s32 1, %s1599
        %s1601 = scalar_lea.vmem %s1572, %s1600
        %s1602 = ssub.s32 1, %s1599
        %s1603 = scalar_lea.vmem %s1573, %s1602 [#allocation2]
        %s1604 = sshllo.u32 0, %s1599
        loop: start=0, step=1, limit=1
        $region995: #{tpu_custom_call.1} parent=993 // loop_pre_header
          _
        $region996: #{tpu_custom_call.1} parent=993 // loop_header
          %s1606 = sphi 0, %s1610
          %p1607 = scmp.ge.s32.totalorder %s1606, 1
          %s1611 = sphi %s1601, %s1601
          %s1612 = sphi %s1603, %s1603
        $region997: #{tpu_custom_call.1} parent=993 // loop_header_branch
          %1609 = sbr.rel (%p1607) target = $region1001
        $region998: #{tpu_custom_call.1} parent=993 // loop_body
          %v1613 = vld [vmem:[%s1611] sm:%s1604]
          %1614 = vst [vmem:[%s1612] sm:%s1604] %v1613
        $region999: #{tpu_custom_call.1} parent=993 // loop_footer
          %s1610 = sadd.s32 1, %s1606
        $region1000: #{tpu_custom_call.1} parent=993 // loop_footer_branch
          %1605 = sbr.rel target = $region996
        $region1001: #{tpu_custom_call.1} parent=993 // loop_exit
          _
      $region994: #{tpu_custom_call.1} parent=978 // pred_fallthru
        _
    $region979: #{tpu_custom_call.1} parent=1 // pred_fallthru
      _
    // Predicated region
    $region980: #{tpu_custom_call.1} parent=1 // pred_check
      %p1580 = pneg %p1576
    $region981: #{tpu_custom_call.1} parent=1 // pred_check_branch
      %1582 = sbr.rel (%p1580) target = $region983
    $region982: #{tpu_custom_call.1} parent=1 // pred_region
      %s1583 = sshllo.u32 0, 1
      loop: start=0, step=1, limit=1
      $region984: #{tpu_custom_call.1} parent=982 // loop_pre_header
        _
      $region985: #{tpu_custom_call.1} parent=982 // loop_header
        %s1585 = sphi 0, %s1589
        %p1586 = scmp.ge.s32.totalorder %s1585, 1
        %s1590 = sphi %s1572, %s1572
        %s1591 = sphi %s1573, %s1573
      $region986: #{tpu_custom_call.1} parent=982 // loop_header_branch
        %1588 = sbr.rel (%p1586) target = $region990
      $region987: #{tpu_custom_call.1} parent=982 // loop_body
        %v1592 = vld [vmem:[%s1590] sm:%s1583]
        %1593 = vst [vmem:[%s1591] sm:%s1583] %v1592
      $region988: #{tpu_custom_call.1} parent=982 // loop_footer
        %s1589 = sadd.s32 1, %s1585
      $region989: #{tpu_custom_call.1} parent=982 // loop_footer_branch
        %1584 = sbr.rel target = $region985
      $region990: #{tpu_custom_call.1} parent=982 // loop_exit
        _
    $region983: #{tpu_custom_call.1} parent=1 // pred_fallthru
      _
    // Predicated region
    $region1002: #{tpu_custom_call.1} parent=1 // pred_check
      _
    $region1003: #{tpu_custom_call.1} parent=1 // pred_check_branch
      %1617 = sbr.rel (0) target = $region1005
    $region1004: #{tpu_custom_call.1} parent=1 // pred_region
      %1618 = vsyncadd %s1574, 16
    $region1005: #{tpu_custom_call.1} parent=1 // pred_fallthru
      _
    %s1619 = sld [smem:[#allocation12]]
    %s1620 = sld [smem:[#allocation12 + $0x1]]
    %s1621 = sld [smem:[#allocation12 + $0x2]]
    %s1622 = sld [smem:[#allocation12 + $0x3]]
    %s1623 = sld [smem:[#allocation12 + $0x4]]
    %s1624 = smul.u32 1, 1
    %s1625 = sshll.u32 %s1624, 4
    %1626 = dma.done [#allocation3], %s1625
    %s1627 = sshll.u32 %s1624, 4
    %1628 = dma.done %s134, %s1627
    %s1629 = sshll.u32 %s1624, 4
    %1630 = dma.done %s182, %s1629
    %s1631 = sshll.u32 %s1624, 4
    %1632 = dma.done %s230, %s1631
    %s1633 = sshll.u32 %s1624, 4
    %1634 = dma.done %s278, %s1633
    %s1635 = sshll.u32 %s1624, 4
    %1636 = dma.done %s326, %s1635
    %s1637 = sshll.u32 %s1624, 4
    %1638 = dma.done %s374, %s1637
    %s1639 = sshll.u32 %s1624, 4
    %1640 = dma.done %s422, %s1639
    %s1641 = sshll.u32 %s1624, 4
    %1642 = dma.done %s470, %s1641
    %s1643 = sshll.u32 %s1624, 4
    %1644 = dma.done %s518, %s1643
    %s1645 = sshll.u32 %s1624, 4
    %1646 = dma.done %s566, %s1645
    %s1647 = sshll.u32 %s1624, 4
    %1648 = dma.done %s614, %s1647
    %s1649 = sshll.u32 %s1624, 4
    %1650 = dma.done %s662, %s1649
    %s1651 = sshll.u32 %s1624, 4
    %1652 = dma.done %s710, %s1651
    %s1653 = sshll.u32 %s1624, 4
    %1654 = dma.done %s758, %s1653
    %s1655 = sshll.u32 %s1624, 4
    %1656 = dma.done %s806, %s1655
    %s1657 = sshll.u32 %s1624, 4
    %1658 = dma.done %s854, %s1657
    %s1659 = sshll.u32 %s1624, 4
    %1660 = dma.done %s902, %s1659
    %s1661 = sshll.u32 %s1624, 4
    %1662 = dma.done %s950, %s1661
    %s1663 = sshll.u32 %s1624, 4
    %1664 = dma.done %s998, %s1663
    %s1665 = sshll.u32 %s1624, 4
    %1666 = dma.done %s1046, %s1665
    %s1667 = sshll.u32 %s1624, 4
    %1668 = dma.done %s1094, %s1667
    %s1669 = sshll.u32 %s1624, 4
    %1670 = dma.done %s1142, %s1669
    %s1671 = sshll.u32 %s1624, 4
    %1672 = dma.done %s1190, %s1671
    %s1673 = sshll.u32 %s1624, 4
    %1674 = dma.done %s1238, %s1673
    %s1675 = sshll.u32 %s1624, 4
    %1676 = dma.done %s1286, %s1675
    %s1677 = sshll.u32 %s1624, 4
    %1678 = dma.done %s1334, %s1677
    %s1679 = sshll.u32 %s1624, 4
    %1680 = dma.done %s1382, %s1679
    %s1681 = sshll.u32 %s1624, 4
    %1682 = dma.done %s1430, %s1681
    %s1683 = sshll.u32 %s1624, 4
    %1684 = dma.done %s1478, %s1683
    %s1685 = sshll.u32 %s1624, 4
    %1686 = dma.done %s1526, %s1685
    %s1687 = sshll.u32 %s1624, 4
    %1688 = dma.done %s1574, %s1687
    %v1689 = vld [vmem:[#allocation2] sm:$0xff]
    %v1690 = vld [vmem:[#allocation2 + $0x8] sm:$0xff]
    %v1691 = vld [vmem:[#allocation2 + $0x10] sm:$0xff]
    %v1692 = vld [vmem:[#allocation2 + $0x18] sm:$0xff]
    %v1693 = vld [vmem:[%s5] sm:$0x3]
    %v1694 = vlaneseq
    %v1695 = vshrl.u32 %v1694, 7
    %v1696 = vsub.s32 0, %v1695
    %v1697 = vrot.slane %v1693, %v1696
    %v1698 = vmul.f32 %v1689, %v1697
    %vm1699 = vcmask 261120
    %v1700 = vsel %vm1699, %v1698, 0.0
    %1701 = vadd.xlane.f32.xlu0 %v1700
    %v1702 = vpop.xlane.xlu0 %1701
    %v1703 = vstv %s1619
    %v1704 = vadd.f32 %v1702, %v1703
    %v1705 = vmul.f32 %v1690, %v1697
    %v1706 = vsel %vm1699, %v1705, 0.0
    %1707 = vadd.xlane.f32.xlu0 %v1706
    %v1708 = vpop.xlane.xlu0 %1707
    %v1709 = vadd.f32 %v1708, %v1703
    %v1710 = vlaneseq
    %v1711 = vshrl.u32 %v1710, 7
    %v1712 = vsub.s32 1, %v1711
    %v1713 = vrot.slane %v1693, %v1712
    %v1714 = vmul.f32 %v1691, %v1713
    %v1715 = vsel %vm1699, %v1714, 0.0
    %1716 = vadd.xlane.f32.xlu0 %v1715
    %v1717 = vpop.xlane.xlu0 %1716
    %v1718 = vstv %s1620
    %v1719 = vadd.f32 %v1717, %v1718
    %v1720 = vmul.f32 %v1692, %v1713
    %v1721 = vsel %vm1699, %v1720, 0.0
    %1722 = vadd.xlane.f32.xlu0 %v1721
    %v1723 = vpop.xlane.xlu0 %1722
    %v1724 = vadd.f32 %v1723, %v1718
    %v1725 = vmul.f32 %v1689, %v1691
    %v1726 = vsel %vm1699, %v1725, 0.0
    %1727 = vadd.xlane.f32.xlu0 %v1726
    %v1728 = vpop.xlane.xlu0 %1727
    %v1729 = vmul.f32 %v1689, %v1692
    %v1730 = vsel %vm1699, %v1729, 0.0
    %1731 = vadd.xlane.f32.xlu0 %v1730
    %v1732 = vpop.xlane.xlu0 %1731
    %v1733 = vmul.f32 %v1689, %v1689
    %v1734 = vmul.f32 %v1691, %v1691
    %v1735 = vadd.f32 %v1733, %v1734
    %v1736 = vmul.f32 %v1692, %v1692
    %v1737 = vadd.f32 %v1735, %v1736
    %v1738 = vsel %vm1699, %v1737, 0.0
    %1739 = vadd.xlane.f32.xlu0 %v1738
    %v1740 = vpop.xlane.xlu0 %1739
    %v1741 = vrot.slane %v1740, 4
    %v1742 = vadd.f32 %v1740, %v1741
    %v1743 = vrot.slane %v1742, 2
    %v1744 = vadd.f32 %v1742, %v1743
    %v1745 = vrot.slane %v1744, 1
    %v1746 = vadd.f32 %v1744, %v1745
    %s1747 = vtos %v1746
    %v1748 = vxor.u32 %v1704, 2147483648
    %v1749 = vmul.f32 %v1748, 1.442695
    %v1750 = vpow.pop %v1749
    %v1751 = vadd.f32 %v1750, 1.0
    %v1752 = vrcp.pop %v1751
    %v1753 = vmul.f32 1.0, %v1752
    %v1754 = vxor.u32 %v1719, 2147483648
    %v1755 = vmul.f32 %v1754, 1.442695
    %v1756 = vpow.pop %v1755
    %v1757 = vadd.f32 %v1756, 1.0
    %v1758 = vrcp.pop %v1757
    %v1759 = vmul.f32 1.0, %v1758
    %v1760 = vxor.u32 %v1724, 2147483648
    %v1761 = vmul.f32 %v1760, 1.442695
    %v1762 = vpow.pop %v1761
    %v1763 = vadd.f32 %v1762, 1.0
    %v1764 = vrcp.pop %v1763
    %v1765 = vmul.f32 1.0, %v1764
    %v1766 = vlaneseq
    %v1767 = vshrl.u32 %v1766, 7
    %v1768 = vlaneseq
    %v1769 = vand.u32 %v1768, 127
    %vm1770 = vcmp.eq.s32.totalorder %v1767, %v1769
    %v1771 = vsel %vm1770, %v1728, 0.0
    %vm1772 = vcmask 64512
    %v1773 = vsel %vm1772, %v1771, 0.0
    %v1774 = vrot.slane %v1773, 4
    %v1775 = vadd.f32 %v1773, %v1774
    %v1776 = vrot.slane %v1775, 2
    %v1777 = vadd.f32 %v1775, %v1776
    %v1778 = vrot.slane %v1777, 1
    %v1779 = vadd.f32 %v1777, %v1778
    %v1780 = vsel %vm1770, %v1732, 0.0
    %v1781 = vsel %vm1772, %v1780, 0.0
    %v1782 = vrot.slane %v1781, 4
    %v1783 = vadd.f32 %v1781, %v1782
    %v1784 = vrot.slane %v1783, 2
    %v1785 = vadd.f32 %v1783, %v1784
    %v1786 = vrot.slane %v1785, 1
    %v1787 = vadd.f32 %v1785, %v1786
    %v1788 = vmul.f32 %v1753, %v1759
    %v1789 = vmul.f32 %v1788, %v1779
    %v1790 = vmul.f32 %v1753, %v1765
    %v1791 = vmul.f32 %v1790, %v1787
    %v1792 = vsub.f32 0.0, %v1789
    %v1793 = vmax.f32 %v1792, 0.0
    %v1794 = vand.u32 2147483647, %v1792
    %v1795 = vsub.f32 0.0, %v1794
    %v1796 = vmul.f32 %v1795, 1.442695
    %v1797 = vpow.pop %v1796
    %v1798 = vadd.f32 %v1797, 1.0
    %v1799 = vlog2.pop %v1798
    %v1800 = vmul.f32 %v1799, 0.6931472
    %v1801 = vmul.f32 -0.5, %v1797
    %v1802 = vadd.f32 %v1801, 1.0
    %v1803 = vmul.f32 %v1802, %v1797
    %v1804 = vand.u32 2147483647, %v1797
    %vm1805 = vcmp.lt.f32.partialorder %v1804, 0.0004427343
    %v1806 = vsel %vm1805, %v1803, %v1800
    %v1807 = vadd.f32 %v1793, %v1806
    %v1808 = vmax.f32 %v1791, 0.0
    %v1809 = vand.u32 2147483647, %v1791
    %v1810 = vsub.f32 0.0, %v1809
    %v1811 = vmul.f32 %v1810, 1.442695
    %v1812 = vpow.pop %v1811
    %v1813 = vadd.f32 %v1812, 1.0
    %v1814 = vlog2.pop %v1813
    %v1815 = vmul.f32 %v1814, 0.6931472
    %v1816 = vmul.f32 -0.5, %v1812
    %v1817 = vadd.f32 %v1816, 1.0
    %v1818 = vmul.f32 %v1817, %v1812
    %v1819 = vand.u32 2147483647, %v1812
    %vm1820 = vcmp.lt.f32.partialorder %v1819, 0.0004427343
    %v1821 = vsel %vm1820, %v1818, %v1815
    %v1822 = vadd.f32 %v1808, %v1821
    %v1823 = vadd.f32 %v1807, %v1822
    %v1824 = vsel %vm1772, %v1823, 0.0
    %1825 = vadd.xlane.f32.xlu0 %v1824
    %v1826 = vpop.xlane.xlu0 %1825
    %v1827 = vrot.slane %v1826, 4
    %v1828 = vadd.f32 %v1826, %v1827
    %v1829 = vrot.slane %v1828, 2
    %v1830 = vadd.f32 %v1828, %v1829
    %v1831 = vrot.slane %v1830, 1
    %v1832 = vadd.f32 %v1830, %v1831
    %s1833 = vtos %v1832
    %v1834 = vsub.f32 0.0, %v1704
    %v1835 = vmax.f32 %v1834, 0.0
    %v1836 = vand.u32 2147483647, %v1834
    %v1837 = vsub.f32 0.0, %v1836
    %v1838 = vmul.f32 %v1837, 1.442695
    %v1839 = vpow.pop %v1838
    %v1840 = vadd.f32 %v1839, 1.0
    %v1841 = vlog2.pop %v1840
    %v1842 = vmul.f32 %v1841, 0.6931472
    %v1843 = vmul.f32 -0.5, %v1839
    %v1844 = vadd.f32 %v1843, 1.0
    %v1845 = vmul.f32 %v1844, %v1839
    %v1846 = vand.u32 2147483647, %v1839
    %vm1847 = vcmp.lt.f32.partialorder %v1846, 0.0004427343
    %v1848 = vsel %vm1847, %v1845, %v1842
    %v1849 = vadd.f32 %v1835, %v1848
    %v1850 = vmax.f32 %v1709, 0.0
    %v1851 = vand.u32 2147483647, %v1709
    %v1852 = vsub.f32 0.0, %v1851
    %v1853 = vmul.f32 %v1852, 1.442695
    %v1854 = vpow.pop %v1853
    %v1855 = vadd.f32 %v1854, 1.0
    %v1856 = vlog2.pop %v1855
    %v1857 = vmul.f32 %v1856, 0.6931472
    %v1858 = vmul.f32 -0.5, %v1854
    %v1859 = vadd.f32 %v1858, 1.0
    %v1860 = vmul.f32 %v1859, %v1854
    %v1861 = vand.u32 2147483647, %v1854
    %vm1862 = vcmp.lt.f32.partialorder %v1861, 0.0004427343
    %v1863 = vsel %vm1862, %v1860, %v1857
    %v1864 = vadd.f32 %v1850, %v1863
    %v1865 = vadd.f32 %v1849, %v1864
    %v1866 = vstv %s1621
    %v1867 = vmul.f32 %v1866, %v1865
    %v1868 = vsub.f32 0.0, %v1719
    %v1869 = vmax.f32 %v1868, 0.0
    %v1870 = vand.u32 2147483647, %v1868
    %v1871 = vsub.f32 0.0, %v1870
    %v1872 = vmul.f32 %v1871, 1.442695
    %v1873 = vpow.pop %v1872
    %v1874 = vadd.f32 %v1873, 1.0
    %v1875 = vlog2.pop %v1874
    %v1876 = vmul.f32 %v1875, 0.6931472
    %v1877 = vmul.f32 -0.5, %v1873
    %v1878 = vadd.f32 %v1877, 1.0
    %v1879 = vmul.f32 %v1878, %v1873
    %v1880 = vand.u32 2147483647, %v1873
    %vm1881 = vcmp.lt.f32.partialorder %v1880, 0.0004427343
    %v1882 = vsel %vm1881, %v1879, %v1876
    %v1883 = vadd.f32 %v1869, %v1882
    %v1884 = vmax.f32 %v1724, 0.0
    %v1885 = vand.u32 2147483647, %v1724
    %v1886 = vsub.f32 0.0, %v1885
    %v1887 = vmul.f32 %v1886, 1.442695
    %v1888 = vpow.pop %v1887
    %v1889 = vadd.f32 %v1888, 1.0
    %v1890 = vlog2.pop %v1889
    %v1891 = vmul.f32 %v1890, 0.6931472
    %v1892 = vmul.f32 -0.5, %v1888
    %v1893 = vadd.f32 %v1892, 1.0
    %v1894 = vmul.f32 %v1893, %v1888
    %v1895 = vand.u32 2147483647, %v1888
    %vm1896 = vcmp.lt.f32.partialorder %v1895, 0.0004427343
    %v1897 = vsel %vm1896, %v1894, %v1891
    %v1898 = vadd.f32 %v1884, %v1897
    %v1899 = vadd.f32 %v1883, %v1898
    %v1900 = vstv %s1622
    %v1901 = vmul.f32 %v1900, %v1899
    %v1902 = vadd.f32 %v1867, %v1901
    %vm1903 = vcmask 7168
    %v1904 = vsel %vm1903, %v1902, 0.0
    %1905 = vadd.xlane.f32.xlu0 %v1904
    %v1906 = vpop.xlane.xlu0 %1905
    %v1907 = vrot.slane %v1906, 4
    %v1908 = vadd.f32 %v1906, %v1907
    %v1909 = vrot.slane %v1908, 2
    %v1910 = vadd.f32 %v1908, %v1909
    %v1911 = vrot.slane %v1910, 1
    %v1912 = vadd.f32 %v1910, %v1911
    %s1913 = vtos %v1912
    %s1914 = smul.f32 %s1833, 0.015625
    %s1915 = smul.f32 %s1913, 0.125
    %s1916 = sadd.f32 %s1914, %s1915
    %s1917 = smul.f32 %s1747, 0.125
    %s1918 = smul.f32 %s1623, %s1917
    %s1919 = sadd.f32 %s1916, %s1918
    %s1920 = scalar_lea.smem [#allocation13], 0
    %1921 = sst [smem:[%s1920]] %s1919
    // Predicated region
    $region1006: #{tpu_custom_call.1} parent=1 // pred_check
      _
    $region1007: #{tpu_custom_call.1} parent=1 // pred_check_branch
      %1923 = sbr.rel (0) target = $region1009
    $region1008: #{tpu_custom_call.1} parent=1 // pred_region
      %s1925 = ssub.s32 16, 16
      %1926 = vsyncadd [#allocation5], %s1925
      %1929 = dma.smem_to_hbm [#allocation13], 16, %s8, [#allocation5]
    $region1009: #{tpu_custom_call.1} parent=1 // pred_fallthru
      _
    // Predicated region
    $region1010: #{tpu_custom_call.1} parent=1 // pred_check
      _
    $region1011: #{tpu_custom_call.1} parent=1 // pred_check_branch
      %1931 = sbr.rel (0) target = $region1013
    $region1012: #{tpu_custom_call.1} parent=1 // pred_region
      %1932 = dma.done [#allocation5], 16
    $region1013: #{tpu_custom_call.1} parent=1 // pred_fallthru
      _
    %1933 = sfence
    %1934 = vsyncpa [#allocation5], 1
    %1935 = vsyncpa [#allocation6], 1
    %1936 = vsyncpa [#allocation8], 1
    %1937 = vsyncpa [#allocation11], 1
  %1938 = vsyncmov [#allocation3]
  %s1939 = vpop.sfrf %1938
  %p1940 = scmp.eq.s32.totalorder %s1939, 0
  %p1941 = pneg %p1940
  %1943 = shalt.err (%p1941)
  %s1944 = scalar_lea.sflag [#allocation3], 1
  %1945 = vsyncmov %s1944
  %s1946 = vpop.sfrf %1945
  %p1947 = scmp.eq.s32.totalorder %s1946, 0
  %p1948 = pneg %p1947
  %1950 = shalt.err (%p1948)
  %s1951 = scalar_lea.sflag [#allocation3], 2
  %1952 = vsyncmov %s1951
  %s1953 = vpop.sfrf %1952
  %p1954 = scmp.eq.s32.totalorder %s1953, 0
  %p1955 = pneg %p1954
  %1957 = shalt.err (%p1955)
  %s1958 = scalar_lea.sflag [#allocation3], 3
  %1959 = vsyncmov %s1958
  %s1960 = vpop.sfrf %1959
  %p1961 = scmp.eq.s32.totalorder %s1960, 0
  %p1962 = pneg %p1961
  %1964 = shalt.err (%p1962)
  %s1965 = scalar_lea.sflag [#allocation3], 4
  %1966 = vsyncmov %s1965
  %s1967 = vpop.sfrf %1966
  %p1968 = scmp.eq.s32.totalorder %s1967, 0
  %p1969 = pneg %p1968
  %1971 = shalt.err (%p1969)
  %s1972 = scalar_lea.sflag [#allocation3], 5
  %1973 = vsyncmov %s1972
  %s1974 = vpop.sfrf %1973
  %p1975 = scmp.eq.s32.totalorder %s1974, 0
  %p1976 = pneg %p1975
  %1978 = shalt.err (%p1976)
  %s1979 = scalar_lea.sflag [#allocation3], 6
  %1980 = vsyncmov %s1979
  %s1981 = vpop.sfrf %1980
  %p1982 = scmp.eq.s32.totalorder %s1981, 0
  %p1983 = pneg %p1982
  %1985 = shalt.err (%p1983)
  %s1986 = scalar_lea.sflag [#allocation3], 7
  %1987 = vsyncmov %s1986
  %s1988 = vpop.sfrf %1987
  %p1989 = scmp.eq.s32.totalorder %s1988, 0
  %p1990 = pneg %p1989
  %1992 = shalt.err (%p1990)
  %s1993 = scalar_lea.sflag [#allocation3], 8
  %1994 = vsyncmov %s1993
  %s1995 = vpop.sfrf %1994
  %p1996 = scmp.eq.s32.totalorder %s1995, 0
  %p1997 = pneg %p1996
  %1999 = shalt.err (%p1997)
  %s2000 = scalar_lea.sflag [#allocation3], 9
  %2001 = vsyncmov %s2000
  %s2002 = vpop.sfrf %2001
  %p2003 = scmp.eq.s32.totalorder %s2002, 0
  %p2004 = pneg %p2003
  %2006 = shalt.err (%p2004)
  %s2007 = scalar_lea.sflag [#allocation3], 10
  %2008 = vsyncmov %s2007
  %s2009 = vpop.sfrf %2008
  %p2010 = scmp.eq.s32.totalorder %s2009, 0
  %p2011 = pneg %p2010
  %2013 = shalt.err (%p2011)
  %s2014 = scalar_lea.sflag [#allocation3], 11
  %2015 = vsyncmov %s2014
  %s2016 = vpop.sfrf %2015
  %p2017 = scmp.eq.s32.totalorder %s2016, 0
  %p2018 = pneg %p2017
  %2020 = shalt.err (%p2018)
  %s2021 = scalar_lea.sflag [#allocation3], 12
  %2022 = vsyncmov %s2021
  %s2023 = vpop.sfrf %2022
  %p2024 = scmp.eq.s32.totalorder %s2023, 0
  %p2025 = pneg %p2024
  %2027 = shalt.err (%p2025)
  %s2028 = scalar_lea.sflag [#allocation3], 13
  %2029 = vsyncmov %s2028
  %s2030 = vpop.sfrf %2029
  %p2031 = scmp.eq.s32.totalorder %s2030, 0
  %p2032 = pneg %p2031
  %2034 = shalt.err (%p2032)
  %s2035 = scalar_lea.sflag [#allocation3], 14
  %2036 = vsyncmov %s2035
  %s2037 = vpop.sfrf %2036
  %p2038 = scmp.eq.s32.totalorder %s2037, 0
  %p2039 = pneg %p2038
  %2041 = shalt.err (%p2039)
  %s2042 = scalar_lea.sflag [#allocation3], 15
  %2043 = vsyncmov %s2042
  %s2044 = vpop.sfrf %2043
  %p2045 = scmp.eq.s32.totalorder %s2044, 0
  %p2046 = pneg %p2045
  %2048 = shalt.err (%p2046)
  %s2049 = scalar_lea.sflag [#allocation3], 16
  %2050 = vsyncmov %s2049
  %s2051 = vpop.sfrf %2050
  %p2052 = scmp.eq.s32.totalorder %s2051, 0
  %p2053 = pneg %p2052
  %2055 = shalt.err (%p2053)
  %s2056 = scalar_lea.sflag [#allocation3], 17
  %2057 = vsyncmov %s2056
  %s2058 = vpop.sfrf %2057
  %p2059 = scmp.eq.s32.totalorder %s2058, 0
  %p2060 = pneg %p2059
  %2062 = shalt.err (%p2060)
  %s2063 = scalar_lea.sflag [#allocation3], 18
  %2064 = vsyncmov %s2063
  %s2065 = vpop.sfrf %2064
  %p2066 = scmp.eq.s32.totalorder %s2065, 0
  %p2067 = pneg %p2066
  %2069 = shalt.err (%p2067)
  %s2070 = scalar_lea.sflag [#allocation3], 19
  %2071 = vsyncmov %s2070
  %s2072 = vpop.sfrf %2071
  %p2073 = scmp.eq.s32.totalorder %s2072, 0
  %p2074 = pneg %p2073
  %2076 = shalt.err (%p2074)
  %s2077 = scalar_lea.sflag [#allocation3], 20
  %2078 = vsyncmov %s2077
  %s2079 = vpop.sfrf %2078
  %p2080 = scmp.eq.s32.totalorder %s2079, 0
  %p2081 = pneg %p2080
  %2083 = shalt.err (%p2081)
  %s2084 = scalar_lea.sflag [#allocation3], 21
  %2085 = vsyncmov %s2084
  %s2086 = vpop.sfrf %2085
  %p2087 = scmp.eq.s32.totalorder %s2086, 0
  %p2088 = pneg %p2087
  %2090 = shalt.err (%p2088)
  %s2091 = scalar_lea.sflag [#allocation3], 22
  %2092 = vsyncmov %s2091
  %s2093 = vpop.sfrf %2092
  %p2094 = scmp.eq.s32.totalorder %s2093, 0
  %p2095 = pneg %p2094
  %2097 = shalt.err (%p2095)
  %s2098 = scalar_lea.sflag [#allocation3], 23
  %2099 = vsyncmov %s2098
  %s2100 = vpop.sfrf %2099
  %p2101 = scmp.eq.s32.totalorder %s2100, 0
  %p2102 = pneg %p2101
  %2104 = shalt.err (%p2102)
  %s2105 = scalar_lea.sflag [#allocation3], 24
  %2106 = vsyncmov %s2105
  %s2107 = vpop.sfrf %2106
  %p2108 = scmp.eq.s32.totalorder %s2107, 0
  %p2109 = pneg %p2108
  %2111 = shalt.err (%p2109)
  %s2112 = scalar_lea.sflag [#allocation3], 25
  %2113 = vsyncmov %s2112
  %s2114 = vpop.sfrf %2113
  %p2115 = scmp.eq.s32.totalorder %s2114, 0
  %p2116 = pneg %p2115
  %2118 = shalt.err (%p2116)
  %s2119 = scalar_lea.sflag [#allocation3], 26
  %2120 = vsyncmov %s2119
  %s2121 = vpop.sfrf %2120
  %p2122 = scmp.eq.s32.totalorder %s2121, 0
  %p2123 = pneg %p2122
  %2125 = shalt.err (%p2123)
  %s2126 = scalar_lea.sflag [#allocation3], 27
  %2127 = vsyncmov %s2126
  %s2128 = vpop.sfrf %2127
  %p2129 = scmp.eq.s32.totalorder %s2128, 0
  %p2130 = pneg %p2129
  %2132 = shalt.err (%p2130)
  %s2133 = scalar_lea.sflag [#allocation3], 28
  %2134 = vsyncmov %s2133
  %s2135 = vpop.sfrf %2134
  %p2136 = scmp.eq.s32.totalorder %s2135, 0
  %p2137 = pneg %p2136
  %2139 = shalt.err (%p2137)
  %s2140 = scalar_lea.sflag [#allocation3], 29
  %2141 = vsyncmov %s2140
  %s2142 = vpop.sfrf %2141
  %p2143 = scmp.eq.s32.totalorder %s2142, 0
  %p2144 = pneg %p2143
  %2146 = shalt.err (%p2144)
  %s2147 = scalar_lea.sflag [#allocation3], 30
  %2148 = vsyncmov %s2147
  %s2149 = vpop.sfrf %2148
  %p2150 = scmp.eq.s32.totalorder %s2149, 0
  %p2151 = pneg %p2150
  %2153 = shalt.err (%p2151)
  %s2154 = scalar_lea.sflag [#allocation3], 31
  %2155 = vsyncmov %s2154
  %s2156 = vpop.sfrf %2155
  %p2157 = scmp.eq.s32.totalorder %s2156, 0
  %p2158 = pneg %p2157
  %2160 = shalt.err (%p2158)

</llo_original>
